<compile_context>
chip_gen: v6e
topology: v6e:2x2x1
jax: 0.10.0
libtpu: 0.0.40
codegen_flags: <defaults>
</compile_context>

<pallas_src>
import functools

import jax
import jax.numpy as jnp
from jax import lax
from jax.experimental import pallas as pl
from jax.experimental.pallas import tpu as pltpu


def _round_up(x: int, m: int) -> int:
    return (x + m - 1) // m * m


# -----------------------------------------------------------------------------
# Pallas kernel: encoder -> exact-k sparsify -> decoder for one tile of rows.
# -----------------------------------------------------------------------------
def _ksae_kernel(x_ref,
                 w1, b1, w2, b2, w3, b3,        # encoder params
                 w4, b4, w5, b5, w6, b6,        # decoder params
                 o_ref,
                 *, sparsity: int, compute_dtype):
    cd = compute_dtype

    def dense(h, w_ref, b_ref, relu=True):
        y = jnp.dot(h, w_ref[...], preferred_element_type=jnp.float32) + b_ref[...]
        return jnp.maximum(y, 0.0) if relu else y

    # ---- encoder: 3 x (Linear + ReLU), matmuls in compute dtype, f32 accum --
    x = x_ref[...].astype(cd)
    h = dense(x, w1, b1).astype(cd)
    h = dense(h, w2, b2).astype(cd)
    feat = dense(h, w3, b3)                      # f32, (tile_m, hid_pad)

    # ---- top-k sparsity mask (per row): k argmax selections, unrolled -------
    hid_dim = feat.shape[-1]
    col_idx = lax.broadcasted_iota(jnp.int32, feat.shape, dimension=1)
    work = feat                                  # working copy, selected -> -inf
    mask = jnp.zeros_like(feat)
    for _ in range(sparsity):                    # static unroll (sparsity static)
        row_max = jnp.max(work, axis=-1, keepdims=True)
        cand = jnp.where(work == row_max, col_idx, hid_dim)
        pick = jnp.min(cand, axis=-1, keepdims=True)      # first occurrence
        onehot = col_idx == pick
        mask = jnp.where(onehot, 1.0, mask)
        work = jnp.where(onehot, -jnp.inf, work)
    feat = (feat * mask).astype(cd)

    # ---- decoder: 2 x (Linear + ReLU) + final Linear ------------------------
    h = dense(feat, w4, b4).astype(cd)
    h = dense(h, w5, b5).astype(cd)
    out = dense(h, w6, b6, relu=False)

    o_ref[...] = out.astype(o_ref.dtype)


# -----------------------------------------------------------------------------
# Wrapper: padding / casting glue + pallas_call.
# -----------------------------------------------------------------------------
def ksae_forward(x, params, *, sparsity, tile_m=128, lane_multiple=128,
                 compute_dtype=jnp.bfloat16):
    B, C, Ph, Pw, H, W = x.shape
    N = B * C * Ph * Pw
    imgsize = H * W

    (w1, b1, w2, b2, w3, b3, w4, b4, w5, b5, w6, b6) = params
    hid = w1.shape[1]
    assert 1 <= sparsity <= hid
    assert tile_m % 8 == 0, "tile_m must be a multiple of the f32 sublane count (8)"

    imgsize_p = _round_up(imgsize, lane_multiple)
    hid_p = _round_up(hid, lane_multiple)
    n_p = _round_up(N, tile_m)

    # ---- pad activations / weights with exact zeros, cast once --------------
    x_in = x.reshape(N, imgsize)
    x_pad = jnp.pad(x_in, ((0, n_p - N), (0, imgsize_p - imgsize))).astype(compute_dtype)

    def pad_w(w, rows, cols):
        return jnp.pad(w, ((0, rows - w.shape[0]), (0, cols - w.shape[1]))
                       ).astype(compute_dtype)

    def pad_b(b, cols):
        return jnp.pad(b, (0, cols - b.shape[0])).reshape(1, cols).astype(jnp.float32)

    padded_params = (
        pad_w(w1, imgsize_p, hid_p), pad_b(b1, hid_p),
        pad_w(w2, hid_p, hid_p),     pad_b(b2, hid_p),
        pad_w(w3, hid_p, hid_p),     pad_b(b3, hid_p),
        pad_w(w4, hid_p, hid_p),     pad_b(b4, hid_p),
        pad_w(w5, hid_p, hid_p),     pad_b(b5, hid_p),
        pad_w(w6, hid_p, imgsize_p), pad_b(b6, imgsize_p),
    )

    # Whole-array, VMEM-resident params: no per-grid-step re-buffering.
    param_specs = [pl.BlockSpec(memory_space=pltpu.MemorySpace.VMEM)] * 12

    # Advisory cost estimate for XLA scheduling around the custom call.
    flops = 2 * n_p * (2 * imgsize_p * hid_p + 4 * hid_p * hid_p)
    param_bytes = sum(int(p.size) * p.dtype.itemsize for p in padded_params)
    bytes_accessed = (int(x_pad.size) * x_pad.dtype.itemsize
                      + n_p * imgsize_p * 4 + param_bytes)

    grid = (n_p // tile_m,)   # keep >= 2 steps when possible (v7x megacore)

    out_flat = pl.pallas_call(
        functools.partial(_ksae_kernel, sparsity=sparsity,
                          compute_dtype=compute_dtype),
        out_shape=jax.ShapeDtypeStruct((n_p, imgsize_p), x.dtype),
        grid=grid,
        in_specs=[pl.BlockSpec((tile_m, imgsize_p), lambda i: (i, 0))]
                 + param_specs,
        out_specs=pl.BlockSpec((tile_m, imgsize_p), lambda i: (i, 0)),
        compiler_params=pltpu.CompilerParams(
            dimension_semantics=("parallel",),
            vmem_limit_bytes=48 * 1024 * 1024),
        cost_estimate=pl.CostEstimate(flops=flops, transcendentals=0,
                                      bytes_accessed=bytes_accessed),
    )(x_pad, *padded_params)

    out = out_flat[:N, :imgsize]
    return out.reshape(B, C, Ph, Pw, H, W)


# -----------------------------------------------------------------------------
# Pure-JAX reference.  compute_dtype=float32 matches the PyTorch forward
# exactly; compute_dtype=bfloat16 mirrors the kernel's bf16 casting pattern.
# -----------------------------------------------------------------------------
def ksae_reference(x, params, *, sparsity, compute_dtype=jnp.float32):
    B, C, Ph, Pw, H, W = x.shape
    N = B * C * Ph * Pw
    x_in = x.reshape(N, H * W)
    (w1, b1, w2, b2, w3, b3, w4, b4, w5, b5, w6, b6) = params
    cd = compute_dtype

    def dense(h, w, b, relu=True):
        y = jnp.dot(h.astype(cd), w.astype(cd),
                    preferred_element_type=jnp.float32) + b
        return jnp.maximum(y, 0.0) if relu else y

    h = dense(x_in, w1, b1)
    h = dense(h, w2, b2)
    feat = dense(h, w3, b3)

    _, idx = lax.top_k(feat, sparsity)
    mask = jnp.zeros_like(feat).at[jnp.arange(N)[:, None], idx].set(1.0)
    feat = feat * mask

    h = dense(feat, w4, b4)
    h = dense(h, w5, b5)
    out = dense(h, w6, b6, relu=False)
    return out.reshape(B, C, Ph, Pw, H, W)


# -----------------------------------------------------------------------------
# Deterministic parameter init (synthetic; shapes follow KSAE.__init__).
# Weights use the (in_features, out_features) layout: y = x @ W + b.
# -----------------------------------------------------------------------------
def init_params(key, imgsize, hid_ch):
    dims = [(imgsize, hid_ch), (hid_ch, hid_ch), (hid_ch, hid_ch),   # encoder
            (hid_ch, hid_ch), (hid_ch, hid_ch), (hid_ch, imgsize)]   # decoder
    params = []
    for (din, dout) in dims:
        key, kw, kb = jax.random.split(key, 3)
        scale = 1.0 / jnp.sqrt(din)
        w = jax.random.uniform(kw, (din, dout), jnp.float32, -scale, scale)
        b = jax.random.uniform(kb, (dout,), jnp.float32, -scale, scale)
        params += [w, b]
    return tuple(params)


if __name__ == "__main__":
    # Small shapes consistent with the module: imgsize = H*W, N = B*C*Ph*Pw.
    B, C, Ph, Pw, H, W = 2, 4, 4, 8, 8, 8     # N = 256 rows -> 2 grid steps
    IMGSIZE = H * W                           # 64
    HID_CH = 32
    SPARSITY = 8

    key = jax.random.PRNGKey(0)
    kx, kp = jax.random.split(key)
    x = jax.random.normal(kx, (B, C, Ph, Pw, H, W), jnp.float32)
    params = init_params(kp, IMGSIZE, HID_CH)

    # ---- exact f32 path: must match the PyTorch-equivalent reference --------
    out_f32 = jax.block_until_ready(
        ksae_forward(x, params, sparsity=SPARSITY, tile_m=128,
                     compute_dtype=jnp.float32))
    ref_f32 = ksae_reference(x, params, sparsity=SPARSITY,
                             compute_dtype=jnp.float32)
    assert out_f32.shape == (B, C, Ph, Pw, H, W)
    assert jnp.allclose(out_f32, ref_f32, rtol=1e-4, atol=1e-4), "f32 mismatch"

    # ---- fast bf16 path (default): compare vs bf16-mirrored reference -------
    out_bf16 = jax.block_until_ready(
        ksae_forward(x, params, sparsity=SPARSITY, tile_m=128,
                     compute_dtype=jnp.bfloat16))
    ref_bf16 = ksae_reference(x, params, sparsity=SPARSITY,
                              compute_dtype=jnp.bfloat16)
    assert out_bf16.shape == (B, C, Ph, Pw, H, W)
    assert jnp.allclose(out_bf16, ref_bf16, rtol=5e-2, atol=5e-2), "bf16 mismatch"

    print("KERNEL_OK")
</pallas_src>

<mosaic_0001>
module attributes {stable_mosaic.version = 11 : i64} {
  func.func @_ksae_kernel(%arg0: i32, %arg1: memref<128x128xf32, #tpu.memory_space<vmem>>, %arg2: memref<128x128xf32, #tpu.memory_space<vmem>>, %arg3: memref<1x128xf32, #tpu.memory_space<vmem>>, %arg4: memref<128x128xf32, #tpu.memory_space<vmem>>, %arg5: memref<1x128xf32, #tpu.memory_space<vmem>>, %arg6: memref<128x128xf32, #tpu.memory_space<vmem>>, %arg7: memref<1x128xf32, #tpu.memory_space<vmem>>, %arg8: memref<128x128xf32, #tpu.memory_space<vmem>>, %arg9: memref<1x128xf32, #tpu.memory_space<vmem>>, %arg10: memref<128x128xf32, #tpu.memory_space<vmem>>, %arg11: memref<1x128xf32, #tpu.memory_space<vmem>>, %arg12: memref<128x128xf32, #tpu.memory_space<vmem>>, %arg13: memref<1x128xf32, #tpu.memory_space<vmem>>, %arg14: memref<128x128xf32, #tpu.memory_space<vmem>>) attributes {dimension_semantics = [#tpu.dimension_semantics<parallel>], iteration_bounds = array<i64: 2>, scalar_prefetch = 0 : i64, scratch_operands = 0 : i64, tpu.core_type = #tpu.core_type<tc>, window_params = [{transform_indices = @transform_0, window_bounds = array<i64: 128, 128>}, {pipeline_mode = #tpu.pipeline_mode<synchronous>, transform_indices = @transform_1, window_bounds = array<i64: 128, 128>}, {pipeline_mode = #tpu.pipeline_mode<synchronous>, transform_indices = @transform_2, window_bounds = array<i64: 1, 128>}, {pipeline_mode = #tpu.pipeline_mode<synchronous>, transform_indices = @transform_3, window_bounds = array<i64: 128, 128>}, {pipeline_mode = #tpu.pipeline_mode<synchronous>, transform_indices = @transform_4, window_bounds = array<i64: 1, 128>}, {pipeline_mode = #tpu.pipeline_mode<synchronous>, transform_indices = @transform_5, window_bounds = array<i64: 128, 128>}, {pipeline_mode = #tpu.pipeline_mode<synchronous>, transform_indices = @transform_6, window_bounds = array<i64: 1, 128>}, {pipeline_mode = #tpu.pipeline_mode<synchronous>, transform_indices = @transform_7, window_bounds = array<i64: 128, 128>}, {pipeline_mode = #tpu.pipeline_mode<synchronous>, transform_indices = @transform_8, window_bounds = array<i64: 1, 128>}, {pipeline_mode = #tpu.pipeline_mode<synchronous>, transform_indices = @transform_9, window_bounds = array<i64: 128, 128>}, {pipeline_mode = #tpu.pipeline_mode<synchronous>, transform_indices = @transform_10, window_bounds = array<i64: 1, 128>}, {pipeline_mode = #tpu.pipeline_mode<synchronous>, transform_indices = @transform_11, window_bounds = array<i64: 128, 128>}, {pipeline_mode = #tpu.pipeline_mode<synchronous>, transform_indices = @transform_12, window_bounds = array<i64: 1, 128>}, {transform_indices = @transform_13, window_bounds = array<i64: 128, 128>}]} {
    %c0 = arith.constant 0 : index
    %c0_0 = arith.constant 0 : index
    %0 = vector.load %arg1[%c0, %c0_0] : memref<128x128xf32, #tpu.memory_space<vmem>>, vector<128x128xf32>
    %c0_1 = arith.constant 0 : index
    %c0_2 = arith.constant 0 : index
    %1 = vector.load %arg2[%c0_1, %c0_2] : memref<128x128xf32, #tpu.memory_space<vmem>>, vector<128x128xf32>
    %cst = arith.constant dense<0.000000e+00> : vector<128x128xf32>
    %2 = tpu.matmul %0, %1, %cst {dimension_numbers = #tpu.dot_dimension_numbers<[1], [0], [0], [1], [0, 0, 1, 1], [], []>} : vector<128x128xf32>, vector<128x128xf32>, vector<128x128xf32> -> vector<128x128xf32>
    %c0_3 = arith.constant 0 : index
    %c0_4 = arith.constant 0 : index
    %3 = vector.load %arg3[%c0_3, %c0_4] : memref<1x128xf32, #tpu.memory_space<vmem>>, vector<1x128xf32>
    %4 = vector.broadcast %3 : vector<1x128xf32> to vector<128x128xf32>
    %5 = arith.addf %2, %4 : vector<128x128xf32>
    %cst_5 = arith.constant 0.000000e+00 : f32
    %6 = vector.broadcast %cst_5 : f32 to vector<128x128xf32>
    %7 = arith.maximumf %5, %6 : vector<128x128xf32>
    %c0_6 = arith.constant 0 : index
    %c0_7 = arith.constant 0 : index
    %8 = vector.load %arg4[%c0_6, %c0_7] : memref<128x128xf32, #tpu.memory_space<vmem>>, vector<128x128xf32>
    %cst_8 = arith.constant dense<0.000000e+00> : vector<128x128xf32>
    %9 = tpu.matmul %7, %8, %cst_8 {dimension_numbers = #tpu.dot_dimension_numbers<[1], [0], [0], [1], [0, 0, 1, 1], [], []>} : vector<128x128xf32>, vector<128x128xf32>, vector<128x128xf32> -> vector<128x128xf32>
    %c0_9 = arith.constant 0 : index
    %c0_10 = arith.constant 0 : index
    %10 = vector.load %arg5[%c0_9, %c0_10] : memref<1x128xf32, #tpu.memory_space<vmem>>, vector<1x128xf32>
    %11 = vector.broadcast %10 : vector<1x128xf32> to vector<128x128xf32>
    %12 = arith.addf %9, %11 : vector<128x128xf32>
    %cst_11 = arith.constant 0.000000e+00 : f32
    %13 = vector.broadcast %cst_11 : f32 to vector<128x128xf32>
    %14 = arith.maximumf %12, %13 : vector<128x128xf32>
    %c0_12 = arith.constant 0 : index
    %c0_13 = arith.constant 0 : index
    %15 = vector.load %arg6[%c0_12, %c0_13] : memref<128x128xf32, #tpu.memory_space<vmem>>, vector<128x128xf32>
    %cst_14 = arith.constant dense<0.000000e+00> : vector<128x128xf32>
    %16 = tpu.matmul %14, %15, %cst_14 {dimension_numbers = #tpu.dot_dimension_numbers<[1], [0], [0], [1], [0, 0, 1, 1], [], []>} : vector<128x128xf32>, vector<128x128xf32>, vector<128x128xf32> -> vector<128x128xf32>
    %c0_15 = arith.constant 0 : index
    %c0_16 = arith.constant 0 : index
    %17 = vector.load %arg7[%c0_15, %c0_16] : memref<1x128xf32, #tpu.memory_space<vmem>>, vector<1x128xf32>
    %18 = vector.broadcast %17 : vector<1x128xf32> to vector<128x128xf32>
    %19 = arith.addf %16, %18 : vector<128x128xf32>
    %cst_17 = arith.constant 0.000000e+00 : f32
    %20 = vector.broadcast %cst_17 : f32 to vector<128x128xf32>
    %21 = arith.maximumf %19, %20 : vector<128x128xf32>
    %22 = tpu.iota {dimensions = array<i32: 1>} : vector<128x128xi32>
    %cst_18 = arith.constant 0.000000e+00 : f32
    %23 = vector.broadcast %cst_18 : f32 to vector<128x128xf32>
    %cst_19 = arith.constant dense<0xFF800000> : vector<128xf32>
    %24 = vector.multi_reduction <maximumf>, %21, %cst_19 [1] : vector<128x128xf32> to vector<128xf32>
    %25 = vector.shape_cast %24 : vector<128xf32> to vector<128x1xf32>
    %26 = vector.broadcast %25 : vector<128x1xf32> to vector<128x128xf32>
    %27 = arith.cmpf oeq, %21, %26 : vector<128x128xf32>
    %c128_i32 = arith.constant 128 : i32
    %28 = vector.broadcast %c128_i32 : i32 to vector<128x128xi32>
    %29 = arith.select %27, %22, %28 : vector<128x128xi1>, vector<128x128xi32>
    %cst_20 = arith.constant dense<2147483647> : vector<128xi32>
    %30 = vector.multi_reduction <minsi>, %29, %cst_20 [1] : vector<128x128xi32> to vector<128xi32>
    %31 = vector.shape_cast %30 : vector<128xi32> to vector<128x1xi32>
    %32 = vector.broadcast %31 : vector<128x1xi32> to vector<128x128xi32>
    %33 = arith.cmpi eq, %22, %32 : vector<128x128xi32>
    %cst_21 = arith.constant 1.000000e+00 : f32
    %34 = vector.broadcast %cst_21 : f32 to vector<128x128xf32>
    %35 = arith.select %33, %34, %23 : vector<128x128xi1>, vector<128x128xf32>
    %cst_22 = arith.constant 0xFF800000 : f32
    %36 = vector.broadcast %cst_22 : f32 to vector<128x128xf32>
    %37 = arith.select %33, %36, %21 : vector<128x128xi1>, vector<128x128xf32>
    %cst_23 = arith.constant dense<0xFF800000> : vector<128xf32>
    %38 = vector.multi_reduction <maximumf>, %37, %cst_23 [1] : vector<128x128xf32> to vector<128xf32>
    %39 = vector.shape_cast %38 : vector<128xf32> to vector<128x1xf32>
    %40 = vector.broadcast %39 : vector<128x1xf32> to vector<128x128xf32>
    %41 = arith.cmpf oeq, %37, %40 : vector<128x128xf32>
    %c128_i32_24 = arith.constant 128 : i32
    %42 = vector.broadcast %c128_i32_24 : i32 to vector<128x128xi32>
    %43 = arith.select %41, %22, %42 : vector<128x128xi1>, vector<128x128xi32>
    %cst_25 = arith.constant dense<2147483647> : vector<128xi32>
    %44 = vector.multi_reduction <minsi>, %43, %cst_25 [1] : vector<128x128xi32> to vector<128xi32>
    %45 = vector.shape_cast %44 : vector<128xi32> to vector<128x1xi32>
    %46 = vector.broadcast %45 : vector<128x1xi32> to vector<128x128xi32>
    %47 = arith.cmpi eq, %22, %46 : vector<128x128xi32>
    %cst_26 = arith.constant 1.000000e+00 : f32
    %48 = vector.broadcast %cst_26 : f32 to vector<128x128xf32>
    %49 = arith.select %47, %48, %35 : vector<128x128xi1>, vector<128x128xf32>
    %cst_27 = arith.constant 0xFF800000 : f32
    %50 = vector.broadcast %cst_27 : f32 to vector<128x128xf32>
    %51 = arith.select %47, %50, %37 : vector<128x128xi1>, vector<128x128xf32>
    %cst_28 = arith.constant dense<0xFF800000> : vector<128xf32>
    %52 = vector.multi_reduction <maximumf>, %51, %cst_28 [1] : vector<128x128xf32> to vector<128xf32>
    %53 = vector.shape_cast %52 : vector<128xf32> to vector<128x1xf32>
    %54 = vector.broadcast %53 : vector<128x1xf32> to vector<128x128xf32>
    %55 = arith.cmpf oeq, %51, %54 : vector<128x128xf32>
    %c128_i32_29 = arith.constant 128 : i32
    %56 = vector.broadcast %c128_i32_29 : i32 to vector<128x128xi32>
    %57 = arith.select %55, %22, %56 : vector<128x128xi1>, vector<128x128xi32>
    %cst_30 = arith.constant dense<2147483647> : vector<128xi32>
    %58 = vector.multi_reduction <minsi>, %57, %cst_30 [1] : vector<128x128xi32> to vector<128xi32>
    %59 = vector.shape_cast %58 : vector<128xi32> to vector<128x1xi32>
    %60 = vector.broadcast %59 : vector<128x1xi32> to vector<128x128xi32>
    %61 = arith.cmpi eq, %22, %60 : vector<128x128xi32>
    %cst_31 = arith.constant 1.000000e+00 : f32
    %62 = vector.broadcast %cst_31 : f32 to vector<128x128xf32>
    %63 = arith.select %61, %62, %49 : vector<128x128xi1>, vector<128x128xf32>
    %cst_32 = arith.constant 0xFF800000 : f32
    %64 = vector.broadcast %cst_32 : f32 to vector<128x128xf32>
    %65 = arith.select %61, %64, %51 : vector<128x128xi1>, vector<128x128xf32>
    %cst_33 = arith.constant dense<0xFF800000> : vector<128xf32>
    %66 = vector.multi_reduction <maximumf>, %65, %cst_33 [1] : vector<128x128xf32> to vector<128xf32>
    %67 = vector.shape_cast %66 : vector<128xf32> to vector<128x1xf32>
    %68 = vector.broadcast %67 : vector<128x1xf32> to vector<128x128xf32>
    %69 = arith.cmpf oeq, %65, %68 : vector<128x128xf32>
    %c128_i32_34 = arith.constant 128 : i32
    %70 = vector.broadcast %c128_i32_34 : i32 to vector<128x128xi32>
    %71 = arith.select %69, %22, %70 : vector<128x128xi1>, vector<128x128xi32>
    %cst_35 = arith.constant dense<2147483647> : vector<128xi32>
    %72 = vector.multi_reduction <minsi>, %71, %cst_35 [1] : vector<128x128xi32> to vector<128xi32>
    %73 = vector.shape_cast %72 : vector<128xi32> to vector<128x1xi32>
    %74 = vector.broadcast %73 : vector<128x1xi32> to vector<128x128xi32>
    %75 = arith.cmpi eq, %22, %74 : vector<128x128xi32>
    %cst_36 = arith.constant 1.000000e+00 : f32
    %76 = vector.broadcast %cst_36 : f32 to vector<128x128xf32>
    %77 = arith.select %75, %76, %63 : vector<128x128xi1>, vector<128x128xf32>
    %cst_37 = arith.constant 0xFF800000 : f32
    %78 = vector.broadcast %cst_37 : f32 to vector<128x128xf32>
    %79 = arith.select %75, %78, %65 : vector<128x128xi1>, vector<128x128xf32>
    %cst_38 = arith.constant dense<0xFF800000> : vector<128xf32>
    %80 = vector.multi_reduction <maximumf>, %79, %cst_38 [1] : vector<128x128xf32> to vector<128xf32>
    %81 = vector.shape_cast %80 : vector<128xf32> to vector<128x1xf32>
    %82 = vector.broadcast %81 : vector<128x1xf32> to vector<128x128xf32>
    %83 = arith.cmpf oeq, %79, %82 : vector<128x128xf32>
    %c128_i32_39 = arith.constant 128 : i32
    %84 = vector.broadcast %c128_i32_39 : i32 to vector<128x128xi32>
    %85 = arith.select %83, %22, %84 : vector<128x128xi1>, vector<128x128xi32>
    %cst_40 = arith.constant dense<2147483647> : vector<128xi32>
    %86 = vector.multi_reduction <minsi>, %85, %cst_40 [1] : vector<128x128xi32> to vector<128xi32>
    %87 = vector.shape_cast %86 : vector<128xi32> to vector<128x1xi32>
    %88 = vector.broadcast %87 : vector<128x1xi32> to vector<128x128xi32>
    %89 = arith.cmpi eq, %22, %88 : vector<128x128xi32>
    %cst_41 = arith.constant 1.000000e+00 : f32
    %90 = vector.broadcast %cst_41 : f32 to vector<128x128xf32>
    %91 = arith.select %89, %90, %77 : vector<128x128xi1>, vector<128x128xf32>
    %cst_42 = arith.constant 0xFF800000 : f32
    %92 = vector.broadcast %cst_42 : f32 to vector<128x128xf32>
    %93 = arith.select %89, %92, %79 : vector<128x128xi1>, vector<128x128xf32>
    %cst_43 = arith.constant dense<0xFF800000> : vector<128xf32>
    %94 = vector.multi_reduction <maximumf>, %93, %cst_43 [1] : vector<128x128xf32> to vector<128xf32>
    %95 = vector.shape_cast %94 : vector<128xf32> to vector<128x1xf32>
    %96 = vector.broadcast %95 : vector<128x1xf32> to vector<128x128xf32>
    %97 = arith.cmpf oeq, %93, %96 : vector<128x128xf32>
    %c128_i32_44 = arith.constant 128 : i32
    %98 = vector.broadcast %c128_i32_44 : i32 to vector<128x128xi32>
    %99 = arith.select %97, %22, %98 : vector<128x128xi1>, vector<128x128xi32>
    %cst_45 = arith.constant dense<2147483647> : vector<128xi32>
    %100 = vector.multi_reduction <minsi>, %99, %cst_45 [1] : vector<128x128xi32> to vector<128xi32>
    %101 = vector.shape_cast %100 : vector<128xi32> to vector<128x1xi32>
    %102 = vector.broadcast %101 : vector<128x1xi32> to vector<128x128xi32>
    %103 = arith.cmpi eq, %22, %102 : vector<128x128xi32>
    %cst_46 = arith.constant 1.000000e+00 : f32
    %104 = vector.broadcast %cst_46 : f32 to vector<128x128xf32>
    %105 = arith.select %103, %104, %91 : vector<128x128xi1>, vector<128x128xf32>
    %cst_47 = arith.constant 0xFF800000 : f32
    %106 = vector.broadcast %cst_47 : f32 to vector<128x128xf32>
    %107 = arith.select %103, %106, %93 : vector<128x128xi1>, vector<128x128xf32>
    %cst_48 = arith.constant dense<0xFF800000> : vector<128xf32>
    %108 = vector.multi_reduction <maximumf>, %107, %cst_48 [1] : vector<128x128xf32> to vector<128xf32>
    %109 = vector.shape_cast %108 : vector<128xf32> to vector<128x1xf32>
    %110 = vector.broadcast %109 : vector<128x1xf32> to vector<128x128xf32>
    %111 = arith.cmpf oeq, %107, %110 : vector<128x128xf32>
    %c128_i32_49 = arith.constant 128 : i32
    %112 = vector.broadcast %c128_i32_49 : i32 to vector<128x128xi32>
    %113 = arith.select %111, %22, %112 : vector<128x128xi1>, vector<128x128xi32>
    %cst_50 = arith.constant dense<2147483647> : vector<128xi32>
    %114 = vector.multi_reduction <minsi>, %113, %cst_50 [1] : vector<128x128xi32> to vector<128xi32>
    %115 = vector.shape_cast %114 : vector<128xi32> to vector<128x1xi32>
    %116 = vector.broadcast %115 : vector<128x1xi32> to vector<128x128xi32>
    %117 = arith.cmpi eq, %22, %116 : vector<128x128xi32>
    %cst_51 = arith.constant 1.000000e+00 : f32
    %118 = vector.broadcast %cst_51 : f32 to vector<128x128xf32>
    %119 = arith.select %117, %118, %105 : vector<128x128xi1>, vector<128x128xf32>
    %cst_52 = arith.constant 0xFF800000 : f32
    %120 = vector.broadcast %cst_52 : f32 to vector<128x128xf32>
    %121 = arith.select %117, %120, %107 : vector<128x128xi1>, vector<128x128xf32>
    %cst_53 = arith.constant dense<0xFF800000> : vector<128xf32>
    %122 = vector.multi_reduction <maximumf>, %121, %cst_53 [1] : vector<128x128xf32> to vector<128xf32>
    %123 = vector.shape_cast %122 : vector<128xf32> to vector<128x1xf32>
    %124 = vector.broadcast %123 : vector<128x1xf32> to vector<128x128xf32>
    %125 = arith.cmpf oeq, %121, %124 : vector<128x128xf32>
    %c128_i32_54 = arith.constant 128 : i32
    %126 = vector.broadcast %c128_i32_54 : i32 to vector<128x128xi32>
    %127 = arith.select %125, %22, %126 : vector<128x128xi1>, vector<128x128xi32>
    %cst_55 = arith.constant dense<2147483647> : vector<128xi32>
    %128 = vector.multi_reduction <minsi>, %127, %cst_55 [1] : vector<128x128xi32> to vector<128xi32>
    %129 = vector.shape_cast %128 : vector<128xi32> to vector<128x1xi32>
    %130 = vector.broadcast %129 : vector<128x1xi32> to vector<128x128xi32>
    %131 = arith.cmpi eq, %22, %130 : vector<128x128xi32>
    %cst_56 = arith.constant 1.000000e+00 : f32
    %132 = vector.broadcast %cst_56 : f32 to vector<128x128xf32>
    %133 = arith.select %131, %132, %119 : vector<128x128xi1>, vector<128x128xf32>
    %134 = arith.mulf %21, %133 : vector<128x128xf32>
    %c0_57 = arith.constant 0 : index
    %c0_58 = arith.constant 0 : index
    %135 = vector.load %arg8[%c0_57, %c0_58] : memref<128x128xf32, #tpu.memory_space<vmem>>, vector<128x128xf32>
    %cst_59 = arith.constant dense<0.000000e+00> : vector<128x128xf32>
    %136 = tpu.matmul %134, %135, %cst_59 {dimension_numbers = #tpu.dot_dimension_numbers<[1], [0], [0], [1], [0, 0, 1, 1], [], []>} : vector<128x128xf32>, vector<128x128xf32>, vector<128x128xf32> -> vector<128x128xf32>
    %c0_60 = arith.constant 0 : index
    %c0_61 = arith.constant 0 : index
    %137 = vector.load %arg9[%c0_60, %c0_61] : memref<1x128xf32, #tpu.memory_space<vmem>>, vector<1x128xf32>
    %138 = vector.broadcast %137 : vector<1x128xf32> to vector<128x128xf32>
    %139 = arith.addf %136, %138 : vector<128x128xf32>
    %cst_62 = arith.constant 0.000000e+00 : f32
    %140 = vector.broadcast %cst_62 : f32 to vector<128x128xf32>
    %141 = arith.maximumf %139, %140 : vector<128x128xf32>
    %c0_63 = arith.constant 0 : index
    %c0_64 = arith.constant 0 : index
    %142 = vector.load %arg10[%c0_63, %c0_64] : memref<128x128xf32, #tpu.memory_space<vmem>>, vector<128x128xf32>
    %cst_65 = arith.constant dense<0.000000e+00> : vector<128x128xf32>
    %143 = tpu.matmul %141, %142, %cst_65 {dimension_numbers = #tpu.dot_dimension_numbers<[1], [0], [0], [1], [0, 0, 1, 1], [], []>} : vector<128x128xf32>, vector<128x128xf32>, vector<128x128xf32> -> vector<128x128xf32>
    %c0_66 = arith.constant 0 : index
    %c0_67 = arith.constant 0 : index
    %144 = vector.load %arg11[%c0_66, %c0_67] : memref<1x128xf32, #tpu.memory_space<vmem>>, vector<1x128xf32>
    %145 = vector.broadcast %144 : vector<1x128xf32> to vector<128x128xf32>
    %146 = arith.addf %143, %145 : vector<128x128xf32>
    %cst_68 = arith.constant 0.000000e+00 : f32
    %147 = vector.broadcast %cst_68 : f32 to vector<128x128xf32>
    %148 = arith.maximumf %146, %147 : vector<128x128xf32>
    %c0_69 = arith.constant 0 : index
    %c0_70 = arith.constant 0 : index
    %149 = vector.load %arg12[%c0_69, %c0_70] : memref<128x128xf32, #tpu.memory_space<vmem>>, vector<128x128xf32>
    %cst_71 = arith.constant dense<0.000000e+00> : vector<128x128xf32>
    %150 = tpu.matmul %148, %149, %cst_71 {dimension_numbers = #tpu.dot_dimension_numbers<[1], [0], [0], [1], [0, 0, 1, 1], [], []>} : vector<128x128xf32>, vector<128x128xf32>, vector<128x128xf32> -> vector<128x128xf32>
    %c0_72 = arith.constant 0 : index
    %c0_73 = arith.constant 0 : index
    %151 = vector.load %arg13[%c0_72, %c0_73] : memref<1x128xf32, #tpu.memory_space<vmem>>, vector<1x128xf32>
    %152 = vector.broadcast %151 : vector<1x128xf32> to vector<128x128xf32>
    %153 = arith.addf %150, %152 : vector<128x128xf32>
    %c0_74 = arith.constant 0 : index
    %c0_75 = arith.constant 0 : index
    %154 = vector.load %arg14[%c0_74, %c0_75] : memref<128x128xf32, #tpu.memory_space<vmem>>, vector<128x128xf32>
    tpu.vector_store %arg14[%c0_74, %c0_75], %153 {strides = array<i32>} : memref<128x128xf32, #tpu.memory_space<vmem>>, vector<128x128xf32>,
    return
  }
  func.func @transform_0(%arg0: i32) -> (i32, i32) {
    %c0_i32 = arith.constant 0 : i32
    %c0_i32_0 = arith.constant 0 : i32
    return %arg0, %c0_i32 : i32, i32
  }
  func.func @transform_1(%arg0: i32) -> (i32, i32) {
    %c0_i32 = arith.constant 0 : i32
    %c0_i32_0 = arith.constant 0 : i32
    %c0_i32_1 = arith.constant 0 : i32
    return %c0_i32, %c0_i32_0 : i32, i32
  }
  func.func @transform_2(%arg0: i32) -> (i32, i32) {
    %c0_i32 = arith.constant 0 : i32
    %c0_i32_0 = arith.constant 0 : i32
    %c0_i32_1 = arith.constant 0 : i32
    return %c0_i32, %c0_i32_0 : i32, i32
  }
  func.func @transform_3(%arg0: i32) -> (i32, i32) {
    %c0_i32 = arith.constant 0 : i32
    %c0_i32_0 = arith.constant 0 : i32
    %c0_i32_1 = arith.constant 0 : i32
    return %c0_i32, %c0_i32_0 : i32, i32
  }
  func.func @transform_4(%arg0: i32) -> (i32, i32) {
    %c0_i32 = arith.constant 0 : i32
    %c0_i32_0 = arith.constant 0 : i32
    %c0_i32_1 = arith.constant 0 : i32
    return %c0_i32, %c0_i32_0 : i32, i32
  }
  func.func @transform_5(%arg0: i32) -> (i32, i32) {
    %c0_i32 = arith.constant 0 : i32
    %c0_i32_0 = arith.constant 0 : i32
    %c0_i32_1 = arith.constant 0 : i32
    return %c0_i32, %c0_i32_0 : i32, i32
  }
  func.func @transform_6(%arg0: i32) -> (i32, i32) {
    %c0_i32 = arith.constant 0 : i32
    %c0_i32_0 = arith.constant 0 : i32
    %c0_i32_1 = arith.constant 0 : i32
    return %c0_i32, %c0_i32_0 : i32, i32
  }
  func.func @transform_7(%arg0: i32) -> (i32, i32) {
    %c0_i32 = arith.constant 0 : i32
    %c0_i32_0 = arith.constant 0 : i32
    %c0_i32_1 = arith.constant 0 : i32
    return %c0_i32, %c0_i32_0 : i32, i32
  }
  func.func @transform_8(%arg0: i32) -> (i32, i32) {
    %c0_i32 = arith.constant 0 : i32
    %c0_i32_0 = arith.constant 0 : i32
    %c0_i32_1 = arith.constant 0 : i32
    return %c0_i32, %c0_i32_0 : i32, i32
  }
  func.func @transform_9(%arg0: i32) -> (i32, i32) {
    %c0_i32 = arith.constant 0 : i32
    %c0_i32_0 = arith.constant 0 : i32
    %c0_i32_1 = arith.constant 0 : i32
    return %c0_i32, %c0_i32_0 : i32, i32
  }
  func.func @transform_10(%arg0: i32) -> (i32, i32) {
    %c0_i32 = arith.constant 0 : i32
    %c0_i32_0 = arith.constant 0 : i32
    %c0_i32_1 = arith.constant 0 : i32
    return %c0_i32, %c0_i32_0 : i32, i32
  }
  func.func @transform_11(%arg0: i32) -> (i32, i32) {
    %c0_i32 = arith.constant 0 : i32
    %c0_i32_0 = arith.constant 0 : i32
    %c0_i32_1 = arith.constant 0 : i32
    return %c0_i32, %c0_i32_0 : i32, i32
  }
  func.func @transform_12(%arg0: i32) -> (i32, i32) {
    %c0_i32 = arith.constant 0 : i32
    %c0_i32_0 = arith.constant 0 : i32
    %c0_i32_1 = arith.constant 0 : i32
    return %c0_i32, %c0_i32_0 : i32, i32
  }
  func.func @transform_13(%arg0: i32) -> (i32, i32) {
    %c0_i32 = arith.constant 0 : i32
    %c0_i32_0 = arith.constant 0 : i32
    return %arg0, %c0_i32 : i32, i32
  }
}

</mosaic_0001>

<llo_original>
// kernel: tpu_custom_call.1
$region0: #{tpu_custom_call.1}
  #allocation0 [shape = 'u32[]', space=smem, size = 0x4, offset = 0x4, fixed_abs, tag = 'smem constant byte address 0x4 - core index']
  #allocation1 [shape = 'u32[144,128]{1,0:T(1,128)}', space=vmem, size = 0x12000, scoped, tag = 'internal scratch']
  %s0 = inlined_call_operand.hbm [shape: f32[256,128], index: 0, kind: input, shape index: {}]
  %s1 = inlined_call_operand.hbm [shape: f32[128,128], index: 1, kind: input, shape index: {}]
  %s2 = inlined_call_operand.vmem [shape: f32[1,128], index: 2, kind: input, shape index: {}]
  %s3 = inlined_call_operand.hbm [shape: f32[128,128], index: 3, kind: input, shape index: {}]
  %s4 = inlined_call_operand.vmem [shape: f32[1,128], index: 4, kind: input, shape index: {}]
  %s5 = inlined_call_operand.hbm [shape: f32[128,128], index: 5, kind: input, shape index: {}]
  %s6 = inlined_call_operand.vmem [shape: f32[1,128], index: 6, kind: input, shape index: {}]
  %s7 = inlined_call_operand.hbm [shape: f32[128,128], index: 7, kind: input, shape index: {}]
  %s8 = inlined_call_operand.vmem [shape: f32[1,128], index: 8, kind: input, shape index: {}]
  %s9 = inlined_call_operand.hbm [shape: f32[128,128], index: 9, kind: input, shape index: {}]
  %s10 = inlined_call_operand.vmem [shape: f32[1,128], index: 10, kind: input, shape index: {}]
  %s11 = inlined_call_operand.hbm [shape: f32[128,128], index: 11, kind: input, shape index: {}]
  %s12 = inlined_call_operand.vmem [shape: f32[1,128], index: 12, kind: input, shape index: {}]
  %s13 = inlined_call_operand.hbm [shape: f32[256,128], index: 13, kind: output, shape index: {}]
  %s14 = sld [smem:[#allocation0]]
  $region113: #{tpu_custom_call.1} parent=0
    _
  %s16 = ssub.s32 1, %s14
  %s17 = scalar_select 0, %s16, %s14
  $region1: #{tpu_custom_call.1} parent=0
    #allocation2 [shape = 'u8[131072]{0}', space=vmem, size = 0x20000, scoped, tag = 'input window, operand 0']
    #allocation3 [shape = 's32[2]{0}', space=sflag, size = 0x8, scoped, tag = 'scoped memory for tpu_custom_call.1']
    #allocation4 [shape = 's32[2]{0}', space=sflag, size = 0x8, scoped, tag = 'scoped memory for tpu_custom_call.1']
    #allocation5 [shape = 'u8[65536]{0}', space=vmem, size = 0x10000, scoped, tag = 'input window, operand 1, single buffered']
    #allocation6 [shape = 's32[1]{0}', space=sflag, size = 0x4, scoped, tag = 'scoped memory for tpu_custom_call.1']
    #allocation7 [shape = 'u8[65536]{0}', space=vmem, size = 0x10000, scoped, tag = 'input window, operand 3, single buffered']
    #allocation8 [shape = 'u8[65536]{0}', space=vmem, size = 0x10000, scoped, tag = 'input window, operand 5, single buffered']
    #allocation9 [shape = 's32[1]{0}', space=sflag, size = 0x4, scoped, tag = 'scoped memory for tpu_custom_call.1']
    #allocation10 [shape = 'u8[65536]{0}', space=vmem, size = 0x10000, scoped, tag = 'input window, operand 7, single buffered']
    #allocation11 [shape = 'u8[65536]{0}', space=vmem, size = 0x10000, scoped, tag = 'input window, operand 9, single buffered']
    #allocation12 [shape = 's32[1]{0}', space=sflag, size = 0x4, scoped, tag = 'scoped memory for tpu_custom_call.1']
    #allocation13 [shape = 'u8[65536]{0}', space=vmem, size = 0x10000, scoped, tag = 'input window, operand 11, single buffered']
    #allocation14 [shape = 'u8[131072]{0}', space=vmem, size = 0x20000, scoped, tag = 'output window, operand 0']
    %18 = vsyncpa [#allocation3], 0
    %s19 = scalar_lea.sflag [#allocation3], 1
    %20 = vsyncpa %s19, 0
    %21 = vsyncpa [#allocation6], 0
    %22 = vsyncpa [#allocation9], 0
    %23 = vsyncpa [#allocation12], 0
    %24 = vsyncpa [#allocation4], 0
    %s25 = scalar_lea.sflag [#allocation4], 1
    %26 = vsyncpa %s25, 0
    loop: start=0, step=1, limit=4
    $region2: #{tpu_custom_call.1} parent=1 // loop_pre_header
      _
    $region3: #{tpu_custom_call.1} parent=1 // loop_header
      %s28 = sphi 0, %s32
      %p29 = scmp.ge.s32.totalorder %s28, 4
      %s38 = sphi 0, %s40
      %s41 = sphi 0, %s38
      %s42 = sphi 0, %s41
      %s58 = sphi 0, %s42
      %s62 = sphi 0, %s62
      %s64 = sphi 0, %s62
      %s65 = sphi 0, %s64
      %s79 = sphi 0, %s65
      %s83 = sphi 0, %s83
      %s85 = sphi 0, %s83
      %s86 = sphi 0, %s85
      %s100 = sphi 0, %s86
      %s104 = sphi 0, %s104
      %s106 = sphi 0, %s104
      %s107 = sphi 0, %s106
      %s121 = sphi 0, %s107
      %s125 = sphi 0, %s125
      %s127 = sphi 0, %s125
      %s128 = sphi 0, %s127
      %s142 = sphi 0, %s128
      %s146 = sphi 0, %s146
      %s148 = sphi 0, %s146
      %s149 = sphi 0, %s148
      %s163 = sphi 0, %s149
      %s167 = sphi 0, %s167
      %s169 = sphi 0, %s167
      %s170 = sphi 0, %s169
      %s184 = sphi 0, %s170
      %s188 = sphi 0, %s188
      %s190 = sphi 0, %s188
      %s191 = sphi 0, %s190
      %s205 = sphi 0, %s191
      %s209 = sphi 0, %s209
      %s211 = sphi 0, %s209
      %s212 = sphi 0, %s211
      %s226 = sphi 0, %s212
      %s230 = sphi 0, %s230
      %s232 = sphi 0, %s230
      %s233 = sphi 0, %s232
      %s247 = sphi 0, %s233
      %s251 = sphi 0, %s251
      %s253 = sphi 0, %s251
      %s254 = sphi 0, %s253
      %s268 = sphi 0, %s254
      %s272 = sphi 0, %s272
      %s274 = sphi 0, %s272
      %s275 = sphi 0, %s274
      %s289 = sphi 0, %s275
      %s293 = sphi 0, %s293
      %s295 = sphi 0, %s293
      %s296 = sphi 0, %s295
      %s310 = sphi 0, %s296
      %s316 = sphi 0, %s318
      %s319 = sphi 0, %s316
      %s320 = sphi 0, %s319
      %s336 = sphi 0, %s320
    $region4: #{tpu_custom_call.1} parent=1 // loop_header_branch
      %31 = sbr.rel (%p29) target = $region8
    $region5: #{tpu_custom_call.1} parent=1 // loop_body
      %s33 = ssub.s32 %s28, 1
      %s34 = ssub.s32 %s28, 2
      %s35 = sadd.s32 %s28, 1
      %s36 = ssub.s32 %s28, %s35
      %p37 = scmp.eq.s32.totalorder %s36, 0
      %s39 = sadd.s32 %s38, 1
      %s40 = scalar_select %p37, %s38, %s39
      %p43 = pneg %p37
      %p44 = scmp.eq.s32.totalorder %s28, 1
      %p45 = por %p43, %p44
      %p46 = scmp.ne.s32.totalorder %s38, %s41
      %p47 = scmp.eq.s32.totalorder %s28, 0
      %p48 = por %p46, %p47
      %p49 = scmp.ne.s32.totalorder %s38, %s41
      %p50 = scmp.eq.s32.totalorder %s33, 1
      %p51 = por %p49, %p50
      %p52 = scmp.ne.s32.totalorder %s41, %s42
      %p53 = scmp.eq.s32.totalorder %s33, 0
      %p54 = por %p52, %p53
      %p55 = scmp.ne.s32.totalorder %s41, %s42
      %p56 = scmp.eq.s32.totalorder %s34, 1
      %p57 = por %p55, %p56
      %p59 = scmp.ne.s32.totalorder %s42, %s58
      %p60 = scmp.eq.s32.totalorder %s34, 0
      %p61 = por %p59, %p60
      %s63 = sadd.s32 %s62, 1
      %p66 = scmp.eq.s32.totalorder %s28, 1
      %p67 = scmp.ne.s32.totalorder %s62, %s64
      %p68 = scmp.eq.s32.totalorder %s28, 0
      %p69 = por %p67, %p68
      %p70 = scmp.ne.s32.totalorder %s62, %s64
      %p71 = scmp.eq.s32.totalorder %s33, 1
      %p72 = por %p70, %p71
      %p73 = scmp.ne.s32.totalorder %s64, %s65
      %p74 = scmp.eq.s32.totalorder %s33, 0
      %p75 = por %p73, %p74
      %p76 = scmp.ne.s32.totalorder %s64, %s65
      %p77 = scmp.eq.s32.totalorder %s34, 1
      %p78 = por %p76, %p77
      %p80 = scmp.ne.s32.totalorder %s65, %s79
      %p81 = scmp.eq.s32.totalorder %s34, 0
      %p82 = por %p80, %p81
      %s84 = sadd.s32 %s83, 1
      %p87 = scmp.eq.s32.totalorder %s28, 1
      %p88 = scmp.ne.s32.totalorder %s83, %s85
      %p89 = scmp.eq.s32.totalorder %s28, 0
      %p90 = por %p88, %p89
      %p91 = scmp.ne.s32.totalorder %s83, %s85
      %p92 = scmp.eq.s32.totalorder %s33, 1
      %p93 = por %p91, %p92
      %p94 = scmp.ne.s32.totalorder %s85, %s86
      %p95 = scmp.eq.s32.totalorder %s33, 0
      %p96 = por %p94, %p95
      %p97 = scmp.ne.s32.totalorder %s85, %s86
      %p98 = scmp.eq.s32.totalorder %s34, 1
      %p99 = por %p97, %p98
      %p101 = scmp.ne.s32.totalorder %s86, %s100
      %p102 = scmp.eq.s32.totalorder %s34, 0
      %p103 = por %p101, %p102
      %s105 = sadd.s32 %s104, 1
      %p108 = scmp.eq.s32.totalorder %s28, 1
      %p109 = scmp.ne.s32.totalorder %s104, %s106
      %p110 = scmp.eq.s32.totalorder %s28, 0
      %p111 = por %p109, %p110
      %p112 = scmp.ne.s32.totalorder %s104, %s106
      %p113 = scmp.eq.s32.totalorder %s33, 1
      %p114 = por %p112, %p113
      %p115 = scmp.ne.s32.totalorder %s106, %s107
      %p116 = scmp.eq.s32.totalorder %s33, 0
      %p117 = por %p115, %p116
      %p118 = scmp.ne.s32.totalorder %s106, %s107
      %p119 = scmp.eq.s32.totalorder %s34, 1
      %p120 = por %p118, %p119
      %p122 = scmp.ne.s32.totalorder %s107, %s121
      %p123 = scmp.eq.s32.totalorder %s34, 0
      %p124 = por %p122, %p123
      %s126 = sadd.s32 %s125, 1
      %p129 = scmp.eq.s32.totalorder %s28, 1
      %p130 = scmp.ne.s32.totalorder %s125, %s127
      %p131 = scmp.eq.s32.totalorder %s28, 0
      %p132 = por %p130, %p131
      %p133 = scmp.ne.s32.totalorder %s125, %s127
      %p134 = scmp.eq.s32.totalorder %s33, 1
      %p135 = por %p133, %p134
      %p136 = scmp.ne.s32.totalorder %s127, %s128
      %p137 = scmp.eq.s32.totalorder %s33, 0
      %p138 = por %p136, %p137
      %p139 = scmp.ne.s32.totalorder %s127, %s128
      %p140 = scmp.eq.s32.totalorder %s34, 1
      %p141 = por %p139, %p140
      %p143 = scmp.ne.s32.totalorder %s128, %s142
      %p144 = scmp.eq.s32.totalorder %s34, 0
      %p145 = por %p143, %p144
      %s147 = sadd.s32 %s146, 1
      %p150 = scmp.eq.s32.totalorder %s28, 1
      %p151 = scmp.ne.s32.totalorder %s146, %s148
      %p152 = scmp.eq.s32.totalorder %s28, 0
      %p153 = por %p151, %p152
      %p154 = scmp.ne.s32.totalorder %s146, %s148
      %p155 = scmp.eq.s32.totalorder %s33, 1
      %p156 = por %p154, %p155
      %p157 = scmp.ne.s32.totalorder %s148, %s149
      %p158 = scmp.eq.s32.totalorder %s33, 0
      %p159 = por %p157, %p158
      %p160 = scmp.ne.s32.totalorder %s148, %s149
      %p161 = scmp.eq.s32.totalorder %s34, 1
      %p162 = por %p160, %p161
      %p164 = scmp.ne.s32.totalorder %s149, %s163
      %p165 = scmp.eq.s32.totalorder %s34, 0
      %p166 = por %p164, %p165
      %s168 = sadd.s32 %s167, 1
      %p171 = scmp.eq.s32.totalorder %s28, 1
      %p172 = scmp.ne.s32.totalorder %s167, %s169
      %p173 = scmp.eq.s32.totalorder %s28, 0
      %p174 = por %p172, %p173
      %p175 = scmp.ne.s32.totalorder %s167, %s169
      %p176 = scmp.eq.s32.totalorder %s33, 1
      %p177 = por %p175, %p176
      %p178 = scmp.ne.s32.totalorder %s169, %s170
      %p179 = scmp.eq.s32.totalorder %s33, 0
      %p180 = por %p178, %p179
      %p181 = scmp.ne.s32.totalorder %s169, %s170
      %p182 = scmp.eq.s32.totalorder %s34, 1
      %p183 = por %p181, %p182
      %p185 = scmp.ne.s32.totalorder %s170, %s184
      %p186 = scmp.eq.s32.totalorder %s34, 0
      %p187 = por %p185, %p186
      %s189 = sadd.s32 %s188, 1
      %p192 = scmp.eq.s32.totalorder %s28, 1
      %p193 = scmp.ne.s32.totalorder %s188, %s190
      %p194 = scmp.eq.s32.totalorder %s28, 0
      %p195 = por %p193, %p194
      %p196 = scmp.ne.s32.totalorder %s188, %s190
      %p197 = scmp.eq.s32.totalorder %s33, 1
      %p198 = por %p196, %p197
      %p199 = scmp.ne.s32.totalorder %s190, %s191
      %p200 = scmp.eq.s32.totalorder %s33, 0
      %p201 = por %p199, %p200
      %p202 = scmp.ne.s32.totalorder %s190, %s191
      %p203 = scmp.eq.s32.totalorder %s34, 1
      %p204 = por %p202, %p203
      %p206 = scmp.ne.s32.totalorder %s191, %s205
      %p207 = scmp.eq.s32.totalorder %s34, 0
      %p208 = por %p206, %p207
      %s210 = sadd.s32 %s209, 1
      %p213 = scmp.eq.s32.totalorder %s28, 1
      %p214 = scmp.ne.s32.totalorder %s209, %s211
      %p215 = scmp.eq.s32.totalorder %s28, 0
      %p216 = por %p214, %p215
      %p217 = scmp.ne.s32.totalorder %s209, %s211
      %p218 = scmp.eq.s32.totalorder %s33, 1
      %p219 = por %p217, %p218
      %p220 = scmp.ne.s32.totalorder %s211, %s212
      %p221 = scmp.eq.s32.totalorder %s33, 0
      %p222 = por %p220, %p221
      %p223 = scmp.ne.s32.totalorder %s211, %s212
      %p224 = scmp.eq.s32.totalorder %s34, 1
      %p225 = por %p223, %p224
      %p227 = scmp.ne.s32.totalorder %s212, %s226
      %p228 = scmp.eq.s32.totalorder %s34, 0
      %p229 = por %p227, %p228
      %s231 = sadd.s32 %s230, 1
      %p234 = scmp.eq.s32.totalorder %s28, 1
      %p235 = scmp.ne.s32.totalorder %s230, %s232
      %p236 = scmp.eq.s32.totalorder %s28, 0
      %p237 = por %p235, %p236
      %p238 = scmp.ne.s32.totalorder %s230, %s232
      %p239 = scmp.eq.s32.totalorder %s33, 1
      %p240 = por %p238, %p239
      %p241 = scmp.ne.s32.totalorder %s232, %s233
      %p242 = scmp.eq.s32.totalorder %s33, 0
      %p243 = por %p241, %p242
      %p244 = scmp.ne.s32.totalorder %s232, %s233
      %p245 = scmp.eq.s32.totalorder %s34, 1
      %p246 = por %p244, %p245
      %p248 = scmp.ne.s32.totalorder %s233, %s247
      %p249 = scmp.eq.s32.totalorder %s34, 0
      %p250 = por %p248, %p249
      %s252 = sadd.s32 %s251, 1
      %p255 = scmp.eq.s32.totalorder %s28, 1
      %p256 = scmp.ne.s32.totalorder %s251, %s253
      %p257 = scmp.eq.s32.totalorder %s28, 0
      %p258 = por %p256, %p257
      %p259 = scmp.ne.s32.totalorder %s251, %s253
      %p260 = scmp.eq.s32.totalorder %s33, 1
      %p261 = por %p259, %p260
      %p262 = scmp.ne.s32.totalorder %s253, %s254
      %p263 = scmp.eq.s32.totalorder %s33, 0
      %p264 = por %p262, %p263
      %p265 = scmp.ne.s32.totalorder %s253, %s254
      %p266 = scmp.eq.s32.totalorder %s34, 1
      %p267 = por %p265, %p266
      %p269 = scmp.ne.s32.totalorder %s254, %s268
      %p270 = scmp.eq.s32.totalorder %s34, 0
      %p271 = por %p269, %p270
      %s273 = sadd.s32 %s272, 1
      %p276 = scmp.eq.s32.totalorder %s28, 1
      %p277 = scmp.ne.s32.totalorder %s272, %s274
      %p278 = scmp.eq.s32.totalorder %s28, 0
      %p279 = por %p277, %p278
      %p280 = scmp.ne.s32.totalorder %s272, %s274
      %p281 = scmp.eq.s32.totalorder %s33, 1
      %p282 = por %p280, %p281
      %p283 = scmp.ne.s32.totalorder %s274, %s275
      %p284 = scmp.eq.s32.totalorder %s33, 0
      %p285 = por %p283, %p284
      %p286 = scmp.ne.s32.totalorder %s274, %s275
      %p287 = scmp.eq.s32.totalorder %s34, 1
      %p288 = por %p286, %p287
      %p290 = scmp.ne.s32.totalorder %s275, %s289
      %p291 = scmp.eq.s32.totalorder %s34, 0
      %p292 = por %p290, %p291
      %s294 = sadd.s32 %s293, 1
      %p297 = scmp.eq.s32.totalorder %s28, 1
      %p298 = scmp.ne.s32.totalorder %s293, %s295
      %p299 = scmp.eq.s32.totalorder %s28, 0
      %p300 = por %p298, %p299
      %p301 = scmp.ne.s32.totalorder %s293, %s295
      %p302 = scmp.eq.s32.totalorder %s33, 1
      %p303 = por %p301, %p302
      %p304 = scmp.ne.s32.totalorder %s295, %s296
      %p305 = scmp.eq.s32.totalorder %s33, 0
      %p306 = por %p304, %p305
      %p307 = scmp.ne.s32.totalorder %s295, %s296
      %p308 = scmp.eq.s32.totalorder %s34, 1
      %p309 = por %p307, %p308
      %p311 = scmp.ne.s32.totalorder %s296, %s310
      %p312 = scmp.eq.s32.totalorder %s34, 0
      %p313 = por %p311, %p312
      %s314 = ssub.s32 %s28, %s35
      %p315 = scmp.eq.s32.totalorder %s314, 0
      %s317 = sadd.s32 %s316, 1
      %s318 = scalar_select %p315, %s316, %s317
      %p321 = pneg %p315
      %p322 = scmp.eq.s32.totalorder %s28, 1
      %p323 = por %p321, %p322
      %p324 = scmp.ne.s32.totalorder %s316, %s319
      %p325 = scmp.eq.s32.totalorder %s28, 0
      %p326 = por %p324, %p325
      %p327 = scmp.ne.s32.totalorder %s316, %s319
      %p328 = scmp.eq.s32.totalorder %s33, 1
      %p329 = por %p327, %p328
      %p330 = scmp.ne.s32.totalorder %s319, %s320
      %p331 = scmp.eq.s32.totalorder %s33, 0
      %p332 = por %p330, %p331
      %p333 = scmp.ne.s32.totalorder %s319, %s320
      %p334 = scmp.eq.s32.totalorder %s34, 1
      %p335 = por %p333, %p334
      %p337 = scmp.ne.s32.totalorder %s320, %s336
      %p338 = scmp.eq.s32.totalorder %s34, 0
      %p339 = por %p337, %p338
      %p340 = scmp.le.s32.totalorder 1, %s28
      %p341 = scmp.lt.s32.totalorder %s28, 3
      %p342 = pnand %p340, %p341
      %p343 = pneg %p342
      // Predicated region
      $region9: #{tpu_custom_call.1} parent=5 // pred_check
        _
      $region10: #{tpu_custom_call.1} parent=5 // pred_check_branch
        %345 = sbr.rel (%p342) target = $region12
      $region11: #{tpu_custom_call.1} parent=5 // pred_region
        %s346 = ssub.s32 %s28, 1
        // Predicated region
        $region13: #{tpu_custom_call.1} parent=11 // pred_check
          %p347 = pneg %p75
        $region14: #{tpu_custom_call.1} parent=11 // pred_check_branch
          %349 = sbr.rel (%p347) target = $region16
        $region15: #{tpu_custom_call.1} parent=11 // pred_region
          %s351 = ssub.s32 2048, 2048
          %352 = vsyncadd [#allocation6], %s351
          %s353 = sshll.u32 [#allocation5], 4
          %s354 = int_to_ptr.vmem [resolvable:$true] %s353
          %359 = dma.hbm_to_vmem [thread:$0]  %s1, 2048, %s354, [#allocation6], 128, 128, 8
        $region16: #{tpu_custom_call.1} parent=11 // pred_fallthru
          _
        // Predicated region
        $region17: #{tpu_custom_call.1} parent=11 // pred_check
          %p360 = pneg %p96
        $region18: #{tpu_custom_call.1} parent=11 // pred_check_branch
          %362 = sbr.rel (%p360) target = $region20
        $region19: #{tpu_custom_call.1} parent=11 // pred_region
          _
        $region20: #{tpu_custom_call.1} parent=11 // pred_fallthru
          _
        // Predicated region
        $region21: #{tpu_custom_call.1} parent=11 // pred_check
          %p363 = pneg %p117
        $region22: #{tpu_custom_call.1} parent=11 // pred_check_branch
          %365 = sbr.rel (%p363) target = $region24
        $region23: #{tpu_custom_call.1} parent=11 // pred_region
          %s367 = ssub.s32 2048, 2048
          %368 = vsyncadd [#allocation6], %s367
          %s369 = sshll.u32 [#allocation7], 4
          %s370 = int_to_ptr.vmem [resolvable:$true] %s369
          %375 = dma.hbm_to_vmem [thread:$0]  %s3, 2048, %s370, [#allocation6], 128, 128, 8
        $region24: #{tpu_custom_call.1} parent=11 // pred_fallthru
          _
        // Predicated region
        $region25: #{tpu_custom_call.1} parent=11 // pred_check
          %p376 = pneg %p138
        $region26: #{tpu_custom_call.1} parent=11 // pred_check_branch
          %378 = sbr.rel (%p376) target = $region28
        $region27: #{tpu_custom_call.1} parent=11 // pred_region
          _
        $region28: #{tpu_custom_call.1} parent=11 // pred_fallthru
          _
        // Predicated region
        $region29: #{tpu_custom_call.1} parent=11 // pred_check
          %p379 = pneg %p159
        $region30: #{tpu_custom_call.1} parent=11 // pred_check_branch
          %381 = sbr.rel (%p379) target = $region32
        $region31: #{tpu_custom_call.1} parent=11 // pred_region
          %s383 = ssub.s32 2048, 2048
          %384 = vsyncadd [#allocation9], %s383
          %s385 = sshll.u32 [#allocation8], 4
          %s386 = int_to_ptr.vmem [resolvable:$true] %s385
          %391 = dma.hbm_to_vmem [thread:$0]  %s5, 2048, %s386, [#allocation9], 128, 128, 8
        $region32: #{tpu_custom_call.1} parent=11 // pred_fallthru
          _
        // Predicated region
        $region33: #{tpu_custom_call.1} parent=11 // pred_check
          %p392 = pneg %p180
        $region34: #{tpu_custom_call.1} parent=11 // pred_check_branch
          %394 = sbr.rel (%p392) target = $region36
        $region35: #{tpu_custom_call.1} parent=11 // pred_region
          _
        $region36: #{tpu_custom_call.1} parent=11 // pred_fallthru
          _
        // Predicated region
        $region37: #{tpu_custom_call.1} parent=11 // pred_check
          %p395 = pneg %p201
        $region38: #{tpu_custom_call.1} parent=11 // pred_check_branch
          %397 = sbr.rel (%p395) target = $region40
        $region39: #{tpu_custom_call.1} parent=11 // pred_region
          %s399 = ssub.s32 2048, 2048
          %400 = vsyncadd [#allocation9], %s399
          %s401 = sshll.u32 [#allocation10], 4
          %s402 = int_to_ptr.vmem [resolvable:$true] %s401
          %407 = dma.hbm_to_vmem [thread:$0]  %s7, 2048, %s402, [#allocation9], 128, 128, 8
        $region40: #{tpu_custom_call.1} parent=11 // pred_fallthru
          _
        // Predicated region
        $region41: #{tpu_custom_call.1} parent=11 // pred_check
          %p408 = pneg %p222
        $region42: #{tpu_custom_call.1} parent=11 // pred_check_branch
          %410 = sbr.rel (%p408) target = $region44
        $region43: #{tpu_custom_call.1} parent=11 // pred_region
          _
        $region44: #{tpu_custom_call.1} parent=11 // pred_fallthru
          _
        // Predicated region
        $region45: #{tpu_custom_call.1} parent=11 // pred_check
          %p411 = pneg %p243
        $region46: #{tpu_custom_call.1} parent=11 // pred_check_branch
          %413 = sbr.rel (%p411) target = $region48
        $region47: #{tpu_custom_call.1} parent=11 // pred_region
          %s415 = ssub.s32 2048, 2048
          %416 = vsyncadd [#allocation12], %s415
          %s417 = sshll.u32 [#allocation11], 4
          %s418 = int_to_ptr.vmem [resolvable:$true] %s417
          %423 = dma.hbm_to_vmem [thread:$0]  %s9, 2048, %s418, [#allocation12], 128, 128, 8
        $region48: #{tpu_custom_call.1} parent=11 // pred_fallthru
          _
        // Predicated region
        $region49: #{tpu_custom_call.1} parent=11 // pred_check
          %p424 = pneg %p264
        $region50: #{tpu_custom_call.1} parent=11 // pred_check_branch
          %426 = sbr.rel (%p424) target = $region52
        $region51: #{tpu_custom_call.1} parent=11 // pred_region
          _
        $region52: #{tpu_custom_call.1} parent=11 // pred_fallthru
          _
        // Predicated region
        $region53: #{tpu_custom_call.1} parent=11 // pred_check
          %p427 = pneg %p285
        $region54: #{tpu_custom_call.1} parent=11 // pred_check_branch
          %429 = sbr.rel (%p427) target = $region56
        $region55: #{tpu_custom_call.1} parent=11 // pred_region
          %s431 = ssub.s32 2048, 2048
          %432 = vsyncadd [#allocation12], %s431
          %s433 = sshll.u32 [#allocation13], 4
          %s434 = int_to_ptr.vmem [resolvable:$true] %s433
          %439 = dma.hbm_to_vmem [thread:$0]  %s11, 2048, %s434, [#allocation12], 128, 128, 8
        $region56: #{tpu_custom_call.1} parent=11 // pred_fallthru
          _
        // Predicated region
        $region57: #{tpu_custom_call.1} parent=11 // pred_check
          %p440 = pneg %p306
        $region58: #{tpu_custom_call.1} parent=11 // pred_check_branch
          %442 = sbr.rel (%p440) target = $region60
        $region59: #{tpu_custom_call.1} parent=11 // pred_region
          _
        $region60: #{tpu_custom_call.1} parent=11 // pred_fallthru
          _
      $region12: #{tpu_custom_call.1} parent=5 // pred_fallthru
        _
      %p443 = scmp.lt.s32.totalorder %s28, 2
      // Predicated region
      $region61: #{tpu_custom_call.1} parent=5 // pred_check
        %p444 = pneg %p443
      $region62: #{tpu_custom_call.1} parent=5 // pred_check_branch
        %446 = sbr.rel (%p444) target = $region64
      $region63: #{tpu_custom_call.1} parent=5 // pred_region
        // Predicated region
        $region65: #{tpu_custom_call.1} parent=63 // pred_check
          %p447 = pneg %p48
        $region66: #{tpu_custom_call.1} parent=63 // pred_check_branch
          %449 = sbr.rel (%p447) target = $region68
        $region67: #{tpu_custom_call.1} parent=63 // pred_region
          %s450 = sand.u32 %s38, 1
          %s451 = scalar_lea.sflag [#allocation3], %s450
          %s452 = sand.u32 %s38, 1
          %s453 = smul.addr %s452, 128
          %s454 = scalar_lea.vmem [#allocation2], %s453
          %s455 = smul.u32 16, %s28
          %s457 = ssub.s32 2048, 2048
          %458 = vsyncadd %s451, %s457
          %s459 = smul.addr %s455, 128
          %s460 = scalar_lea.hbm %s0, %s459
          %s461 = sshll.u32 %s454, 4
          %s462 = int_to_ptr.vmem [resolvable:$true] %s461
          %467 = dma.hbm_to_vmem [thread:$0]  %s460, 2048, %s462, %s451, 128, 128, 8
        $region68: #{tpu_custom_call.1} parent=63 // pred_fallthru
          _
      $region64: #{tpu_custom_call.1} parent=5 // pred_fallthru
        _
      %p468 = scmp.le.s32.totalorder 1, %s28
      %p469 = scmp.lt.s32.totalorder %s28, 3
      %p470 = pnand %p468, %p469
      %p471 = pneg %p470
      // Predicated region
      $region69: #{tpu_custom_call.1} parent=5 // pred_check
        _
      $region70: #{tpu_custom_call.1} parent=5 // pred_check_branch
        %473 = sbr.rel (%p470) target = $region72
      $region71: #{tpu_custom_call.1} parent=5 // pred_region
        %s474 = ssub.s32 %s28, 1
        %s475 = sand.u32 %s41, 1
        %s476 = scalar_lea.sflag [#allocation3], %s475
        %s477 = sand.u32 %s41, 1
        %s478 = smul.addr %s477, 128
        %s479 = scalar_lea.vmem [#allocation2], %s478
        // Predicated region
        $region73: #{tpu_custom_call.1} parent=71 // pred_check
          %p480 = pneg %p54
        $region74: #{tpu_custom_call.1} parent=71 // pred_check_branch
          %482 = sbr.rel (%p480) target = $region76
        $region75: #{tpu_custom_call.1} parent=71 // pred_region
          %483 = dma.done %s476, 2048
        $region76: #{tpu_custom_call.1} parent=71 // pred_fallthru
          _
        // Predicated region
        $region77: #{tpu_custom_call.1} parent=71 // pred_check
          %p484 = pneg %p75
        $region78: #{tpu_custom_call.1} parent=71 // pred_check_branch
          %486 = sbr.rel (%p484) target = $region80
        $region79: #{tpu_custom_call.1} parent=71 // pred_region
          %487 = dma.done [#allocation6], 2048
        $region80: #{tpu_custom_call.1} parent=71 // pred_fallthru
          _
        // Predicated region
        $region81: #{tpu_custom_call.1} parent=71 // pred_check
          %p488 = pneg %p117
        $region82: #{tpu_custom_call.1} parent=71 // pred_check_branch
          %490 = sbr.rel (%p488) target = $region84
        $region83: #{tpu_custom_call.1} parent=71 // pred_region
          %491 = dma.done [#allocation6], 2048
        $region84: #{tpu_custom_call.1} parent=71 // pred_fallthru
          _
        // Predicated region
        $region85: #{tpu_custom_call.1} parent=71 // pred_check
          %p492 = pneg %p159
        $region86: #{tpu_custom_call.1} parent=71 // pred_check_branch
          %494 = sbr.rel (%p492) target = $region88
        $region87: #{tpu_custom_call.1} parent=71 // pred_region
          %495 = dma.done [#allocation9], 2048
        $region88: #{tpu_custom_call.1} parent=71 // pred_fallthru
          _
        // Predicated region
        $region89: #{tpu_custom_call.1} parent=71 // pred_check
          %p496 = pneg %p201
        $region90: #{tpu_custom_call.1} parent=71 // pred_check_branch
          %498 = sbr.rel (%p496) target = $region92
        $region91: #{tpu_custom_call.1} parent=71 // pred_region
          %499 = dma.done [#allocation9], 2048
        $region92: #{tpu_custom_call.1} parent=71 // pred_fallthru
          _
        // Predicated region
        $region93: #{tpu_custom_call.1} parent=71 // pred_check
          %p500 = pneg %p243
        $region94: #{tpu_custom_call.1} parent=71 // pred_check_branch
          %502 = sbr.rel (%p500) target = $region96
        $region95: #{tpu_custom_call.1} parent=71 // pred_region
          %503 = dma.done [#allocation12], 2048
        $region96: #{tpu_custom_call.1} parent=71 // pred_fallthru
          _
        // Predicated region
        $region97: #{tpu_custom_call.1} parent=71 // pred_check
          %p504 = pneg %p285
        $region98: #{tpu_custom_call.1} parent=71 // pred_check_branch
          %506 = sbr.rel (%p504) target = $region100
        $region99: #{tpu_custom_call.1} parent=71 // pred_region
          %507 = dma.done [#allocation12], 2048
        $region100: #{tpu_custom_call.1} parent=71 // pred_fallthru
          _
        %s508 = sand.u32 %s41, 1
        %s509 = scalar_lea.sflag [#allocation3], %s508
        %s510 = sand.u32 %s41, 1
        %s511 = smul.addr %s510, 128
        %s512 = scalar_lea.vmem [#allocation2], %s511
        %p513 = pneg %p54
        %p514 = pneg %p51
        %p515 = pneg %p75
        %p516 = pneg %p72
        %p517 = pneg %p96
        %p518 = pneg %p93
        %p519 = pneg %p117
        %p520 = pneg %p114
        %p521 = pneg %p138
        %p522 = pneg %p135
        %p523 = pneg %p159
        %p524 = pneg %p156
        %p525 = pneg %p180
        %p526 = pneg %p177
        %p527 = pneg %p201
        %p528 = pneg %p198
        %p529 = pneg %p222
        %p530 = pneg %p219
        %p531 = pneg %p243
        %p532 = pneg %p240
        %p533 = pneg %p264
        %p534 = pneg %p261
        %p535 = pneg %p285
        %p536 = pneg %p282
        %p537 = pneg %p306
        %p538 = pneg %p303
        %p539 = pneg %p332
        %p540 = pneg %p329
        %s541 = sand.u32 %s319, 1
        %s542 = scalar_lea.sflag [#allocation4], %s541
        %s543 = sand.u32 %s319, 1
        %s544 = smul.addr %s543, 128
        %s545 = scalar_lea.vmem [#allocation14], %s544
        %s546 = smul.u32 16, %s33
        %s547 = smul.u32 16, %s33
        %v548 = vld [vmem:[%s479] sm:$0xff]
        %v549 = vld [vmem:[%s479 + $0x8] sm:$0xff]
        %v550 = vld [vmem:[%s479 + $0x10] sm:$0xff]
        %v551 = vld [vmem:[%s479 + $0x18] sm:$0xff]
        %v552 = vld [vmem:[%s479 + $0x20] sm:$0xff]
        %v553 = vld [vmem:[%s479 + $0x28] sm:$0xff]
        %v554 = vld [vmem:[%s479 + $0x30] sm:$0xff]
        %v555 = vld [vmem:[%s479 + $0x38] sm:$0xff]
        %v556 = vld [vmem:[%s479 + $0x40] sm:$0xff]
        %v557 = vld [vmem:[%s479 + $0x48] sm:$0xff]
        %v558 = vld [vmem:[%s479 + $0x50] sm:$0xff]
        %v559 = vld [vmem:[%s479 + $0x58] sm:$0xff]
        %v560 = vld [vmem:[%s479 + $0x60] sm:$0xff]
        %v561 = vld [vmem:[%s479 + $0x68] sm:$0xff]
        %v562 = vld [vmem:[%s479 + $0x70] sm:$0xff]
        %v563 = vld [vmem:[%s479 + $0x78] sm:$0xff]
        %v564 = vld [vmem:[#allocation5] sm:$0xff]
        %v565 = vld [vmem:[#allocation5 + $0x8] sm:$0xff]
        %v566 = vld [vmem:[#allocation5 + $0x10] sm:$0xff]
        %v567 = vld [vmem:[#allocation5 + $0x18] sm:$0xff]
        %v568 = vld [vmem:[#allocation5 + $0x20] sm:$0xff]
        %v569 = vld [vmem:[#allocation5 + $0x28] sm:$0xff]
        %v570 = vld [vmem:[#allocation5 + $0x30] sm:$0xff]
        %v571 = vld [vmem:[#allocation5 + $0x38] sm:$0xff]
        %v572 = vld [vmem:[#allocation5 + $0x40] sm:$0xff]
        %v573 = vld [vmem:[#allocation5 + $0x48] sm:$0xff]
        %v574 = vld [vmem:[#allocation5 + $0x50] sm:$0xff]
        %v575 = vld [vmem:[#allocation5 + $0x58] sm:$0xff]
        %v576 = vld [vmem:[#allocation5 + $0x60] sm:$0xff]
        %v577 = vld [vmem:[#allocation5 + $0x68] sm:$0xff]
        %v578 = vld [vmem:[#allocation5 + $0x70] sm:$0xff]
        %v579 = vld [vmem:[#allocation5 + $0x78] sm:$0xff]
        %v580 = vld [vmem:[%s2] sm:$0x1]
        %v582 = vlaneseq
        %v583 = vshrl.u32 %v582, 7
        %v584 = vsub.s32 0, %v583
        %v585 = vrot.slane %v580, %v584
        %587 = vmatprep.subr.mxu0 0.0
        %588 = vmatpush1.msra.mxu0 %v579
        %589 = vmatprep.subr.mxu0 0.0
        %590 = vmatpush1.msra.mxu0 %v578
        %591 = vmatprep.subr.mxu0 0.0
        %592 = vmatpush1.msra.mxu0 %v577
        %593 = vmatprep.subr.mxu0 0.0
        %594 = vmatpush1.msra.mxu0 %v576
        %595 = vmatprep.subr.mxu0 0.0
        %596 = vmatpush1.msra.mxu0 %v575
        %597 = vmatprep.subr.mxu0 0.0
        %598 = vmatpush1.msra.mxu0 %v574
        %599 = vmatprep.subr.mxu0 0.0
        %600 = vmatpush1.msra.mxu0 %v573
        %601 = vmatprep.subr.mxu0 0.0
        %602 = vmatpush1.msra.mxu0 %v572
        %603 = vmatprep.subr.mxu0 0.0
        %604 = vmatpush1.msra.mxu0 %v571
        %605 = vmatprep.subr.mxu0 0.0
        %606 = vmatpush1.msra.mxu0 %v570
        %607 = vmatprep.subr.mxu0 0.0
        %608 = vmatpush1.msra.mxu0 %v569
        %609 = vmatprep.subr.mxu0 0.0
        %610 = vmatpush1.msra.mxu0 %v568
        %611 = vmatprep.subr.mxu0 0.0
        %612 = vmatpush1.msra.mxu0 %v567
        %613 = vmatprep.subr.mxu0 0.0
        %614 = vmatpush1.msra.mxu0 %v566
        %615 = vmatprep.subr.mxu0 0.0
        %616 = vmatpush1.msra.mxu0 %v565
        %617 = vmatprep.subr.mxu0 0.0
        %618 = vmatpush1.msra.mxu0 %v564
        %619 = vmatprep.subr.mxu0 0.0
        %620 = vmatpush2.msra.mxu0 0.0
        %621 = vmatprep.subr.mxu0 0.0
        %622 = vmatpush2.msra.mxu0 0.0
        %623 = vmatprep.subr.mxu0 0.0
        %624 = vmatpush2.msra.mxu0 0.0
        %625 = vmatprep.subr.mxu0 0.0
        %626 = vmatpush2.msra.mxu0 0.0
        %627 = vmatprep.subr.mxu0 0.0
        %628 = vmatpush2.msra.mxu0 0.0
        %629 = vmatprep.subr.mxu0 0.0
        %630 = vmatpush2.msra.mxu0 0.0
        %631 = vmatprep.subr.mxu0 0.0
        %632 = vmatpush2.msra.mxu0 0.0
        %633 = vmatprep.subr.mxu0 0.0
        %634 = vmatpush2.msra.mxu0 0.0
        %635 = vmatprep.subr.mxu0 0.0
        %636 = vmatpush2.msra.mxu0 0.0
        %637 = vmatprep.subr.mxu0 0.0
        %638 = vmatpush2.msra.mxu0 0.0
        %639 = vmatprep.subr.mxu0 0.0
        %640 = vmatpush2.msra.mxu0 0.0
        %641 = vmatprep.subr.mxu0 0.0
        %642 = vmatpush2.msra.mxu0 0.0
        %643 = vmatprep.subr.mxu0 0.0
        %644 = vmatpush2.msra.mxu0 0.0
        %645 = vmatprep.subr.mxu0 0.0
        %646 = vmatpush2.msra.mxu0 0.0
        %647 = vmatprep.subr.mxu0 0.0
        %648 = vmatpush2.msra.mxu0 0.0
        %649 = vmatprep.subr.mxu0 0.0
        %650 = vmatpush2.msra.mxu0 0.0
        %651 = vmatprep.mubr.f32.mxu0 0.0
        %652 = vmatmul.mubr.f32.gmra.mxu0 %v548
        %v653 = vpop.f32.mrf.mxu0
        %v654 = vadd.f32 %v585, %v653
        %v655 = vpop.f32.mrf.mxu0
        %656 = vmatprep.mubr.f32.mxu0 0.0
        %657 = vmatmul.mubr.f32.gmra.mxu0 %v549
        %v658 = vpop.f32.mrf.mxu0
        %v659 = vadd.f32 %v585, %v658
        %v660 = vpop.f32.mrf.mxu0
        %661 = vmatprep.mubr.f32.mxu0 0.0
        %662 = vmatmul.mubr.f32.gmra.mxu0 %v550
        %v663 = vpop.f32.mrf.mxu0
        %v664 = vadd.f32 %v585, %v663
        %v665 = vpop.f32.mrf.mxu0
        %666 = vmatprep.mubr.f32.mxu0 0.0
        %667 = vmatmul.mubr.f32.gmra.mxu0 %v551
        %v668 = vpop.f32.mrf.mxu0
        %v669 = vadd.f32 %v585, %v668
        %v670 = vpop.f32.mrf.mxu0
        %671 = vmatprep.mubr.f32.mxu0 0.0
        %672 = vmatmul.mubr.f32.gmra.mxu0 %v552
        %v673 = vpop.f32.mrf.mxu0
        %v674 = vadd.f32 %v585, %v673
        %v675 = vpop.f32.mrf.mxu0
        %676 = vmatprep.mubr.f32.mxu0 0.0
        %677 = vmatmul.mubr.f32.gmra.mxu0 %v553
        %v678 = vpop.f32.mrf.mxu0
        %v679 = vadd.f32 %v585, %v678
        %v680 = vpop.f32.mrf.mxu0
        %681 = vmatprep.mubr.f32.mxu0 0.0
        %682 = vmatmul.mubr.f32.gmra.mxu0 %v554
        %v683 = vpop.f32.mrf.mxu0
        %v684 = vadd.f32 %v585, %v683
        %v685 = vpop.f32.mrf.mxu0
        %686 = vmatprep.mubr.f32.mxu0 0.0
        %687 = vmatmul.mubr.f32.gmra.mxu0 %v555
        %v688 = vpop.f32.mrf.mxu0
        %v689 = vadd.f32 %v585, %v688
        %v690 = vpop.f32.mrf.mxu0
        %691 = vmatprep.mubr.f32.mxu0 0.0
        %692 = vmatmul.mubr.f32.gmra.mxu0 %v556
        %v693 = vpop.f32.mrf.mxu0
        %v694 = vadd.f32 %v585, %v693
        %v695 = vpop.f32.mrf.mxu0
        %696 = vmatprep.mubr.f32.mxu0 0.0
        %697 = vmatmul.mubr.f32.gmra.mxu0 %v557
        %v698 = vpop.f32.mrf.mxu0
        %v699 = vadd.f32 %v585, %v698
        %v700 = vpop.f32.mrf.mxu0
        %701 = vmatprep.mubr.f32.mxu0 0.0
        %702 = vmatmul.mubr.f32.gmra.mxu0 %v558
        %v703 = vpop.f32.mrf.mxu0
        %v704 = vadd.f32 %v585, %v703
        %v705 = vpop.f32.mrf.mxu0
        %706 = vmatprep.mubr.f32.mxu0 0.0
        %707 = vmatmul.mubr.f32.gmra.mxu0 %v559
        %v708 = vpop.f32.mrf.mxu0
        %v709 = vadd.f32 %v585, %v708
        %v710 = vpop.f32.mrf.mxu0
        %711 = vmatprep.mubr.f32.mxu0 0.0
        %712 = vmatmul.mubr.f32.gmra.mxu0 %v560
        %v713 = vpop.f32.mrf.mxu0
        %v714 = vadd.f32 %v585, %v713
        %v715 = vpop.f32.mrf.mxu0
        %716 = vmatprep.mubr.f32.mxu0 0.0
        %717 = vmatmul.mubr.f32.gmra.mxu0 %v561
        %v718 = vpop.f32.mrf.mxu0
        %v719 = vadd.f32 %v585, %v718
        %v720 = vpop.f32.mrf.mxu0
        %721 = vmatprep.mubr.f32.mxu0 0.0
        %722 = vmatmul.mubr.f32.gmra.mxu0 %v562
        %v723 = vpop.f32.mrf.mxu0
        %v724 = vadd.f32 %v585, %v723
        %v725 = vpop.f32.mrf.mxu0
        %726 = vmatprep.mubr.f32.mxu0 0.0
        %727 = vmatmul.mubr.f32.gmra.mxu0 %v563
        %v728 = vpop.f32.mrf.mxu0
        %v729 = vadd.f32 %v585, %v728
        %v730 = vpop.f32.mrf.mxu0
        %731 = vdwg.mxu0
        %v732 = vmax.f32 %v654, 0.0
        %v733 = vmax.f32 %v659, 0.0
        %v734 = vmax.f32 %v664, 0.0
        %v735 = vmax.f32 %v669, 0.0
        %v736 = vmax.f32 %v674, 0.0
        %v737 = vmax.f32 %v679, 0.0
        %v738 = vmax.f32 %v684, 0.0
        %v739 = vmax.f32 %v689, 0.0
        %v740 = vmax.f32 %v694, 0.0
        %v741 = vmax.f32 %v699, 0.0
        %v742 = vmax.f32 %v704, 0.0
        %v743 = vmax.f32 %v709, 0.0
        %v744 = vmax.f32 %v714, 0.0
        %v745 = vmax.f32 %v719, 0.0
        %v746 = vmax.f32 %v724, 0.0
        %v747 = vmax.f32 %v729, 0.0
        %v748 = vld [vmem:[#allocation7] sm:$0xff]
        %v749 = vld [vmem:[#allocation7 + $0x8] sm:$0xff]
        %v750 = vld [vmem:[#allocation7 + $0x10] sm:$0xff]
        %v751 = vld [vmem:[#allocation7 + $0x18] sm:$0xff]
        %v752 = vld [vmem:[#allocation7 + $0x20] sm:$0xff]
        %v753 = vld [vmem:[#allocation7 + $0x28] sm:$0xff]
        %v754 = vld [vmem:[#allocation7 + $0x30] sm:$0xff]
        %v755 = vld [vmem:[#allocation7 + $0x38] sm:$0xff]
        %v756 = vld [vmem:[#allocation7 + $0x40] sm:$0xff]
        %v757 = vld [vmem:[#allocation7 + $0x48] sm:$0xff]
        %v758 = vld [vmem:[#allocation7 + $0x50] sm:$0xff]
        %v759 = vld [vmem:[#allocation7 + $0x58] sm:$0xff]
        %v760 = vld [vmem:[#allocation7 + $0x60] sm:$0xff]
        %v761 = vld [vmem:[#allocation7 + $0x68] sm:$0xff]
        %v762 = vld [vmem:[#allocation7 + $0x70] sm:$0xff]
        %v763 = vld [vmem:[#allocation7 + $0x78] sm:$0xff]
        %v764 = vld [vmem:[%s4] sm:$0x1]
        %v766 = vlaneseq
        %v767 = vshrl.u32 %v766, 7
        %v768 = vsub.s32 0, %v767
        %v769 = vrot.slane %v764, %v768
        %771 = vmatprep.subr.mxu0 0.0
        %772 = vmatpush1.msra.mxu0 %v763
        %773 = vmatprep.subr.mxu0 0.0
        %774 = vmatpush1.msra.mxu0 %v762
        %775 = vmatprep.subr.mxu0 0.0
        %776 = vmatpush1.msra.mxu0 %v761
        %777 = vmatprep.subr.mxu0 0.0
        %778 = vmatpush1.msra.mxu0 %v760
        %779 = vmatprep.subr.mxu0 0.0
        %780 = vmatpush1.msra.mxu0 %v759
        %781 = vmatprep.subr.mxu0 0.0
        %782 = vmatpush1.msra.mxu0 %v758
        %783 = vmatprep.subr.mxu0 0.0
        %784 = vmatpush1.msra.mxu0 %v757
        %785 = vmatprep.subr.mxu0 0.0
        %786 = vmatpush1.msra.mxu0 %v756
        %787 = vmatprep.subr.mxu0 0.0
        %788 = vmatpush1.msra.mxu0 %v755
        %789 = vmatprep.subr.mxu0 0.0
        %790 = vmatpush1.msra.mxu0 %v754
        %791 = vmatprep.subr.mxu0 0.0
        %792 = vmatpush1.msra.mxu0 %v753
        %793 = vmatprep.subr.mxu0 0.0
        %794 = vmatpush1.msra.mxu0 %v752
        %795 = vmatprep.subr.mxu0 0.0
        %796 = vmatpush1.msra.mxu0 %v751
        %797 = vmatprep.subr.mxu0 0.0
        %798 = vmatpush1.msra.mxu0 %v750
        %799 = vmatprep.subr.mxu0 0.0
        %800 = vmatpush1.msra.mxu0 %v749
        %801 = vmatprep.subr.mxu0 0.0
        %802 = vmatpush1.msra.mxu0 %v748
        %803 = vmatprep.subr.mxu0 0.0
        %804 = vmatpush2.msra.mxu0 0.0
        %805 = vmatprep.subr.mxu0 0.0
        %806 = vmatpush2.msra.mxu0 0.0
        %807 = vmatprep.subr.mxu0 0.0
        %808 = vmatpush2.msra.mxu0 0.0
        %809 = vmatprep.subr.mxu0 0.0
        %810 = vmatpush2.msra.mxu0 0.0
        %811 = vmatprep.subr.mxu0 0.0
        %812 = vmatpush2.msra.mxu0 0.0
        %813 = vmatprep.subr.mxu0 0.0
        %814 = vmatpush2.msra.mxu0 0.0
        %815 = vmatprep.subr.mxu0 0.0
        %816 = vmatpush2.msra.mxu0 0.0
        %817 = vmatprep.subr.mxu0 0.0
        %818 = vmatpush2.msra.mxu0 0.0
        %819 = vmatprep.subr.mxu0 0.0
        %820 = vmatpush2.msra.mxu0 0.0
        %821 = vmatprep.subr.mxu0 0.0
        %822 = vmatpush2.msra.mxu0 0.0
        %823 = vmatprep.subr.mxu0 0.0
        %824 = vmatpush2.msra.mxu0 0.0
        %825 = vmatprep.subr.mxu0 0.0
        %826 = vmatpush2.msra.mxu0 0.0
        %827 = vmatprep.subr.mxu0 0.0
        %828 = vmatpush2.msra.mxu0 0.0
        %829 = vmatprep.subr.mxu0 0.0
        %830 = vmatpush2.msra.mxu0 0.0
        %831 = vmatprep.subr.mxu0 0.0
        %832 = vmatpush2.msra.mxu0 0.0
        %833 = vmatprep.subr.mxu0 0.0
        %834 = vmatpush2.msra.mxu0 0.0
        %835 = vmatprep.mubr.f32.mxu0 0.0
        %836 = vmatmul.mubr.f32.gmra.mxu0 %v732
        %v837 = vpop.f32.mrf.mxu0
        %v838 = vadd.f32 %v769, %v837
        %v839 = vpop.f32.mrf.mxu0
        %840 = vmatprep.mubr.f32.mxu0 0.0
        %841 = vmatmul.mubr.f32.gmra.mxu0 %v733
        %v842 = vpop.f32.mrf.mxu0
        %v843 = vadd.f32 %v769, %v842
        %v844 = vpop.f32.mrf.mxu0
        %845 = vmatprep.mubr.f32.mxu0 0.0
        %846 = vmatmul.mubr.f32.gmra.mxu0 %v734
        %v847 = vpop.f32.mrf.mxu0
        %v848 = vadd.f32 %v769, %v847
        %v849 = vpop.f32.mrf.mxu0
        %850 = vmatprep.mubr.f32.mxu0 0.0
        %851 = vmatmul.mubr.f32.gmra.mxu0 %v735
        %v852 = vpop.f32.mrf.mxu0
        %v853 = vadd.f32 %v769, %v852
        %v854 = vpop.f32.mrf.mxu0
        %855 = vmatprep.mubr.f32.mxu0 0.0
        %856 = vmatmul.mubr.f32.gmra.mxu0 %v736
        %v857 = vpop.f32.mrf.mxu0
        %v858 = vadd.f32 %v769, %v857
        %v859 = vpop.f32.mrf.mxu0
        %860 = vmatprep.mubr.f32.mxu0 0.0
        %861 = vmatmul.mubr.f32.gmra.mxu0 %v737
        %v862 = vpop.f32.mrf.mxu0
        %v863 = vadd.f32 %v769, %v862
        %v864 = vpop.f32.mrf.mxu0
        %865 = vmatprep.mubr.f32.mxu0 0.0
        %866 = vmatmul.mubr.f32.gmra.mxu0 %v738
        %v867 = vpop.f32.mrf.mxu0
        %v868 = vadd.f32 %v769, %v867
        %v869 = vpop.f32.mrf.mxu0
        %870 = vmatprep.mubr.f32.mxu0 0.0
        %871 = vmatmul.mubr.f32.gmra.mxu0 %v739
        %v872 = vpop.f32.mrf.mxu0
        %v873 = vadd.f32 %v769, %v872
        %v874 = vpop.f32.mrf.mxu0
        %875 = vmatprep.mubr.f32.mxu0 0.0
        %876 = vmatmul.mubr.f32.gmra.mxu0 %v740
        %v877 = vpop.f32.mrf.mxu0
        %v878 = vadd.f32 %v769, %v877
        %v879 = vpop.f32.mrf.mxu0
        %880 = vmatprep.mubr.f32.mxu0 0.0
        %881 = vmatmul.mubr.f32.gmra.mxu0 %v741
        %v882 = vpop.f32.mrf.mxu0
        %v883 = vadd.f32 %v769, %v882
        %v884 = vpop.f32.mrf.mxu0
        %885 = vmatprep.mubr.f32.mxu0 0.0
        %886 = vmatmul.mubr.f32.gmra.mxu0 %v742
        %v887 = vpop.f32.mrf.mxu0
        %v888 = vadd.f32 %v769, %v887
        %v889 = vpop.f32.mrf.mxu0
        %890 = vmatprep.mubr.f32.mxu0 0.0
        %891 = vmatmul.mubr.f32.gmra.mxu0 %v743
        %v892 = vpop.f32.mrf.mxu0
        %v893 = vadd.f32 %v769, %v892
        %v894 = vpop.f32.mrf.mxu0
        %895 = vmatprep.mubr.f32.mxu0 0.0
        %896 = vmatmul.mubr.f32.gmra.mxu0 %v744
        %v897 = vpop.f32.mrf.mxu0
        %v898 = vadd.f32 %v769, %v897
        %v899 = vpop.f32.mrf.mxu0
        %900 = vmatprep.mubr.f32.mxu0 0.0
        %901 = vmatmul.mubr.f32.gmra.mxu0 %v745
        %v902 = vpop.f32.mrf.mxu0
        %v903 = vadd.f32 %v769, %v902
        %v904 = vpop.f32.mrf.mxu0
        %905 = vmatprep.mubr.f32.mxu0 0.0
        %906 = vmatmul.mubr.f32.gmra.mxu0 %v746
        %v907 = vpop.f32.mrf.mxu0
        %v908 = vadd.f32 %v769, %v907
        %v909 = vpop.f32.mrf.mxu0
        %910 = vmatprep.mubr.f32.mxu0 0.0
        %911 = vmatmul.mubr.f32.gmra.mxu0 %v747
        %v912 = vpop.f32.mrf.mxu0
        %v913 = vadd.f32 %v769, %v912
        %v914 = vpop.f32.mrf.mxu0
        %915 = vdwg.mxu0
        %v916 = vmax.f32 %v838, 0.0
        %v917 = vmax.f32 %v843, 0.0
        %v918 = vmax.f32 %v848, 0.0
        %v919 = vmax.f32 %v853, 0.0
        %v920 = vmax.f32 %v858, 0.0
        %v921 = vmax.f32 %v863, 0.0
        %v922 = vmax.f32 %v868, 0.0
        %v923 = vmax.f32 %v873, 0.0
        %v924 = vmax.f32 %v878, 0.0
        %v925 = vmax.f32 %v883, 0.0
        %v926 = vmax.f32 %v888, 0.0
        %v927 = vmax.f32 %v893, 0.0
        %v928 = vmax.f32 %v898, 0.0
        %v929 = vmax.f32 %v903, 0.0
        %v930 = vmax.f32 %v908, 0.0
        %v931 = vmax.f32 %v913, 0.0
        %v932 = vld [vmem:[#allocation8] sm:$0xff]
        %v933 = vld [vmem:[#allocation8 + $0x8] sm:$0xff]
        %v934 = vld [vmem:[#allocation8 + $0x10] sm:$0xff]
        %v935 = vld [vmem:[#allocation8 + $0x18] sm:$0xff]
        %v936 = vld [vmem:[#allocation8 + $0x20] sm:$0xff]
        %v937 = vld [vmem:[#allocation8 + $0x28] sm:$0xff]
        %v938 = vld [vmem:[#allocation8 + $0x30] sm:$0xff]
        %v939 = vld [vmem:[#allocation8 + $0x38] sm:$0xff]
        %v940 = vld [vmem:[#allocation8 + $0x40] sm:$0xff]
        %v941 = vld [vmem:[#allocation8 + $0x48] sm:$0xff]
        %v942 = vld [vmem:[#allocation8 + $0x50] sm:$0xff]
        %v943 = vld [vmem:[#allocation8 + $0x58] sm:$0xff]
        %v944 = vld [vmem:[#allocation8 + $0x60] sm:$0xff]
        %v945 = vld [vmem:[#allocation8 + $0x68] sm:$0xff]
        %v946 = vld [vmem:[#allocation8 + $0x70] sm:$0xff]
        %v947 = vld [vmem:[#allocation8 + $0x78] sm:$0xff]
        %v948 = vld [vmem:[%s6] sm:$0x1]
        %v950 = vlaneseq
        %v951 = vshrl.u32 %v950, 7
        %v952 = vsub.s32 0, %v951
        %v953 = vrot.slane %v948, %v952
        %955 = vmatprep.subr.mxu0 0.0
        %956 = vmatpush1.msra.mxu0 %v947
        %957 = vmatprep.subr.mxu0 0.0
        %958 = vmatpush1.msra.mxu0 %v946
        %959 = vmatprep.subr.mxu0 0.0
        %960 = vmatpush1.msra.mxu0 %v945
        %961 = vmatprep.subr.mxu0 0.0
        %962 = vmatpush1.msra.mxu0 %v944
        %963 = vmatprep.subr.mxu0 0.0
        %964 = vmatpush1.msra.mxu0 %v943
        %965 = vmatprep.subr.mxu0 0.0
        %966 = vmatpush1.msra.mxu0 %v942
        %967 = vmatprep.subr.mxu0 0.0
        %968 = vmatpush1.msra.mxu0 %v941
        %969 = vmatprep.subr.mxu0 0.0
        %970 = vmatpush1.msra.mxu0 %v940
        %971 = vmatprep.subr.mxu0 0.0
        %972 = vmatpush1.msra.mxu0 %v939
        %973 = vmatprep.subr.mxu0 0.0
        %974 = vmatpush1.msra.mxu0 %v938
        %975 = vmatprep.subr.mxu0 0.0
        %976 = vmatpush1.msra.mxu0 %v937
        %977 = vmatprep.subr.mxu0 0.0
        %978 = vmatpush1.msra.mxu0 %v936
        %979 = vmatprep.subr.mxu0 0.0
        %980 = vmatpush1.msra.mxu0 %v935
        %981 = vmatprep.subr.mxu0 0.0
        %982 = vmatpush1.msra.mxu0 %v934
        %983 = vmatprep.subr.mxu0 0.0
        %984 = vmatpush1.msra.mxu0 %v933
        %985 = vmatprep.subr.mxu0 0.0
        %986 = vmatpush1.msra.mxu0 %v932
        %987 = vmatprep.subr.mxu0 0.0
        %988 = vmatpush2.msra.mxu0 0.0
        %989 = vmatprep.subr.mxu0 0.0
        %990 = vmatpush2.msra.mxu0 0.0
        %991 = vmatprep.subr.mxu0 0.0
        %992 = vmatpush2.msra.mxu0 0.0
        %993 = vmatprep.subr.mxu0 0.0
        %994 = vmatpush2.msra.mxu0 0.0
        %995 = vmatprep.subr.mxu0 0.0
        %996 = vmatpush2.msra.mxu0 0.0
        %997 = vmatprep.subr.mxu0 0.0
        %998 = vmatpush2.msra.mxu0 0.0
        %999 = vmatprep.subr.mxu0 0.0
        %1000 = vmatpush2.msra.mxu0 0.0
        %1001 = vmatprep.subr.mxu0 0.0
        %1002 = vmatpush2.msra.mxu0 0.0
        %1003 = vmatprep.subr.mxu0 0.0
        %1004 = vmatpush2.msra.mxu0 0.0
        %1005 = vmatprep.subr.mxu0 0.0
        %1006 = vmatpush2.msra.mxu0 0.0
        %1007 = vmatprep.subr.mxu0 0.0
        %1008 = vmatpush2.msra.mxu0 0.0
        %1009 = vmatprep.subr.mxu0 0.0
        %1010 = vmatpush2.msra.mxu0 0.0
        %1011 = vmatprep.subr.mxu0 0.0
        %1012 = vmatpush2.msra.mxu0 0.0
        %1013 = vmatprep.subr.mxu0 0.0
        %1014 = vmatpush2.msra.mxu0 0.0
        %1015 = vmatprep.subr.mxu0 0.0
        %1016 = vmatpush2.msra.mxu0 0.0
        %1017 = vmatprep.subr.mxu0 0.0
        %1018 = vmatpush2.msra.mxu0 0.0
        %1019 = vmatprep.mubr.f32.mxu0 0.0
        %1020 = vmatmul.mubr.f32.gmra.mxu0 %v916
        %v1021 = vpop.f32.mrf.mxu0
        %v1022 = vadd.f32 %v953, %v1021
        %v1023 = vpop.f32.mrf.mxu0
        %1024 = vmatprep.mubr.f32.mxu0 0.0
        %1025 = vmatmul.mubr.f32.gmra.mxu0 %v917
        %v1026 = vpop.f32.mrf.mxu0
        %v1027 = vadd.f32 %v953, %v1026
        %v1028 = vpop.f32.mrf.mxu0
        %1029 = vmatprep.mubr.f32.mxu0 0.0
        %1030 = vmatmul.mubr.f32.gmra.mxu0 %v918
        %v1031 = vpop.f32.mrf.mxu0
        %v1032 = vadd.f32 %v953, %v1031
        %v1033 = vpop.f32.mrf.mxu0
        %1034 = vmatprep.mubr.f32.mxu0 0.0
        %1035 = vmatmul.mubr.f32.gmra.mxu0 %v919
        %v1036 = vpop.f32.mrf.mxu0
        %v1037 = vadd.f32 %v953, %v1036
        %v1038 = vpop.f32.mrf.mxu0
        %1039 = vmatprep.mubr.f32.mxu0 0.0
        %1040 = vmatmul.mubr.f32.gmra.mxu0 %v920
        %v1041 = vpop.f32.mrf.mxu0
        %v1042 = vadd.f32 %v953, %v1041
        %v1043 = vpop.f32.mrf.mxu0
        %1044 = vmatprep.mubr.f32.mxu0 0.0
        %1045 = vmatmul.mubr.f32.gmra.mxu0 %v921
        %v1046 = vpop.f32.mrf.mxu0
        %v1047 = vadd.f32 %v953, %v1046
        %v1048 = vpop.f32.mrf.mxu0
        %1049 = vmatprep.mubr.f32.mxu0 0.0
        %1050 = vmatmul.mubr.f32.gmra.mxu0 %v922
        %v1051 = vpop.f32.mrf.mxu0
        %v1052 = vadd.f32 %v953, %v1051
        %v1053 = vpop.f32.mrf.mxu0
        %1054 = vmatprep.mubr.f32.mxu0 0.0
        %1055 = vmatmul.mubr.f32.gmra.mxu0 %v923
        %v1056 = vpop.f32.mrf.mxu0
        %v1057 = vadd.f32 %v953, %v1056
        %v1058 = vpop.f32.mrf.mxu0
        %1059 = vmatprep.mubr.f32.mxu0 0.0
        %1060 = vmatmul.mubr.f32.gmra.mxu0 %v924
        %v1061 = vpop.f32.mrf.mxu0
        %v1062 = vadd.f32 %v953, %v1061
        %v1063 = vpop.f32.mrf.mxu0
        %1064 = vmatprep.mubr.f32.mxu0 0.0
        %1065 = vmatmul.mubr.f32.gmra.mxu0 %v925
        %v1066 = vpop.f32.mrf.mxu0
        %v1067 = vadd.f32 %v953, %v1066
        %v1068 = vpop.f32.mrf.mxu0
        %1069 = vmatprep.mubr.f32.mxu0 0.0
        %1070 = vmatmul.mubr.f32.gmra.mxu0 %v926
        %v1071 = vpop.f32.mrf.mxu0
        %v1072 = vadd.f32 %v953, %v1071
        %v1073 = vpop.f32.mrf.mxu0
        %1074 = vmatprep.mubr.f32.mxu0 0.0
        %1075 = vmatmul.mubr.f32.gmra.mxu0 %v927
        %v1076 = vpop.f32.mrf.mxu0
        %v1077 = vadd.f32 %v953, %v1076
        %v1078 = vpop.f32.mrf.mxu0
        %1079 = vmatprep.mubr.f32.mxu0 0.0
        %1080 = vmatmul.mubr.f32.gmra.mxu0 %v928
        %v1081 = vpop.f32.mrf.mxu0
        %v1082 = vadd.f32 %v953, %v1081
        %v1083 = vpop.f32.mrf.mxu0
        %1084 = vmatprep.mubr.f32.mxu0 0.0
        %1085 = vmatmul.mubr.f32.gmra.mxu0 %v929
        %v1086 = vpop.f32.mrf.mxu0
        %v1087 = vadd.f32 %v953, %v1086
        %v1088 = vpop.f32.mrf.mxu0
        %1089 = vmatprep.mubr.f32.mxu0 0.0
        %1090 = vmatmul.mubr.f32.gmra.mxu0 %v930
        %v1091 = vpop.f32.mrf.mxu0
        %v1092 = vadd.f32 %v953, %v1091
        %v1093 = vpop.f32.mrf.mxu0
        %1094 = vmatprep.mubr.f32.mxu0 0.0
        %1095 = vmatmul.mubr.f32.gmra.mxu0 %v931
        %v1096 = vpop.f32.mrf.mxu0
        %v1097 = vadd.f32 %v953, %v1096
        %v1098 = vpop.f32.mrf.mxu0
        %1099 = vdwg.mxu0
        %v1100 = vmax.f32 %v1022, 0.0
        %v1101 = vmax.f32 %v1027, 0.0
        %v1102 = vmax.f32 %v1032, 0.0
        %v1103 = vmax.f32 %v1037, 0.0
        %v1104 = vmax.f32 %v1042, 0.0
        %v1105 = vmax.f32 %v1047, 0.0
        %v1106 = vmax.f32 %v1052, 0.0
        %v1107 = vmax.f32 %v1057, 0.0
        %v1108 = vmax.f32 %v1062, 0.0
        %v1109 = vmax.f32 %v1067, 0.0
        %v1110 = vmax.f32 %v1072, 0.0
        %v1111 = vmax.f32 %v1077, 0.0
        %v1112 = vmax.f32 %v1082, 0.0
        %v1113 = vmax.f32 %v1087, 0.0
        %v1114 = vmax.f32 %v1092, 0.0
        %v1115 = vmax.f32 %v1097, 0.0
        %v1116 = vlaneseq
        %v1117 = vand.u32 %v1116, 127
        %1118 = vmax.xlane.f32.xlu0 %v1100
        %v1119 = vpop.xlane.xlu0 %1118
        %1120 = vmax.xlane.f32.xlu0 %v1101
        %v1121 = vpop.xlane.xlu0 %1120
        %1122 = vmax.xlane.f32.xlu0 %v1102
        %v1123 = vpop.xlane.xlu0 %1122
        %1124 = vmax.xlane.f32.xlu0 %v1103
        %v1125 = vpop.xlane.xlu0 %1124
        %1126 = vmax.xlane.f32.xlu0 %v1104
        %v1127 = vpop.xlane.xlu0 %1126
        %1128 = vmax.xlane.f32.xlu0 %v1105
        %v1129 = vpop.xlane.xlu0 %1128
        %1130 = vmax.xlane.f32.xlu0 %v1106
        %v1131 = vpop.xlane.xlu0 %1130
        %1132 = vmax.xlane.f32.xlu0 %v1107
        %v1133 = vpop.xlane.xlu0 %1132
        %1134 = vmax.xlane.f32.xlu0 %v1108
        %v1135 = vpop.xlane.xlu0 %1134
        %1136 = vmax.xlane.f32.xlu0 %v1109
        %v1137 = vpop.xlane.xlu0 %1136
        %1138 = vmax.xlane.f32.xlu0 %v1110
        %v1139 = vpop.xlane.xlu0 %1138
        %1140 = vmax.xlane.f32.xlu0 %v1111
        %v1141 = vpop.xlane.xlu0 %1140
        %1142 = vmax.xlane.f32.xlu0 %v1112
        %v1143 = vpop.xlane.xlu0 %1142
        %1144 = vmax.xlane.f32.xlu0 %v1113
        %v1145 = vpop.xlane.xlu0 %1144
        %1146 = vmax.xlane.f32.xlu0 %v1114
        %v1147 = vpop.xlane.xlu0 %1146
        %1148 = vmax.xlane.f32.xlu0 %v1115
        %v1149 = vpop.xlane.xlu0 %1148
        %vm1150 = vcmp.eq.f32.partialorder %v1100, %v1119
        %vm1151 = vcmp.eq.f32.partialorder %v1101, %v1121
        %vm1152 = vcmp.eq.f32.partialorder %v1102, %v1123
        %vm1153 = vcmp.eq.f32.partialorder %v1103, %v1125
        %vm1154 = vcmp.eq.f32.partialorder %v1104, %v1127
        %vm1155 = vcmp.eq.f32.partialorder %v1105, %v1129
        %vm1156 = vcmp.eq.f32.partialorder %v1106, %v1131
        %vm1157 = vcmp.eq.f32.partialorder %v1107, %v1133
        %vm1158 = vcmp.eq.f32.partialorder %v1108, %v1135
        %vm1159 = vcmp.eq.f32.partialorder %v1109, %v1137
        %vm1160 = vcmp.eq.f32.partialorder %v1110, %v1139
        %vm1161 = vcmp.eq.f32.partialorder %v1111, %v1141
        %vm1162 = vcmp.eq.f32.partialorder %v1112, %v1143
        %vm1163 = vcmp.eq.f32.partialorder %v1113, %v1145
        %vm1164 = vcmp.eq.f32.partialorder %v1114, %v1147
        %vm1165 = vcmp.eq.f32.partialorder %v1115, %v1149
        %v1166 = vsel %vm1150, %v1117, 128
        %v1167 = vsel %vm1151, %v1117, 128
        %v1168 = vsel %vm1152, %v1117, 128
        %v1169 = vsel %vm1153, %v1117, 128
        %v1170 = vsel %vm1154, %v1117, 128
        %v1171 = vsel %vm1155, %v1117, 128
        %v1172 = vsel %vm1156, %v1117, 128
        %v1173 = vsel %vm1157, %v1117, 128
        %v1174 = vsel %vm1158, %v1117, 128
        %v1175 = vsel %vm1159, %v1117, 128
        %v1176 = vsel %vm1160, %v1117, 128
        %v1177 = vsel %vm1161, %v1117, 128
        %v1178 = vsel %vm1162, %v1117, 128
        %v1179 = vsel %vm1163, %v1117, 128
        %v1180 = vsel %vm1164, %v1117, 128
        %v1181 = vsel %vm1165, %v1117, 128
        %v1182 = vand.u32 %v1166, 65535
        %v1183 = vshra.s32 %v1166, 16
        %v1184 = vcvt.s32.f32 %v1182
        %v1185 = vcvt.s32.f32 %v1183
        %1186 = vmin.xlane.f32.xlu0 %v1185
        %v1187 = vpop.xlane.xlu0 %1186
        %vm1188 = vcmp.eq.f32.partialorder %v1185, %v1187
        %v1189 = vsel %vm1188, %v1184, inf
        %1190 = vmin.xlane.f32.xlu0 %v1189
        %v1191 = vpop.xlane.xlu0 %1190
        %v1192 = vcvt.f32.s32 %v1191
        %v1193 = vcvt.f32.s32 %v1187
        %v1194 = vshll.u32 %v1193, 16
        %v1195 = vadd.s32 %v1194, %v1192
        %v1196 = vand.u32 %v1167, 65535
        %v1197 = vshra.s32 %v1167, 16
        %v1198 = vcvt.s32.f32 %v1196
        %v1199 = vcvt.s32.f32 %v1197
        %1200 = vmin.xlane.f32.xlu0 %v1199
        %v1201 = vpop.xlane.xlu0 %1200
        %vm1202 = vcmp.eq.f32.partialorder %v1199, %v1201
        %v1203 = vsel %vm1202, %v1198, inf
        %1204 = vmin.xlane.f32.xlu0 %v1203
        %v1205 = vpop.xlane.xlu0 %1204
        %v1206 = vcvt.f32.s32 %v1205
        %v1207 = vcvt.f32.s32 %v1201
        %v1208 = vshll.u32 %v1207, 16
        %v1209 = vadd.s32 %v1208, %v1206
        %v1210 = vand.u32 %v1168, 65535
        %v1211 = vshra.s32 %v1168, 16
        %v1212 = vcvt.s32.f32 %v1210
        %v1213 = vcvt.s32.f32 %v1211
        %1214 = vmin.xlane.f32.xlu0 %v1213
        %v1215 = vpop.xlane.xlu0 %1214
        %vm1216 = vcmp.eq.f32.partialorder %v1213, %v1215
        %v1217 = vsel %vm1216, %v1212, inf
        %1218 = vmin.xlane.f32.xlu0 %v1217
        %v1219 = vpop.xlane.xlu0 %1218
        %v1220 = vcvt.f32.s32 %v1219
        %v1221 = vcvt.f32.s32 %v1215
        %v1222 = vshll.u32 %v1221, 16
        %v1223 = vadd.s32 %v1222, %v1220
        %v1224 = vand.u32 %v1169, 65535
        %v1225 = vshra.s32 %v1169, 16
        %v1226 = vcvt.s32.f32 %v1224
        %v1227 = vcvt.s32.f32 %v1225
        %1228 = vmin.xlane.f32.xlu0 %v1227
        %v1229 = vpop.xlane.xlu0 %1228
        %vm1230 = vcmp.eq.f32.partialorder %v1227, %v1229
        %v1231 = vsel %vm1230, %v1226, inf
        %1232 = vmin.xlane.f32.xlu0 %v1231
        %v1233 = vpop.xlane.xlu0 %1232
        %v1234 = vcvt.f32.s32 %v1233
        %v1235 = vcvt.f32.s32 %v1229
        %v1236 = vshll.u32 %v1235, 16
        %v1237 = vadd.s32 %v1236, %v1234
        %v1238 = vand.u32 %v1170, 65535
        %v1239 = vshra.s32 %v1170, 16
        %v1240 = vcvt.s32.f32 %v1238
        %v1241 = vcvt.s32.f32 %v1239
        %1242 = vmin.xlane.f32.xlu0 %v1241
        %v1243 = vpop.xlane.xlu0 %1242
        %vm1244 = vcmp.eq.f32.partialorder %v1241, %v1243
        %v1245 = vsel %vm1244, %v1240, inf
        %1246 = vmin.xlane.f32.xlu0 %v1245
        %v1247 = vpop.xlane.xlu0 %1246
        %v1248 = vcvt.f32.s32 %v1247
        %v1249 = vcvt.f32.s32 %v1243
        %v1250 = vshll.u32 %v1249, 16
        %v1251 = vadd.s32 %v1250, %v1248
        %v1252 = vand.u32 %v1171, 65535
        %v1253 = vshra.s32 %v1171, 16
        %v1254 = vcvt.s32.f32 %v1252
        %v1255 = vcvt.s32.f32 %v1253
        %1256 = vmin.xlane.f32.xlu0 %v1255
        %v1257 = vpop.xlane.xlu0 %1256
        %vm1258 = vcmp.eq.f32.partialorder %v1255, %v1257
        %v1259 = vsel %vm1258, %v1254, inf
        %1260 = vmin.xlane.f32.xlu0 %v1259
        %v1261 = vpop.xlane.xlu0 %1260
        %v1262 = vcvt.f32.s32 %v1261
        %v1263 = vcvt.f32.s32 %v1257
        %v1264 = vshll.u32 %v1263, 16
        %v1265 = vadd.s32 %v1264, %v1262
        %v1266 = vand.u32 %v1172, 65535
        %v1267 = vshra.s32 %v1172, 16
        %v1268 = vcvt.s32.f32 %v1266
        %v1269 = vcvt.s32.f32 %v1267
        %1270 = vmin.xlane.f32.xlu0 %v1269
        %v1271 = vpop.xlane.xlu0 %1270
        %vm1272 = vcmp.eq.f32.partialorder %v1269, %v1271
        %v1273 = vsel %vm1272, %v1268, inf
        %1274 = vmin.xlane.f32.xlu0 %v1273
        %v1275 = vpop.xlane.xlu0 %1274
        %v1276 = vcvt.f32.s32 %v1275
        %v1277 = vcvt.f32.s32 %v1271
        %v1278 = vshll.u32 %v1277, 16
        %v1279 = vadd.s32 %v1278, %v1276
        %v1280 = vand.u32 %v1173, 65535
        %v1281 = vshra.s32 %v1173, 16
        %v1282 = vcvt.s32.f32 %v1280
        %v1283 = vcvt.s32.f32 %v1281
        %1284 = vmin.xlane.f32.xlu0 %v1283
        %v1285 = vpop.xlane.xlu0 %1284
        %vm1286 = vcmp.eq.f32.partialorder %v1283, %v1285
        %v1287 = vsel %vm1286, %v1282, inf
        %1288 = vmin.xlane.f32.xlu0 %v1287
        %v1289 = vpop.xlane.xlu0 %1288
        %v1290 = vcvt.f32.s32 %v1289
        %v1291 = vcvt.f32.s32 %v1285
        %v1292 = vshll.u32 %v1291, 16
        %v1293 = vadd.s32 %v1292, %v1290
        %v1294 = vand.u32 %v1174, 65535
        %v1295 = vshra.s32 %v1174, 16
        %v1296 = vcvt.s32.f32 %v1294
        %v1297 = vcvt.s32.f32 %v1295
        %1298 = vmin.xlane.f32.xlu0 %v1297
        %v1299 = vpop.xlane.xlu0 %1298
        %vm1300 = vcmp.eq.f32.partialorder %v1297, %v1299
        %v1301 = vsel %vm1300, %v1296, inf
        %1302 = vmin.xlane.f32.xlu0 %v1301
        %v1303 = vpop.xlane.xlu0 %1302
        %v1304 = vcvt.f32.s32 %v1303
        %v1305 = vcvt.f32.s32 %v1299
        %v1306 = vshll.u32 %v1305, 16
        %v1307 = vadd.s32 %v1306, %v1304
        %v1308 = vand.u32 %v1175, 65535
        %v1309 = vshra.s32 %v1175, 16
        %v1310 = vcvt.s32.f32 %v1308
        %v1311 = vcvt.s32.f32 %v1309
        %1312 = vmin.xlane.f32.xlu0 %v1311
        %v1313 = vpop.xlane.xlu0 %1312
        %vm1314 = vcmp.eq.f32.partialorder %v1311, %v1313
        %v1315 = vsel %vm1314, %v1310, inf
        %1316 = vmin.xlane.f32.xlu0 %v1315
        %v1317 = vpop.xlane.xlu0 %1316
        %v1318 = vcvt.f32.s32 %v1317
        %v1319 = vcvt.f32.s32 %v1313
        %v1320 = vshll.u32 %v1319, 16
        %v1321 = vadd.s32 %v1320, %v1318
        %v1322 = vand.u32 %v1176, 65535
        %v1323 = vshra.s32 %v1176, 16
        %v1324 = vcvt.s32.f32 %v1322
        %v1325 = vcvt.s32.f32 %v1323
        %1326 = vmin.xlane.f32.xlu0 %v1325
        %v1327 = vpop.xlane.xlu0 %1326
        %vm1328 = vcmp.eq.f32.partialorder %v1325, %v1327
        %v1329 = vsel %vm1328, %v1324, inf
        %1330 = vmin.xlane.f32.xlu0 %v1329
        %v1331 = vpop.xlane.xlu0 %1330
        %v1332 = vcvt.f32.s32 %v1331
        %v1333 = vcvt.f32.s32 %v1327
        %v1334 = vshll.u32 %v1333, 16
        %v1335 = vadd.s32 %v1334, %v1332
        %v1336 = vand.u32 %v1177, 65535
        %v1337 = vshra.s32 %v1177, 16
        %v1338 = vcvt.s32.f32 %v1336
        %v1339 = vcvt.s32.f32 %v1337
        %1340 = vmin.xlane.f32.xlu0 %v1339
        %v1341 = vpop.xlane.xlu0 %1340
        %vm1342 = vcmp.eq.f32.partialorder %v1339, %v1341
        %v1343 = vsel %vm1342, %v1338, inf
        %1344 = vmin.xlane.f32.xlu0 %v1343
        %v1345 = vpop.xlane.xlu0 %1344
        %v1346 = vcvt.f32.s32 %v1345
        %v1347 = vcvt.f32.s32 %v1341
        %v1348 = vshll.u32 %v1347, 16
        %v1349 = vadd.s32 %v1348, %v1346
        %v1350 = vand.u32 %v1178, 65535
        %v1351 = vshra.s32 %v1178, 16
        %v1352 = vcvt.s32.f32 %v1350
        %v1353 = vcvt.s32.f32 %v1351
        %1354 = vmin.xlane.f32.xlu0 %v1353
        %v1355 = vpop.xlane.xlu0 %1354
        %vm1356 = vcmp.eq.f32.partialorder %v1353, %v1355
        %v1357 = vsel %vm1356, %v1352, inf
        %1358 = vmin.xlane.f32.xlu0 %v1357
        %v1359 = vpop.xlane.xlu0 %1358
        %v1360 = vcvt.f32.s32 %v1359
        %v1361 = vcvt.f32.s32 %v1355
        %v1362 = vshll.u32 %v1361, 16
        %v1363 = vadd.s32 %v1362, %v1360
        %v1364 = vand.u32 %v1179, 65535
        %v1365 = vshra.s32 %v1179, 16
        %v1366 = vcvt.s32.f32 %v1364
        %v1367 = vcvt.s32.f32 %v1365
        %1368 = vmin.xlane.f32.xlu0 %v1367
        %v1369 = vpop.xlane.xlu0 %1368
        %vm1370 = vcmp.eq.f32.partialorder %v1367, %v1369
        %v1371 = vsel %vm1370, %v1366, inf
        %1372 = vmin.xlane.f32.xlu0 %v1371
        %v1373 = vpop.xlane.xlu0 %1372
        %v1374 = vcvt.f32.s32 %v1373
        %v1375 = vcvt.f32.s32 %v1369
        %v1376 = vshll.u32 %v1375, 16
        %v1377 = vadd.s32 %v1376, %v1374
        %v1378 = vand.u32 %v1180, 65535
        %v1379 = vshra.s32 %v1180, 16
        %v1380 = vcvt.s32.f32 %v1378
        %v1381 = vcvt.s32.f32 %v1379
        %1382 = vmin.xlane.f32.xlu0 %v1381
        %v1383 = vpop.xlane.xlu0 %1382
        %vm1384 = vcmp.eq.f32.partialorder %v1381, %v1383
        %v1385 = vsel %vm1384, %v1380, inf
        %1386 = vmin.xlane.f32.xlu0 %v1385
        %v1387 = vpop.xlane.xlu0 %1386
        %v1388 = vcvt.f32.s32 %v1387
        %v1389 = vcvt.f32.s32 %v1383
        %v1390 = vshll.u32 %v1389, 16
        %v1391 = vadd.s32 %v1390, %v1388
        %v1392 = vand.u32 %v1181, 65535
        %v1393 = vshra.s32 %v1181, 16
        %v1394 = vcvt.s32.f32 %v1392
        %v1395 = vcvt.s32.f32 %v1393
        %1396 = vmin.xlane.f32.xlu0 %v1395
        %v1397 = vpop.xlane.xlu0 %1396
        %vm1398 = vcmp.eq.f32.partialorder %v1395, %v1397
        %v1399 = vsel %vm1398, %v1394, inf
        %1400 = vmin.xlane.f32.xlu0 %v1399
        %v1401 = vpop.xlane.xlu0 %1400
        %v1402 = vcvt.f32.s32 %v1401
        %v1403 = vcvt.f32.s32 %v1397
        %v1404 = vshll.u32 %v1403, 16
        %v1405 = vadd.s32 %v1404, %v1402
        %vm1406 = vcmp.eq.s32.totalorder %v1117, %v1195
        %vm1407 = vcmp.eq.s32.totalorder %v1117, %v1209
        %vm1408 = vcmp.eq.s32.totalorder %v1117, %v1223
        %vm1409 = vcmp.eq.s32.totalorder %v1117, %v1237
        %vm1410 = vcmp.eq.s32.totalorder %v1117, %v1251
        %vm1411 = vcmp.eq.s32.totalorder %v1117, %v1265
        %vm1412 = vcmp.eq.s32.totalorder %v1117, %v1279
        %vm1413 = vcmp.eq.s32.totalorder %v1117, %v1293
        %vm1414 = vcmp.eq.s32.totalorder %v1117, %v1307
        %vm1415 = vcmp.eq.s32.totalorder %v1117, %v1321
        %vm1416 = vcmp.eq.s32.totalorder %v1117, %v1335
        %vm1417 = vcmp.eq.s32.totalorder %v1117, %v1349
        %vm1418 = vcmp.eq.s32.totalorder %v1117, %v1363
        %vm1419 = vcmp.eq.s32.totalorder %v1117, %v1377
        %vm1420 = vcmp.eq.s32.totalorder %v1117, %v1391
        %vm1421 = vcmp.eq.s32.totalorder %v1117, %v1405
        %v1422 = vsel %vm1406, 1.0, 0.0
        %v1423 = vsel %vm1407, 1.0, 0.0
        %v1424 = vsel %vm1408, 1.0, 0.0
        %v1425 = vsel %vm1409, 1.0, 0.0
        %v1426 = vsel %vm1410, 1.0, 0.0
        %v1427 = vsel %vm1411, 1.0, 0.0
        %v1428 = vsel %vm1412, 1.0, 0.0
        %v1429 = vsel %vm1413, 1.0, 0.0
        %v1430 = vsel %vm1414, 1.0, 0.0
        %v1431 = vsel %vm1415, 1.0, 0.0
        %v1432 = vsel %vm1416, 1.0, 0.0
        %v1433 = vsel %vm1417, 1.0, 0.0
        %v1434 = vsel %vm1418, 1.0, 0.0
        %v1435 = vsel %vm1419, 1.0, 0.0
        %v1436 = vsel %vm1420, 1.0, 0.0
        %v1437 = vsel %vm1421, 1.0, 0.0
        %v1438 = vsel %vm1406, -inf, %v1100
        %v1439 = vsel %vm1407, -inf, %v1101
        %v1440 = vsel %vm1408, -inf, %v1102
        %v1441 = vsel %vm1409, -inf, %v1103
        %v1442 = vsel %vm1410, -inf, %v1104
        %v1443 = vsel %vm1411, -inf, %v1105
        %v1444 = vsel %vm1412, -inf, %v1106
        %v1445 = vsel %vm1413, -inf, %v1107
        %v1446 = vsel %vm1414, -inf, %v1108
        %v1447 = vsel %vm1415, -inf, %v1109
        %v1448 = vsel %vm1416, -inf, %v1110
        %v1449 = vsel %vm1417, -inf, %v1111
        %v1450 = vsel %vm1418, -inf, %v1112
        %v1451 = vsel %vm1419, -inf, %v1113
        %v1452 = vsel %vm1420, -inf, %v1114
        %v1453 = vsel %vm1421, -inf, %v1115
        %1454 = vmax.xlane.f32.xlu0 %v1438
        %v1455 = vpop.xlane.xlu0 %1454
        %1456 = vmax.xlane.f32.xlu0 %v1439
        %v1457 = vpop.xlane.xlu0 %1456
        %1458 = vmax.xlane.f32.xlu0 %v1440
        %v1459 = vpop.xlane.xlu0 %1458
        %1460 = vmax.xlane.f32.xlu0 %v1441
        %v1461 = vpop.xlane.xlu0 %1460
        %1462 = vmax.xlane.f32.xlu0 %v1442
        %v1463 = vpop.xlane.xlu0 %1462
        %1464 = vmax.xlane.f32.xlu0 %v1443
        %v1465 = vpop.xlane.xlu0 %1464
        %1466 = vmax.xlane.f32.xlu0 %v1444
        %v1467 = vpop.xlane.xlu0 %1466
        %1468 = vmax.xlane.f32.xlu0 %v1445
        %v1469 = vpop.xlane.xlu0 %1468
        %1470 = vmax.xlane.f32.xlu0 %v1446
        %v1471 = vpop.xlane.xlu0 %1470
        %1472 = vmax.xlane.f32.xlu0 %v1447
        %v1473 = vpop.xlane.xlu0 %1472
        %1474 = vmax.xlane.f32.xlu0 %v1448
        %v1475 = vpop.xlane.xlu0 %1474
        %1476 = vmax.xlane.f32.xlu0 %v1449
        %v1477 = vpop.xlane.xlu0 %1476
        %1478 = vmax.xlane.f32.xlu0 %v1450
        %v1479 = vpop.xlane.xlu0 %1478
        %1480 = vmax.xlane.f32.xlu0 %v1451
        %v1481 = vpop.xlane.xlu0 %1480
        %1482 = vmax.xlane.f32.xlu0 %v1452
        %v1483 = vpop.xlane.xlu0 %1482
        %1484 = vmax.xlane.f32.xlu0 %v1453
        %v1485 = vpop.xlane.xlu0 %1484
        %vm1486 = vcmp.eq.f32.partialorder %v1438, %v1455
        %vm1487 = vcmp.eq.f32.partialorder %v1439, %v1457
        %vm1488 = vcmp.eq.f32.partialorder %v1440, %v1459
        %vm1489 = vcmp.eq.f32.partialorder %v1441, %v1461
        %vm1490 = vcmp.eq.f32.partialorder %v1442, %v1463
        %vm1491 = vcmp.eq.f32.partialorder %v1443, %v1465
        %vm1492 = vcmp.eq.f32.partialorder %v1444, %v1467
        %vm1493 = vcmp.eq.f32.partialorder %v1445, %v1469
        %vm1494 = vcmp.eq.f32.partialorder %v1446, %v1471
        %vm1495 = vcmp.eq.f32.partialorder %v1447, %v1473
        %vm1496 = vcmp.eq.f32.partialorder %v1448, %v1475
        %vm1497 = vcmp.eq.f32.partialorder %v1449, %v1477
        %vm1498 = vcmp.eq.f32.partialorder %v1450, %v1479
        %vm1499 = vcmp.eq.f32.partialorder %v1451, %v1481
        %vm1500 = vcmp.eq.f32.partialorder %v1452, %v1483
        %vm1501 = vcmp.eq.f32.partialorder %v1453, %v1485
        %v1502 = vsel %vm1486, %v1117, 128
        %v1503 = vsel %vm1487, %v1117, 128
        %v1504 = vsel %vm1488, %v1117, 128
        %v1505 = vsel %vm1489, %v1117, 128
        %v1506 = vsel %vm1490, %v1117, 128
        %v1507 = vsel %vm1491, %v1117, 128
        %v1508 = vsel %vm1492, %v1117, 128
        %v1509 = vsel %vm1493, %v1117, 128
        %v1510 = vsel %vm1494, %v1117, 128
        %v1511 = vsel %vm1495, %v1117, 128
        %v1512 = vsel %vm1496, %v1117, 128
        %v1513 = vsel %vm1497, %v1117, 128
        %v1514 = vsel %vm1498, %v1117, 128
        %v1515 = vsel %vm1499, %v1117, 128
        %v1516 = vsel %vm1500, %v1117, 128
        %v1517 = vsel %vm1501, %v1117, 128
        %v1518 = vand.u32 %v1502, 65535
        %v1519 = vshra.s32 %v1502, 16
        %v1520 = vcvt.s32.f32 %v1518
        %v1521 = vcvt.s32.f32 %v1519
        %1522 = vmin.xlane.f32.xlu0 %v1521
        %v1523 = vpop.xlane.xlu0 %1522
        %vm1524 = vcmp.eq.f32.partialorder %v1521, %v1523
        %v1525 = vsel %vm1524, %v1520, inf
        %1526 = vmin.xlane.f32.xlu0 %v1525
        %v1527 = vpop.xlane.xlu0 %1526
        %v1528 = vcvt.f32.s32 %v1527
        %v1529 = vcvt.f32.s32 %v1523
        %v1530 = vshll.u32 %v1529, 16
        %v1531 = vadd.s32 %v1530, %v1528
        %v1532 = vand.u32 %v1503, 65535
        %v1533 = vshra.s32 %v1503, 16
        %v1534 = vcvt.s32.f32 %v1532
        %v1535 = vcvt.s32.f32 %v1533
        %1536 = vmin.xlane.f32.xlu0 %v1535
        %v1537 = vpop.xlane.xlu0 %1536
        %vm1538 = vcmp.eq.f32.partialorder %v1535, %v1537
        %v1539 = vsel %vm1538, %v1534, inf
        %1540 = vmin.xlane.f32.xlu0 %v1539
        %v1541 = vpop.xlane.xlu0 %1540
        %v1542 = vcvt.f32.s32 %v1541
        %v1543 = vcvt.f32.s32 %v1537
        %v1544 = vshll.u32 %v1543, 16
        %v1545 = vadd.s32 %v1544, %v1542
        %v1546 = vand.u32 %v1504, 65535
        %v1547 = vshra.s32 %v1504, 16
        %v1548 = vcvt.s32.f32 %v1546
        %v1549 = vcvt.s32.f32 %v1547
        %1550 = vmin.xlane.f32.xlu0 %v1549
        %v1551 = vpop.xlane.xlu0 %1550
        %vm1552 = vcmp.eq.f32.partialorder %v1549, %v1551
        %v1553 = vsel %vm1552, %v1548, inf
        %1554 = vmin.xlane.f32.xlu0 %v1553
        %v1555 = vpop.xlane.xlu0 %1554
        %v1556 = vcvt.f32.s32 %v1555
        %v1557 = vcvt.f32.s32 %v1551
        %v1558 = vshll.u32 %v1557, 16
        %v1559 = vadd.s32 %v1558, %v1556
        %v1560 = vand.u32 %v1505, 65535
        %v1561 = vshra.s32 %v1505, 16
        %v1562 = vcvt.s32.f32 %v1560
        %v1563 = vcvt.s32.f32 %v1561
        %1564 = vmin.xlane.f32.xlu0 %v1563
        %v1565 = vpop.xlane.xlu0 %1564
        %vm1566 = vcmp.eq.f32.partialorder %v1563, %v1565
        %v1567 = vsel %vm1566, %v1562, inf
        %1568 = vmin.xlane.f32.xlu0 %v1567
        %v1569 = vpop.xlane.xlu0 %1568
        %v1570 = vcvt.f32.s32 %v1569
        %v1571 = vcvt.f32.s32 %v1565
        %v1572 = vshll.u32 %v1571, 16
        %v1573 = vadd.s32 %v1572, %v1570
        %v1574 = vand.u32 %v1506, 65535
        %v1575 = vshra.s32 %v1506, 16
        %v1576 = vcvt.s32.f32 %v1574
        %v1577 = vcvt.s32.f32 %v1575
        %1578 = vmin.xlane.f32.xlu0 %v1577
        %v1579 = vpop.xlane.xlu0 %1578
        %vm1580 = vcmp.eq.f32.partialorder %v1577, %v1579
        %v1581 = vsel %vm1580, %v1576, inf
        %1582 = vmin.xlane.f32.xlu0 %v1581
        %v1583 = vpop.xlane.xlu0 %1582
        %v1584 = vcvt.f32.s32 %v1583
        %v1585 = vcvt.f32.s32 %v1579
        %v1586 = vshll.u32 %v1585, 16
        %v1587 = vadd.s32 %v1586, %v1584
        %v1588 = vand.u32 %v1507, 65535
        %v1589 = vshra.s32 %v1507, 16
        %v1590 = vcvt.s32.f32 %v1588
        %v1591 = vcvt.s32.f32 %v1589
        %1592 = vmin.xlane.f32.xlu0 %v1591
        %v1593 = vpop.xlane.xlu0 %1592
        %vm1594 = vcmp.eq.f32.partialorder %v1591, %v1593
        %v1595 = vsel %vm1594, %v1590, inf
        %1596 = vmin.xlane.f32.xlu0 %v1595
        %v1597 = vpop.xlane.xlu0 %1596
        %v1598 = vcvt.f32.s32 %v1597
        %v1599 = vcvt.f32.s32 %v1593
        %v1600 = vshll.u32 %v1599, 16
        %v1601 = vadd.s32 %v1600, %v1598
        %v1602 = vand.u32 %v1508, 65535
        %v1603 = vshra.s32 %v1508, 16
        %v1604 = vcvt.s32.f32 %v1602
        %v1605 = vcvt.s32.f32 %v1603
        %1606 = vmin.xlane.f32.xlu0 %v1605
        %v1607 = vpop.xlane.xlu0 %1606
        %vm1608 = vcmp.eq.f32.partialorder %v1605, %v1607
        %v1609 = vsel %vm1608, %v1604, inf
        %1610 = vmin.xlane.f32.xlu0 %v1609
        %v1611 = vpop.xlane.xlu0 %1610
        %v1612 = vcvt.f32.s32 %v1611
        %v1613 = vcvt.f32.s32 %v1607
        %v1614 = vshll.u32 %v1613, 16
        %v1615 = vadd.s32 %v1614, %v1612
        %v1616 = vand.u32 %v1509, 65535
        %v1617 = vshra.s32 %v1509, 16
        %v1618 = vcvt.s32.f32 %v1616
        %v1619 = vcvt.s32.f32 %v1617
        %1620 = vmin.xlane.f32.xlu0 %v1619
        %v1621 = vpop.xlane.xlu0 %1620
        %vm1622 = vcmp.eq.f32.partialorder %v1619, %v1621
        %v1623 = vsel %vm1622, %v1618, inf
        %1624 = vmin.xlane.f32.xlu0 %v1623
        %v1625 = vpop.xlane.xlu0 %1624
        %v1626 = vcvt.f32.s32 %v1625
        %v1627 = vcvt.f32.s32 %v1621
        %v1628 = vshll.u32 %v1627, 16
        %v1629 = vadd.s32 %v1628, %v1626
        %v1630 = vand.u32 %v1510, 65535
        %v1631 = vshra.s32 %v1510, 16
        %v1632 = vcvt.s32.f32 %v1630
        %v1633 = vcvt.s32.f32 %v1631
        %1634 = vmin.xlane.f32.xlu0 %v1633
        %v1635 = vpop.xlane.xlu0 %1634
        %vm1636 = vcmp.eq.f32.partialorder %v1633, %v1635
        %v1637 = vsel %vm1636, %v1632, inf
        %1638 = vmin.xlane.f32.xlu0 %v1637
        %v1639 = vpop.xlane.xlu0 %1638
        %v1640 = vcvt.f32.s32 %v1639
        %v1641 = vcvt.f32.s32 %v1635
        %v1642 = vshll.u32 %v1641, 16
        %v1643 = vadd.s32 %v1642, %v1640
        %v1644 = vand.u32 %v1511, 65535
        %v1645 = vshra.s32 %v1511, 16
        %v1646 = vcvt.s32.f32 %v1644
        %v1647 = vcvt.s32.f32 %v1645
        %1648 = vmin.xlane.f32.xlu0 %v1647
        %v1649 = vpop.xlane.xlu0 %1648
        %vm1650 = vcmp.eq.f32.partialorder %v1647, %v1649
        %v1651 = vsel %vm1650, %v1646, inf
        %1652 = vmin.xlane.f32.xlu0 %v1651
        %v1653 = vpop.xlane.xlu0 %1652
        %v1654 = vcvt.f32.s32 %v1653
        %v1655 = vcvt.f32.s32 %v1649
        %v1656 = vshll.u32 %v1655, 16
        %v1657 = vadd.s32 %v1656, %v1654
        %v1658 = vand.u32 %v1512, 65535
        %v1659 = vshra.s32 %v1512, 16
        %v1660 = vcvt.s32.f32 %v1658
        %v1661 = vcvt.s32.f32 %v1659
        %1662 = vmin.xlane.f32.xlu0 %v1661
        %v1663 = vpop.xlane.xlu0 %1662
        %vm1664 = vcmp.eq.f32.partialorder %v1661, %v1663
        %v1665 = vsel %vm1664, %v1660, inf
        %1666 = vmin.xlane.f32.xlu0 %v1665
        %v1667 = vpop.xlane.xlu0 %1666
        %v1668 = vcvt.f32.s32 %v1667
        %v1669 = vcvt.f32.s32 %v1663
        %v1670 = vshll.u32 %v1669, 16
        %v1671 = vadd.s32 %v1670, %v1668
        %v1672 = vand.u32 %v1513, 65535
        %v1673 = vshra.s32 %v1513, 16
        %v1674 = vcvt.s32.f32 %v1672
        %v1675 = vcvt.s32.f32 %v1673
        %1676 = vmin.xlane.f32.xlu0 %v1675
        %v1677 = vpop.xlane.xlu0 %1676
        %vm1678 = vcmp.eq.f32.partialorder %v1675, %v1677
        %v1679 = vsel %vm1678, %v1674, inf
        %1680 = vmin.xlane.f32.xlu0 %v1679
        %v1681 = vpop.xlane.xlu0 %1680
        %v1682 = vcvt.f32.s32 %v1681
        %v1683 = vcvt.f32.s32 %v1677
        %v1684 = vshll.u32 %v1683, 16
        %v1685 = vadd.s32 %v1684, %v1682
        %v1686 = vand.u32 %v1514, 65535
        %v1687 = vshra.s32 %v1514, 16
        %v1688 = vcvt.s32.f32 %v1686
        %v1689 = vcvt.s32.f32 %v1687
        %1690 = vmin.xlane.f32.xlu0 %v1689
        %v1691 = vpop.xlane.xlu0 %1690
        %vm1692 = vcmp.eq.f32.partialorder %v1689, %v1691
        %v1693 = vsel %vm1692, %v1688, inf
        %1694 = vmin.xlane.f32.xlu0 %v1693
        %v1695 = vpop.xlane.xlu0 %1694
        %v1696 = vcvt.f32.s32 %v1695
        %v1697 = vcvt.f32.s32 %v1691
        %v1698 = vshll.u32 %v1697, 16
        %v1699 = vadd.s32 %v1698, %v1696
        %v1700 = vand.u32 %v1515, 65535
        %v1701 = vshra.s32 %v1515, 16
        %v1702 = vcvt.s32.f32 %v1700
        %v1703 = vcvt.s32.f32 %v1701
        %1704 = vmin.xlane.f32.xlu0 %v1703
        %v1705 = vpop.xlane.xlu0 %1704
        %vm1706 = vcmp.eq.f32.partialorder %v1703, %v1705
        %v1707 = vsel %vm1706, %v1702, inf
        %1708 = vmin.xlane.f32.xlu0 %v1707
        %v1709 = vpop.xlane.xlu0 %1708
        %v1710 = vcvt.f32.s32 %v1709
        %v1711 = vcvt.f32.s32 %v1705
        %v1712 = vshll.u32 %v1711, 16
        %v1713 = vadd.s32 %v1712, %v1710
        %v1714 = vand.u32 %v1516, 65535
        %v1715 = vshra.s32 %v1516, 16
        %v1716 = vcvt.s32.f32 %v1714
        %v1717 = vcvt.s32.f32 %v1715
        %1718 = vmin.xlane.f32.xlu0 %v1717
        %v1719 = vpop.xlane.xlu0 %1718
        %vm1720 = vcmp.eq.f32.partialorder %v1717, %v1719
        %v1721 = vsel %vm1720, %v1716, inf
        %1722 = vmin.xlane.f32.xlu0 %v1721
        %v1723 = vpop.xlane.xlu0 %1722
        %v1724 = vcvt.f32.s32 %v1723
        %v1725 = vcvt.f32.s32 %v1719
        %v1726 = vshll.u32 %v1725, 16
        %v1727 = vadd.s32 %v1726, %v1724
        %v1728 = vand.u32 %v1517, 65535
        %v1729 = vshra.s32 %v1517, 16
        %v1730 = vcvt.s32.f32 %v1728
        %v1731 = vcvt.s32.f32 %v1729
        %1732 = vmin.xlane.f32.xlu0 %v1731
        %v1733 = vpop.xlane.xlu0 %1732
        %vm1734 = vcmp.eq.f32.partialorder %v1731, %v1733
        %v1735 = vsel %vm1734, %v1730, inf
        %1736 = vmin.xlane.f32.xlu0 %v1735
        %v1737 = vpop.xlane.xlu0 %1736
        %v1738 = vcvt.f32.s32 %v1737
        %v1739 = vcvt.f32.s32 %v1733
        %v1740 = vshll.u32 %v1739, 16
        %v1741 = vadd.s32 %v1740, %v1738
        %vm1742 = vcmp.eq.s32.totalorder %v1117, %v1531
        %vm1743 = vcmp.eq.s32.totalorder %v1117, %v1545
        %vm1744 = vcmp.eq.s32.totalorder %v1117, %v1559
        %vm1745 = vcmp.eq.s32.totalorder %v1117, %v1573
        %vm1746 = vcmp.eq.s32.totalorder %v1117, %v1587
        %vm1747 = vcmp.eq.s32.totalorder %v1117, %v1601
        %vm1748 = vcmp.eq.s32.totalorder %v1117, %v1615
        %vm1749 = vcmp.eq.s32.totalorder %v1117, %v1629
        %vm1750 = vcmp.eq.s32.totalorder %v1117, %v1643
        %vm1751 = vcmp.eq.s32.totalorder %v1117, %v1657
        %vm1752 = vcmp.eq.s32.totalorder %v1117, %v1671
        %vm1753 = vcmp.eq.s32.totalorder %v1117, %v1685
        %vm1754 = vcmp.eq.s32.totalorder %v1117, %v1699
        %vm1755 = vcmp.eq.s32.totalorder %v1117, %v1713
        %vm1756 = vcmp.eq.s32.totalorder %v1117, %v1727
        %vm1757 = vcmp.eq.s32.totalorder %v1117, %v1741
        %v1758 = vsel %vm1742, 1.0, %v1422
        %v1759 = vsel %vm1743, 1.0, %v1423
        %v1760 = vsel %vm1744, 1.0, %v1424
        %v1761 = vsel %vm1745, 1.0, %v1425
        %v1762 = vsel %vm1746, 1.0, %v1426
        %v1763 = vsel %vm1747, 1.0, %v1427
        %v1764 = vsel %vm1748, 1.0, %v1428
        %v1765 = vsel %vm1749, 1.0, %v1429
        %v1766 = vsel %vm1750, 1.0, %v1430
        %v1767 = vsel %vm1751, 1.0, %v1431
        %v1768 = vsel %vm1752, 1.0, %v1432
        %v1769 = vsel %vm1753, 1.0, %v1433
        %v1770 = vsel %vm1754, 1.0, %v1434
        %v1771 = vsel %vm1755, 1.0, %v1435
        %v1772 = vsel %vm1756, 1.0, %v1436
        %v1773 = vsel %vm1757, 1.0, %v1437
        %v1774 = vsel %vm1742, -inf, %v1438
        %v1775 = vsel %vm1743, -inf, %v1439
        %v1776 = vsel %vm1744, -inf, %v1440
        %v1777 = vsel %vm1745, -inf, %v1441
        %v1778 = vsel %vm1746, -inf, %v1442
        %v1779 = vsel %vm1747, -inf, %v1443
        %v1780 = vsel %vm1748, -inf, %v1444
        %v1781 = vsel %vm1749, -inf, %v1445
        %v1782 = vsel %vm1750, -inf, %v1446
        %v1783 = vsel %vm1751, -inf, %v1447
        %v1784 = vsel %vm1752, -inf, %v1448
        %v1785 = vsel %vm1753, -inf, %v1449
        %v1786 = vsel %vm1754, -inf, %v1450
        %v1787 = vsel %vm1755, -inf, %v1451
        %v1788 = vsel %vm1756, -inf, %v1452
        %v1789 = vsel %vm1757, -inf, %v1453
        %1790 = vmax.xlane.f32.xlu0 %v1774
        %v1791 = vpop.xlane.xlu0 %1790
        %1792 = vmax.xlane.f32.xlu0 %v1775
        %v1793 = vpop.xlane.xlu0 %1792
        %1794 = vmax.xlane.f32.xlu0 %v1776
        %v1795 = vpop.xlane.xlu0 %1794
        %1796 = vmax.xlane.f32.xlu0 %v1777
        %v1797 = vpop.xlane.xlu0 %1796
        %1798 = vmax.xlane.f32.xlu0 %v1778
        %v1799 = vpop.xlane.xlu0 %1798
        %1800 = vmax.xlane.f32.xlu0 %v1779
        %v1801 = vpop.xlane.xlu0 %1800
        %1802 = vmax.xlane.f32.xlu0 %v1780
        %v1803 = vpop.xlane.xlu0 %1802
        %1804 = vmax.xlane.f32.xlu0 %v1781
        %v1805 = vpop.xlane.xlu0 %1804
        %1806 = vmax.xlane.f32.xlu0 %v1782
        %v1807 = vpop.xlane.xlu0 %1806
        %1808 = vmax.xlane.f32.xlu0 %v1783
        %v1809 = vpop.xlane.xlu0 %1808
        %1810 = vmax.xlane.f32.xlu0 %v1784
        %v1811 = vpop.xlane.xlu0 %1810
        %1812 = vmax.xlane.f32.xlu0 %v1785
        %v1813 = vpop.xlane.xlu0 %1812
        %1814 = vmax.xlane.f32.xlu0 %v1786
        %v1815 = vpop.xlane.xlu0 %1814
        %1816 = vmax.xlane.f32.xlu0 %v1787
        %v1817 = vpop.xlane.xlu0 %1816
        %1818 = vmax.xlane.f32.xlu0 %v1788
        %v1819 = vpop.xlane.xlu0 %1818
        %1820 = vmax.xlane.f32.xlu0 %v1789
        %v1821 = vpop.xlane.xlu0 %1820
        %vm1822 = vcmp.eq.f32.partialorder %v1774, %v1791
        %vm1823 = vcmp.eq.f32.partialorder %v1775, %v1793
        %vm1824 = vcmp.eq.f32.partialorder %v1776, %v1795
        %vm1825 = vcmp.eq.f32.partialorder %v1777, %v1797
        %vm1826 = vcmp.eq.f32.partialorder %v1778, %v1799
        %vm1827 = vcmp.eq.f32.partialorder %v1779, %v1801
        %vm1828 = vcmp.eq.f32.partialorder %v1780, %v1803
        %vm1829 = vcmp.eq.f32.partialorder %v1781, %v1805
        %vm1830 = vcmp.eq.f32.partialorder %v1782, %v1807
        %vm1831 = vcmp.eq.f32.partialorder %v1783, %v1809
        %vm1832 = vcmp.eq.f32.partialorder %v1784, %v1811
        %vm1833 = vcmp.eq.f32.partialorder %v1785, %v1813
        %vm1834 = vcmp.eq.f32.partialorder %v1786, %v1815
        %vm1835 = vcmp.eq.f32.partialorder %v1787, %v1817
        %vm1836 = vcmp.eq.f32.partialorder %v1788, %v1819
        %vm1837 = vcmp.eq.f32.partialorder %v1789, %v1821
        %v1838 = vsel %vm1822, %v1117, 128
        %v1839 = vsel %vm1823, %v1117, 128
        %v1840 = vsel %vm1824, %v1117, 128
        %v1841 = vsel %vm1825, %v1117, 128
        %v1842 = vsel %vm1826, %v1117, 128
        %v1843 = vsel %vm1827, %v1117, 128
        %v1844 = vsel %vm1828, %v1117, 128
        %v1845 = vsel %vm1829, %v1117, 128
        %v1846 = vsel %vm1830, %v1117, 128
        %v1847 = vsel %vm1831, %v1117, 128
        %v1848 = vsel %vm1832, %v1117, 128
        %v1849 = vsel %vm1833, %v1117, 128
        %v1850 = vsel %vm1834, %v1117, 128
        %v1851 = vsel %vm1835, %v1117, 128
        %v1852 = vsel %vm1836, %v1117, 128
        %v1853 = vsel %vm1837, %v1117, 128
        %v1854 = vand.u32 %v1838, 65535
        %v1855 = vshra.s32 %v1838, 16
        %v1856 = vcvt.s32.f32 %v1854
        %v1857 = vcvt.s32.f32 %v1855
        %1858 = vmin.xlane.f32.xlu0 %v1857
        %v1859 = vpop.xlane.xlu0 %1858
        %vm1860 = vcmp.eq.f32.partialorder %v1857, %v1859
        %v1861 = vsel %vm1860, %v1856, inf
        %1862 = vmin.xlane.f32.xlu0 %v1861
        %v1863 = vpop.xlane.xlu0 %1862
        %v1864 = vcvt.f32.s32 %v1863
        %v1865 = vcvt.f32.s32 %v1859
        %v1866 = vshll.u32 %v1865, 16
        %v1867 = vadd.s32 %v1866, %v1864
        %v1868 = vand.u32 %v1839, 65535
        %v1869 = vshra.s32 %v1839, 16
        %v1870 = vcvt.s32.f32 %v1868
        %v1871 = vcvt.s32.f32 %v1869
        %1872 = vmin.xlane.f32.xlu0 %v1871
        %v1873 = vpop.xlane.xlu0 %1872
        %vm1874 = vcmp.eq.f32.partialorder %v1871, %v1873
        %v1875 = vsel %vm1874, %v1870, inf
        %1876 = vmin.xlane.f32.xlu0 %v1875
        %v1877 = vpop.xlane.xlu0 %1876
        %v1878 = vcvt.f32.s32 %v1877
        %v1879 = vcvt.f32.s32 %v1873
        %v1880 = vshll.u32 %v1879, 16
        %v1881 = vadd.s32 %v1880, %v1878
        %v1882 = vand.u32 %v1840, 65535
        %v1883 = vshra.s32 %v1840, 16
        %v1884 = vcvt.s32.f32 %v1882
        %v1885 = vcvt.s32.f32 %v1883
        %1886 = vmin.xlane.f32.xlu0 %v1885
        %v1887 = vpop.xlane.xlu0 %1886
        %vm1888 = vcmp.eq.f32.partialorder %v1885, %v1887
        %v1889 = vsel %vm1888, %v1884, inf
        %1890 = vmin.xlane.f32.xlu0 %v1889
        %v1891 = vpop.xlane.xlu0 %1890
        %v1892 = vcvt.f32.s32 %v1891
        %v1893 = vcvt.f32.s32 %v1887
        %v1894 = vshll.u32 %v1893, 16
        %v1895 = vadd.s32 %v1894, %v1892
        %v1896 = vand.u32 %v1841, 65535
        %v1897 = vshra.s32 %v1841, 16
        %v1898 = vcvt.s32.f32 %v1896
        %v1899 = vcvt.s32.f32 %v1897
        %1900 = vmin.xlane.f32.xlu0 %v1899
        %v1901 = vpop.xlane.xlu0 %1900
        %vm1902 = vcmp.eq.f32.partialorder %v1899, %v1901
        %v1903 = vsel %vm1902, %v1898, inf
        %1904 = vmin.xlane.f32.xlu0 %v1903
        %v1905 = vpop.xlane.xlu0 %1904
        %v1906 = vcvt.f32.s32 %v1905
        %v1907 = vcvt.f32.s32 %v1901
        %v1908 = vshll.u32 %v1907, 16
        %v1909 = vadd.s32 %v1908, %v1906
        %v1910 = vand.u32 %v1842, 65535
        %v1911 = vshra.s32 %v1842, 16
        %v1912 = vcvt.s32.f32 %v1910
        %v1913 = vcvt.s32.f32 %v1911
        %1914 = vmin.xlane.f32.xlu0 %v1913
        %v1915 = vpop.xlane.xlu0 %1914
        %vm1916 = vcmp.eq.f32.partialorder %v1913, %v1915
        %v1917 = vsel %vm1916, %v1912, inf
        %1918 = vmin.xlane.f32.xlu0 %v1917
        %v1919 = vpop.xlane.xlu0 %1918
        %v1920 = vcvt.f32.s32 %v1919
        %v1921 = vcvt.f32.s32 %v1915
        %v1922 = vshll.u32 %v1921, 16
        %v1923 = vadd.s32 %v1922, %v1920
        %v1924 = vand.u32 %v1843, 65535
        %v1925 = vshra.s32 %v1843, 16
        %v1926 = vcvt.s32.f32 %v1924
        %v1927 = vcvt.s32.f32 %v1925
        %1928 = vmin.xlane.f32.xlu0 %v1927
        %v1929 = vpop.xlane.xlu0 %1928
        %vm1930 = vcmp.eq.f32.partialorder %v1927, %v1929
        %v1931 = vsel %vm1930, %v1926, inf
        %1932 = vmin.xlane.f32.xlu0 %v1931
        %v1933 = vpop.xlane.xlu0 %1932
        %v1934 = vcvt.f32.s32 %v1933
        %v1935 = vcvt.f32.s32 %v1929
        %v1936 = vshll.u32 %v1935, 16
        %v1937 = vadd.s32 %v1936, %v1934
        %v1938 = vand.u32 %v1844, 65535
        %v1939 = vshra.s32 %v1844, 16
        %v1940 = vcvt.s32.f32 %v1938
        %v1941 = vcvt.s32.f32 %v1939
        %1942 = vmin.xlane.f32.xlu0 %v1941
        %v1943 = vpop.xlane.xlu0 %1942
        %vm1944 = vcmp.eq.f32.partialorder %v1941, %v1943
        %v1945 = vsel %vm1944, %v1940, inf
        %1946 = vmin.xlane.f32.xlu0 %v1945
        %v1947 = vpop.xlane.xlu0 %1946
        %v1948 = vcvt.f32.s32 %v1947
        %v1949 = vcvt.f32.s32 %v1943
        %v1950 = vshll.u32 %v1949, 16
        %v1951 = vadd.s32 %v1950, %v1948
        %v1952 = vand.u32 %v1845, 65535
        %v1953 = vshra.s32 %v1845, 16
        %v1954 = vcvt.s32.f32 %v1952
        %v1955 = vcvt.s32.f32 %v1953
        %1956 = vmin.xlane.f32.xlu0 %v1955
        %v1957 = vpop.xlane.xlu0 %1956
        %vm1958 = vcmp.eq.f32.partialorder %v1955, %v1957
        %v1959 = vsel %vm1958, %v1954, inf
        %1960 = vmin.xlane.f32.xlu0 %v1959
        %v1961 = vpop.xlane.xlu0 %1960
        %v1962 = vcvt.f32.s32 %v1961
        %v1963 = vcvt.f32.s32 %v1957
        %v1964 = vshll.u32 %v1963, 16
        %v1965 = vadd.s32 %v1964, %v1962
        %v1966 = vand.u32 %v1846, 65535
        %v1967 = vshra.s32 %v1846, 16
        %v1968 = vcvt.s32.f32 %v1966
        %v1969 = vcvt.s32.f32 %v1967
        %1970 = vmin.xlane.f32.xlu0 %v1969
        %v1971 = vpop.xlane.xlu0 %1970
        %vm1972 = vcmp.eq.f32.partialorder %v1969, %v1971
        %v1973 = vsel %vm1972, %v1968, inf
        %1974 = vmin.xlane.f32.xlu0 %v1973
        %v1975 = vpop.xlane.xlu0 %1974
        %v1976 = vcvt.f32.s32 %v1975
        %v1977 = vcvt.f32.s32 %v1971
        %v1978 = vshll.u32 %v1977, 16
        %v1979 = vadd.s32 %v1978, %v1976
        %v1980 = vand.u32 %v1847, 65535
        %v1981 = vshra.s32 %v1847, 16
        %v1982 = vcvt.s32.f32 %v1980
        %v1983 = vcvt.s32.f32 %v1981
        %1984 = vmin.xlane.f32.xlu0 %v1983
        %v1985 = vpop.xlane.xlu0 %1984
        %vm1986 = vcmp.eq.f32.partialorder %v1983, %v1985
        %v1987 = vsel %vm1986, %v1982, inf
        %1988 = vmin.xlane.f32.xlu0 %v1987
        %v1989 = vpop.xlane.xlu0 %1988
        %v1990 = vcvt.f32.s32 %v1989
        %v1991 = vcvt.f32.s32 %v1985
        %v1992 = vshll.u32 %v1991, 16
        %v1993 = vadd.s32 %v1992, %v1990
        %v1994 = vand.u32 %v1848, 65535
        %v1995 = vshra.s32 %v1848, 16
        %v1996 = vcvt.s32.f32 %v1994
        %v1997 = vcvt.s32.f32 %v1995
        %1998 = vmin.xlane.f32.xlu0 %v1997
        %v1999 = vpop.xlane.xlu0 %1998
        %vm2000 = vcmp.eq.f32.partialorder %v1997, %v1999
        %v2001 = vsel %vm2000, %v1996, inf
        %2002 = vmin.xlane.f32.xlu0 %v2001
        %v2003 = vpop.xlane.xlu0 %2002
        %v2004 = vcvt.f32.s32 %v2003
        %v2005 = vcvt.f32.s32 %v1999
        %v2006 = vshll.u32 %v2005, 16
        %v2007 = vadd.s32 %v2006, %v2004
        %v2008 = vand.u32 %v1849, 65535
        %v2009 = vshra.s32 %v1849, 16
        %v2010 = vcvt.s32.f32 %v2008
        %v2011 = vcvt.s32.f32 %v2009
        %2012 = vmin.xlane.f32.xlu0 %v2011
        %v2013 = vpop.xlane.xlu0 %2012
        %vm2014 = vcmp.eq.f32.partialorder %v2011, %v2013
        %v2015 = vsel %vm2014, %v2010, inf
        %2016 = vmin.xlane.f32.xlu0 %v2015
        %v2017 = vpop.xlane.xlu0 %2016
        %v2018 = vcvt.f32.s32 %v2017
        %v2019 = vcvt.f32.s32 %v2013
        %v2020 = vshll.u32 %v2019, 16
        %v2021 = vadd.s32 %v2020, %v2018
        %v2022 = vand.u32 %v1850, 65535
        %v2023 = vshra.s32 %v1850, 16
        %v2024 = vcvt.s32.f32 %v2022
        %v2025 = vcvt.s32.f32 %v2023
        %2026 = vmin.xlane.f32.xlu0 %v2025
        %v2027 = vpop.xlane.xlu0 %2026
        %vm2028 = vcmp.eq.f32.partialorder %v2025, %v2027
        %v2029 = vsel %vm2028, %v2024, inf
        %2030 = vmin.xlane.f32.xlu0 %v2029
        %v2031 = vpop.xlane.xlu0 %2030
        %v2032 = vcvt.f32.s32 %v2031
        %v2033 = vcvt.f32.s32 %v2027
        %v2034 = vshll.u32 %v2033, 16
        %v2035 = vadd.s32 %v2034, %v2032
        %v2036 = vand.u32 %v1851, 65535
        %v2037 = vshra.s32 %v1851, 16
        %v2038 = vcvt.s32.f32 %v2036
        %v2039 = vcvt.s32.f32 %v2037
        %2040 = vmin.xlane.f32.xlu0 %v2039
        %v2041 = vpop.xlane.xlu0 %2040
        %vm2042 = vcmp.eq.f32.partialorder %v2039, %v2041
        %v2043 = vsel %vm2042, %v2038, inf
        %2044 = vmin.xlane.f32.xlu0 %v2043
        %v2045 = vpop.xlane.xlu0 %2044
        %v2046 = vcvt.f32.s32 %v2045
        %v2047 = vcvt.f32.s32 %v2041
        %v2048 = vshll.u32 %v2047, 16
        %v2049 = vadd.s32 %v2048, %v2046
        %v2050 = vand.u32 %v1852, 65535
        %v2051 = vshra.s32 %v1852, 16
        %v2052 = vcvt.s32.f32 %v2050
        %v2053 = vcvt.s32.f32 %v2051
        %2054 = vmin.xlane.f32.xlu0 %v2053
        %v2055 = vpop.xlane.xlu0 %2054
        %vm2056 = vcmp.eq.f32.partialorder %v2053, %v2055
        %v2057 = vsel %vm2056, %v2052, inf
        %2058 = vmin.xlane.f32.xlu0 %v2057
        %v2059 = vpop.xlane.xlu0 %2058
        %v2060 = vcvt.f32.s32 %v2059
        %v2061 = vcvt.f32.s32 %v2055
        %v2062 = vshll.u32 %v2061, 16
        %v2063 = vadd.s32 %v2062, %v2060
        %v2064 = vand.u32 %v1853, 65535
        %v2065 = vshra.s32 %v1853, 16
        %v2066 = vcvt.s32.f32 %v2064
        %v2067 = vcvt.s32.f32 %v2065
        %2068 = vmin.xlane.f32.xlu0 %v2067
        %v2069 = vpop.xlane.xlu0 %2068
        %vm2070 = vcmp.eq.f32.partialorder %v2067, %v2069
        %v2071 = vsel %vm2070, %v2066, inf
        %2072 = vmin.xlane.f32.xlu0 %v2071
        %v2073 = vpop.xlane.xlu0 %2072
        %v2074 = vcvt.f32.s32 %v2073
        %v2075 = vcvt.f32.s32 %v2069
        %v2076 = vshll.u32 %v2075, 16
        %v2077 = vadd.s32 %v2076, %v2074
        %vm2078 = vcmp.eq.s32.totalorder %v1117, %v1867
        %vm2079 = vcmp.eq.s32.totalorder %v1117, %v1881
        %vm2080 = vcmp.eq.s32.totalorder %v1117, %v1895
        %vm2081 = vcmp.eq.s32.totalorder %v1117, %v1909
        %vm2082 = vcmp.eq.s32.totalorder %v1117, %v1923
        %vm2083 = vcmp.eq.s32.totalorder %v1117, %v1937
        %vm2084 = vcmp.eq.s32.totalorder %v1117, %v1951
        %vm2085 = vcmp.eq.s32.totalorder %v1117, %v1965
        %vm2086 = vcmp.eq.s32.totalorder %v1117, %v1979
        %vm2087 = vcmp.eq.s32.totalorder %v1117, %v1993
        %vm2088 = vcmp.eq.s32.totalorder %v1117, %v2007
        %vm2089 = vcmp.eq.s32.totalorder %v1117, %v2021
        %vm2090 = vcmp.eq.s32.totalorder %v1117, %v2035
        %vm2091 = vcmp.eq.s32.totalorder %v1117, %v2049
        %vm2092 = vcmp.eq.s32.totalorder %v1117, %v2063
        %vm2093 = vcmp.eq.s32.totalorder %v1117, %v2077
        %v2094 = vsel %vm2078, 1.0, %v1758
        %v2095 = vsel %vm2079, 1.0, %v1759
        %v2096 = vsel %vm2080, 1.0, %v1760
        %v2097 = vsel %vm2081, 1.0, %v1761
        %v2098 = vsel %vm2082, 1.0, %v1762
        %v2099 = vsel %vm2083, 1.0, %v1763
        %v2100 = vsel %vm2084, 1.0, %v1764
        %v2101 = vsel %vm2085, 1.0, %v1765
        %v2102 = vsel %vm2086, 1.0, %v1766
        %v2103 = vsel %vm2087, 1.0, %v1767
        %v2104 = vsel %vm2088, 1.0, %v1768
        %v2105 = vsel %vm2089, 1.0, %v1769
        %v2106 = vsel %vm2090, 1.0, %v1770
        %v2107 = vsel %vm2091, 1.0, %v1771
        %v2108 = vsel %vm2092, 1.0, %v1772
        %v2109 = vsel %vm2093, 1.0, %v1773
        %v2110 = vsel %vm2078, -inf, %v1774
        %v2111 = vsel %vm2079, -inf, %v1775
        %v2112 = vsel %vm2080, -inf, %v1776
        %v2113 = vsel %vm2081, -inf, %v1777
        %v2114 = vsel %vm2082, -inf, %v1778
        %v2115 = vsel %vm2083, -inf, %v1779
        %v2116 = vsel %vm2084, -inf, %v1780
        %v2117 = vsel %vm2085, -inf, %v1781
        %v2118 = vsel %vm2086, -inf, %v1782
        %v2119 = vsel %vm2087, -inf, %v1783
        %v2120 = vsel %vm2088, -inf, %v1784
        %v2121 = vsel %vm2089, -inf, %v1785
        %v2122 = vsel %vm2090, -inf, %v1786
        %v2123 = vsel %vm2091, -inf, %v1787
        %v2124 = vsel %vm2092, -inf, %v1788
        %v2125 = vsel %vm2093, -inf, %v1789
        %2126 = vmax.xlane.f32.xlu0 %v2110
        %v2127 = vpop.xlane.xlu0 %2126
        %2128 = vmax.xlane.f32.xlu0 %v2111
        %v2129 = vpop.xlane.xlu0 %2128
        %2130 = vmax.xlane.f32.xlu0 %v2112
        %v2131 = vpop.xlane.xlu0 %2130
        %2132 = vmax.xlane.f32.xlu0 %v2113
        %v2133 = vpop.xlane.xlu0 %2132
        %2134 = vmax.xlane.f32.xlu0 %v2114
        %v2135 = vpop.xlane.xlu0 %2134
        %2136 = vmax.xlane.f32.xlu0 %v2115
        %v2137 = vpop.xlane.xlu0 %2136
        %2138 = vmax.xlane.f32.xlu0 %v2116
        %v2139 = vpop.xlane.xlu0 %2138
        %2140 = vmax.xlane.f32.xlu0 %v2117
        %v2141 = vpop.xlane.xlu0 %2140
        %2142 = vmax.xlane.f32.xlu0 %v2118
        %v2143 = vpop.xlane.xlu0 %2142
        %2144 = vmax.xlane.f32.xlu0 %v2119
        %v2145 = vpop.xlane.xlu0 %2144
        %2146 = vmax.xlane.f32.xlu0 %v2120
        %v2147 = vpop.xlane.xlu0 %2146
        %2148 = vmax.xlane.f32.xlu0 %v2121
        %v2149 = vpop.xlane.xlu0 %2148
        %2150 = vmax.xlane.f32.xlu0 %v2122
        %v2151 = vpop.xlane.xlu0 %2150
        %2152 = vmax.xlane.f32.xlu0 %v2123
        %v2153 = vpop.xlane.xlu0 %2152
        %2154 = vmax.xlane.f32.xlu0 %v2124
        %v2155 = vpop.xlane.xlu0 %2154
        %2156 = vmax.xlane.f32.xlu0 %v2125
        %v2157 = vpop.xlane.xlu0 %2156
        %vm2158 = vcmp.eq.f32.partialorder %v2110, %v2127
        %vm2159 = vcmp.eq.f32.partialorder %v2111, %v2129
        %vm2160 = vcmp.eq.f32.partialorder %v2112, %v2131
        %vm2161 = vcmp.eq.f32.partialorder %v2113, %v2133
        %vm2162 = vcmp.eq.f32.partialorder %v2114, %v2135
        %vm2163 = vcmp.eq.f32.partialorder %v2115, %v2137
        %vm2164 = vcmp.eq.f32.partialorder %v2116, %v2139
        %vm2165 = vcmp.eq.f32.partialorder %v2117, %v2141
        %vm2166 = vcmp.eq.f32.partialorder %v2118, %v2143
        %vm2167 = vcmp.eq.f32.partialorder %v2119, %v2145
        %vm2168 = vcmp.eq.f32.partialorder %v2120, %v2147
        %vm2169 = vcmp.eq.f32.partialorder %v2121, %v2149
        %vm2170 = vcmp.eq.f32.partialorder %v2122, %v2151
        %vm2171 = vcmp.eq.f32.partialorder %v2123, %v2153
        %vm2172 = vcmp.eq.f32.partialorder %v2124, %v2155
        %vm2173 = vcmp.eq.f32.partialorder %v2125, %v2157
        %v2174 = vsel %vm2158, %v1117, 128
        %v2175 = vsel %vm2159, %v1117, 128
        %v2176 = vsel %vm2160, %v1117, 128
        %v2177 = vsel %vm2161, %v1117, 128
        %v2178 = vsel %vm2162, %v1117, 128
        %v2179 = vsel %vm2163, %v1117, 128
        %v2180 = vsel %vm2164, %v1117, 128
        %v2181 = vsel %vm2165, %v1117, 128
        %v2182 = vsel %vm2166, %v1117, 128
        %v2183 = vsel %vm2167, %v1117, 128
        %v2184 = vsel %vm2168, %v1117, 128
        %v2185 = vsel %vm2169, %v1117, 128
        %v2186 = vsel %vm2170, %v1117, 128
        %v2187 = vsel %vm2171, %v1117, 128
        %v2188 = vsel %vm2172, %v1117, 128
        %v2189 = vsel %vm2173, %v1117, 128
        %v2190 = vand.u32 %v2174, 65535
        %v2191 = vshra.s32 %v2174, 16
        %v2192 = vcvt.s32.f32 %v2190
        %v2193 = vcvt.s32.f32 %v2191
        %2194 = vmin.xlane.f32.xlu0 %v2193
        %v2195 = vpop.xlane.xlu0 %2194
        %vm2196 = vcmp.eq.f32.partialorder %v2193, %v2195
        %v2197 = vsel %vm2196, %v2192, inf
        %2198 = vmin.xlane.f32.xlu0 %v2197
        %v2199 = vpop.xlane.xlu0 %2198
        %v2200 = vcvt.f32.s32 %v2199
        %v2201 = vcvt.f32.s32 %v2195
        %v2202 = vshll.u32 %v2201, 16
        %v2203 = vadd.s32 %v2202, %v2200
        %v2204 = vand.u32 %v2175, 65535
        %v2205 = vshra.s32 %v2175, 16
        %v2206 = vcvt.s32.f32 %v2204
        %v2207 = vcvt.s32.f32 %v2205
        %2208 = vmin.xlane.f32.xlu0 %v2207
        %v2209 = vpop.xlane.xlu0 %2208
        %vm2210 = vcmp.eq.f32.partialorder %v2207, %v2209
        %v2211 = vsel %vm2210, %v2206, inf
        %2212 = vmin.xlane.f32.xlu0 %v2211
        %v2213 = vpop.xlane.xlu0 %2212
        %v2214 = vcvt.f32.s32 %v2213
        %v2215 = vcvt.f32.s32 %v2209
        %v2216 = vshll.u32 %v2215, 16
        %v2217 = vadd.s32 %v2216, %v2214
        %v2218 = vand.u32 %v2176, 65535
        %v2219 = vshra.s32 %v2176, 16
        %v2220 = vcvt.s32.f32 %v2218
        %v2221 = vcvt.s32.f32 %v2219
        %2222 = vmin.xlane.f32.xlu0 %v2221
        %v2223 = vpop.xlane.xlu0 %2222
        %vm2224 = vcmp.eq.f32.partialorder %v2221, %v2223
        %v2225 = vsel %vm2224, %v2220, inf
        %2226 = vmin.xlane.f32.xlu0 %v2225
        %v2227 = vpop.xlane.xlu0 %2226
        %v2228 = vcvt.f32.s32 %v2227
        %v2229 = vcvt.f32.s32 %v2223
        %v2230 = vshll.u32 %v2229, 16
        %v2231 = vadd.s32 %v2230, %v2228
        %v2232 = vand.u32 %v2177, 65535
        %v2233 = vshra.s32 %v2177, 16
        %v2234 = vcvt.s32.f32 %v2232
        %v2235 = vcvt.s32.f32 %v2233
        %2236 = vmin.xlane.f32.xlu0 %v2235
        %v2237 = vpop.xlane.xlu0 %2236
        %vm2238 = vcmp.eq.f32.partialorder %v2235, %v2237
        %v2239 = vsel %vm2238, %v2234, inf
        %2240 = vmin.xlane.f32.xlu0 %v2239
        %v2241 = vpop.xlane.xlu0 %2240
        %v2242 = vcvt.f32.s32 %v2241
        %v2243 = vcvt.f32.s32 %v2237
        %v2244 = vshll.u32 %v2243, 16
        %v2245 = vadd.s32 %v2244, %v2242
        %v2246 = vand.u32 %v2178, 65535
        %v2247 = vshra.s32 %v2178, 16
        %v2248 = vcvt.s32.f32 %v2246
        %v2249 = vcvt.s32.f32 %v2247
        %2250 = vmin.xlane.f32.xlu0 %v2249
        %v2251 = vpop.xlane.xlu0 %2250
        %vm2252 = vcmp.eq.f32.partialorder %v2249, %v2251
        %v2253 = vsel %vm2252, %v2248, inf
        %2254 = vmin.xlane.f32.xlu0 %v2253
        %v2255 = vpop.xlane.xlu0 %2254
        %v2256 = vcvt.f32.s32 %v2255
        %v2257 = vcvt.f32.s32 %v2251
        %v2258 = vshll.u32 %v2257, 16
        %v2259 = vadd.s32 %v2258, %v2256
        %v2260 = vand.u32 %v2179, 65535
        %v2261 = vshra.s32 %v2179, 16
        %v2262 = vcvt.s32.f32 %v2260
        %v2263 = vcvt.s32.f32 %v2261
        %2264 = vmin.xlane.f32.xlu0 %v2263
        %v2265 = vpop.xlane.xlu0 %2264
        %vm2266 = vcmp.eq.f32.partialorder %v2263, %v2265
        %v2267 = vsel %vm2266, %v2262, inf
        %2268 = vmin.xlane.f32.xlu0 %v2267
        %v2269 = vpop.xlane.xlu0 %2268
        %v2270 = vcvt.f32.s32 %v2269
        %v2271 = vcvt.f32.s32 %v2265
        %v2272 = vshll.u32 %v2271, 16
        %v2273 = vadd.s32 %v2272, %v2270
        %v2274 = vand.u32 %v2180, 65535
        %v2275 = vshra.s32 %v2180, 16
        %v2276 = vcvt.s32.f32 %v2274
        %v2277 = vcvt.s32.f32 %v2275
        %2278 = vmin.xlane.f32.xlu0 %v2277
        %v2279 = vpop.xlane.xlu0 %2278
        %vm2280 = vcmp.eq.f32.partialorder %v2277, %v2279
        %v2281 = vsel %vm2280, %v2276, inf
        %2282 = vmin.xlane.f32.xlu0 %v2281
        %v2283 = vpop.xlane.xlu0 %2282
        %v2284 = vcvt.f32.s32 %v2283
        %v2285 = vcvt.f32.s32 %v2279
        %v2286 = vshll.u32 %v2285, 16
        %v2287 = vadd.s32 %v2286, %v2284
        %v2288 = vand.u32 %v2181, 65535
        %v2289 = vshra.s32 %v2181, 16
        %v2290 = vcvt.s32.f32 %v2288
        %v2291 = vcvt.s32.f32 %v2289
        %2292 = vmin.xlane.f32.xlu0 %v2291
        %v2293 = vpop.xlane.xlu0 %2292
        %vm2294 = vcmp.eq.f32.partialorder %v2291, %v2293
        %v2295 = vsel %vm2294, %v2290, inf
        %2296 = vmin.xlane.f32.xlu0 %v2295
        %v2297 = vpop.xlane.xlu0 %2296
        %v2298 = vcvt.f32.s32 %v2297
        %v2299 = vcvt.f32.s32 %v2293
        %v2300 = vshll.u32 %v2299, 16
        %v2301 = vadd.s32 %v2300, %v2298
        %v2302 = vand.u32 %v2182, 65535
        %v2303 = vshra.s32 %v2182, 16
        %v2304 = vcvt.s32.f32 %v2302
        %v2305 = vcvt.s32.f32 %v2303
        %2306 = vmin.xlane.f32.xlu0 %v2305
        %v2307 = vpop.xlane.xlu0 %2306
        %vm2308 = vcmp.eq.f32.partialorder %v2305, %v2307
        %v2309 = vsel %vm2308, %v2304, inf
        %2310 = vmin.xlane.f32.xlu0 %v2309
        %v2311 = vpop.xlane.xlu0 %2310
        %v2312 = vcvt.f32.s32 %v2311
        %v2313 = vcvt.f32.s32 %v2307
        %v2314 = vshll.u32 %v2313, 16
        %v2315 = vadd.s32 %v2314, %v2312
        %v2316 = vand.u32 %v2183, 65535
        %v2317 = vshra.s32 %v2183, 16
        %v2318 = vcvt.s32.f32 %v2316
        %v2319 = vcvt.s32.f32 %v2317
        %2320 = vmin.xlane.f32.xlu0 %v2319
        %v2321 = vpop.xlane.xlu0 %2320
        %vm2322 = vcmp.eq.f32.partialorder %v2319, %v2321
        %v2323 = vsel %vm2322, %v2318, inf
        %2324 = vmin.xlane.f32.xlu0 %v2323
        %v2325 = vpop.xlane.xlu0 %2324
        %v2326 = vcvt.f32.s32 %v2325
        %v2327 = vcvt.f32.s32 %v2321
        %v2328 = vshll.u32 %v2327, 16
        %v2329 = vadd.s32 %v2328, %v2326
        %v2330 = vand.u32 %v2184, 65535
        %v2331 = vshra.s32 %v2184, 16
        %v2332 = vcvt.s32.f32 %v2330
        %v2333 = vcvt.s32.f32 %v2331
        %2334 = vmin.xlane.f32.xlu0 %v2333
        %v2335 = vpop.xlane.xlu0 %2334
        %vm2336 = vcmp.eq.f32.partialorder %v2333, %v2335
        %v2337 = vsel %vm2336, %v2332, inf
        %2338 = vmin.xlane.f32.xlu0 %v2337
        %v2339 = vpop.xlane.xlu0 %2338
        %v2340 = vcvt.f32.s32 %v2339
        %v2341 = vcvt.f32.s32 %v2335
        %v2342 = vshll.u32 %v2341, 16
        %v2343 = vadd.s32 %v2342, %v2340
        %v2344 = vand.u32 %v2185, 65535
        %v2345 = vshra.s32 %v2185, 16
        %v2346 = vcvt.s32.f32 %v2344
        %v2347 = vcvt.s32.f32 %v2345
        %2348 = vmin.xlane.f32.xlu0 %v2347
        %v2349 = vpop.xlane.xlu0 %2348
        %vm2350 = vcmp.eq.f32.partialorder %v2347, %v2349
        %v2351 = vsel %vm2350, %v2346, inf
        %2352 = vmin.xlane.f32.xlu0 %v2351
        %v2353 = vpop.xlane.xlu0 %2352
        %v2354 = vcvt.f32.s32 %v2353
        %v2355 = vcvt.f32.s32 %v2349
        %v2356 = vshll.u32 %v2355, 16
        %v2357 = vadd.s32 %v2356, %v2354
        %v2358 = vand.u32 %v2186, 65535
        %v2359 = vshra.s32 %v2186, 16
        %v2360 = vcvt.s32.f32 %v2358
        %v2361 = vcvt.s32.f32 %v2359
        %2362 = vmin.xlane.f32.xlu0 %v2361
        %v2363 = vpop.xlane.xlu0 %2362
        %vm2364 = vcmp.eq.f32.partialorder %v2361, %v2363
        %v2365 = vsel %vm2364, %v2360, inf
        %2366 = vmin.xlane.f32.xlu0 %v2365
        %v2367 = vpop.xlane.xlu0 %2366
        %v2368 = vcvt.f32.s32 %v2367
        %v2369 = vcvt.f32.s32 %v2363
        %v2370 = vshll.u32 %v2369, 16
        %v2371 = vadd.s32 %v2370, %v2368
        %v2372 = vand.u32 %v2187, 65535
        %v2373 = vshra.s32 %v2187, 16
        %v2374 = vcvt.s32.f32 %v2372
        %v2375 = vcvt.s32.f32 %v2373
        %2376 = vmin.xlane.f32.xlu0 %v2375
        %v2377 = vpop.xlane.xlu0 %2376
        %vm2378 = vcmp.eq.f32.partialorder %v2375, %v2377
        %v2379 = vsel %vm2378, %v2374, inf
        %2380 = vmin.xlane.f32.xlu0 %v2379
        %v2381 = vpop.xlane.xlu0 %2380
        %v2382 = vcvt.f32.s32 %v2381
        %v2383 = vcvt.f32.s32 %v2377
        %v2384 = vshll.u32 %v2383, 16
        %v2385 = vadd.s32 %v2384, %v2382
        %v2386 = vand.u32 %v2188, 65535
        %v2387 = vshra.s32 %v2188, 16
        %v2388 = vcvt.s32.f32 %v2386
        %v2389 = vcvt.s32.f32 %v2387
        %2390 = vmin.xlane.f32.xlu0 %v2389
        %v2391 = vpop.xlane.xlu0 %2390
        %vm2392 = vcmp.eq.f32.partialorder %v2389, %v2391
        %v2393 = vsel %vm2392, %v2388, inf
        %2394 = vmin.xlane.f32.xlu0 %v2393
        %v2395 = vpop.xlane.xlu0 %2394
        %v2396 = vcvt.f32.s32 %v2395
        %v2397 = vcvt.f32.s32 %v2391
        %v2398 = vshll.u32 %v2397, 16
        %v2399 = vadd.s32 %v2398, %v2396
        %v2400 = vand.u32 %v2189, 65535
        %v2401 = vshra.s32 %v2189, 16
        %v2402 = vcvt.s32.f32 %v2400
        %v2403 = vcvt.s32.f32 %v2401
        %2404 = vmin.xlane.f32.xlu0 %v2403
        %v2405 = vpop.xlane.xlu0 %2404
        %vm2406 = vcmp.eq.f32.partialorder %v2403, %v2405
        %v2407 = vsel %vm2406, %v2402, inf
        %2408 = vmin.xlane.f32.xlu0 %v2407
        %v2409 = vpop.xlane.xlu0 %2408
        %v2410 = vcvt.f32.s32 %v2409
        %v2411 = vcvt.f32.s32 %v2405
        %v2412 = vshll.u32 %v2411, 16
        %v2413 = vadd.s32 %v2412, %v2410
        %vm2414 = vcmp.eq.s32.totalorder %v1117, %v2203
        %vm2415 = vcmp.eq.s32.totalorder %v1117, %v2217
        %vm2416 = vcmp.eq.s32.totalorder %v1117, %v2231
        %vm2417 = vcmp.eq.s32.totalorder %v1117, %v2245
        %vm2418 = vcmp.eq.s32.totalorder %v1117, %v2259
        %vm2419 = vcmp.eq.s32.totalorder %v1117, %v2273
        %vm2420 = vcmp.eq.s32.totalorder %v1117, %v2287
        %vm2421 = vcmp.eq.s32.totalorder %v1117, %v2301
        %vm2422 = vcmp.eq.s32.totalorder %v1117, %v2315
        %vm2423 = vcmp.eq.s32.totalorder %v1117, %v2329
        %vm2424 = vcmp.eq.s32.totalorder %v1117, %v2343
        %vm2425 = vcmp.eq.s32.totalorder %v1117, %v2357
        %vm2426 = vcmp.eq.s32.totalorder %v1117, %v2371
        %vm2427 = vcmp.eq.s32.totalorder %v1117, %v2385
        %vm2428 = vcmp.eq.s32.totalorder %v1117, %v2399
        %vm2429 = vcmp.eq.s32.totalorder %v1117, %v2413
        %v2430 = vsel %vm2414, 1.0, %v2094
        %v2431 = vsel %vm2415, 1.0, %v2095
        %v2432 = vsel %vm2416, 1.0, %v2096
        %v2433 = vsel %vm2417, 1.0, %v2097
        %v2434 = vsel %vm2418, 1.0, %v2098
        %v2435 = vsel %vm2419, 1.0, %v2099
        %v2436 = vsel %vm2420, 1.0, %v2100
        %v2437 = vsel %vm2421, 1.0, %v2101
        %v2438 = vsel %vm2422, 1.0, %v2102
        %v2439 = vsel %vm2423, 1.0, %v2103
        %v2440 = vsel %vm2424, 1.0, %v2104
        %v2441 = vsel %vm2425, 1.0, %v2105
        %v2442 = vsel %vm2426, 1.0, %v2106
        %v2443 = vsel %vm2427, 1.0, %v2107
        %v2444 = vsel %vm2428, 1.0, %v2108
        %v2445 = vsel %vm2429, 1.0, %v2109
        %v2446 = vsel %vm2414, -inf, %v2110
        %v2447 = vsel %vm2415, -inf, %v2111
        %v2448 = vsel %vm2416, -inf, %v2112
        %v2449 = vsel %vm2417, -inf, %v2113
        %v2450 = vsel %vm2418, -inf, %v2114
        %v2451 = vsel %vm2419, -inf, %v2115
        %v2452 = vsel %vm2420, -inf, %v2116
        %v2453 = vsel %vm2421, -inf, %v2117
        %v2454 = vsel %vm2422, -inf, %v2118
        %v2455 = vsel %vm2423, -inf, %v2119
        %v2456 = vsel %vm2424, -inf, %v2120
        %v2457 = vsel %vm2425, -inf, %v2121
        %v2458 = vsel %vm2426, -inf, %v2122
        %v2459 = vsel %vm2427, -inf, %v2123
        %v2460 = vsel %vm2428, -inf, %v2124
        %v2461 = vsel %vm2429, -inf, %v2125
        %2462 = vmax.xlane.f32.xlu0 %v2446
        %v2463 = vpop.xlane.xlu0 %2462
        %2464 = vmax.xlane.f32.xlu0 %v2447
        %v2465 = vpop.xlane.xlu0 %2464
        %2466 = vmax.xlane.f32.xlu0 %v2448
        %v2467 = vpop.xlane.xlu0 %2466
        %2468 = vmax.xlane.f32.xlu0 %v2449
        %v2469 = vpop.xlane.xlu0 %2468
        %2470 = vmax.xlane.f32.xlu0 %v2450
        %v2471 = vpop.xlane.xlu0 %2470
        %2472 = vmax.xlane.f32.xlu0 %v2451
        %v2473 = vpop.xlane.xlu0 %2472
        %2474 = vmax.xlane.f32.xlu0 %v2452
        %v2475 = vpop.xlane.xlu0 %2474
        %2476 = vmax.xlane.f32.xlu0 %v2453
        %v2477 = vpop.xlane.xlu0 %2476
        %2478 = vmax.xlane.f32.xlu0 %v2454
        %v2479 = vpop.xlane.xlu0 %2478
        %2480 = vmax.xlane.f32.xlu0 %v2455
        %v2481 = vpop.xlane.xlu0 %2480
        %2482 = vmax.xlane.f32.xlu0 %v2456
        %v2483 = vpop.xlane.xlu0 %2482
        %2484 = vmax.xlane.f32.xlu0 %v2457
        %v2485 = vpop.xlane.xlu0 %2484
        %2486 = vmax.xlane.f32.xlu0 %v2458
        %v2487 = vpop.xlane.xlu0 %2486
        %2488 = vmax.xlane.f32.xlu0 %v2459
        %v2489 = vpop.xlane.xlu0 %2488
        %2490 = vmax.xlane.f32.xlu0 %v2460
        %v2491 = vpop.xlane.xlu0 %2490
        %2492 = vmax.xlane.f32.xlu0 %v2461
        %v2493 = vpop.xlane.xlu0 %2492
        %vm2494 = vcmp.eq.f32.partialorder %v2446, %v2463
        %vm2495 = vcmp.eq.f32.partialorder %v2447, %v2465
        %vm2496 = vcmp.eq.f32.partialorder %v2448, %v2467
        %vm2497 = vcmp.eq.f32.partialorder %v2449, %v2469
        %vm2498 = vcmp.eq.f32.partialorder %v2450, %v2471
        %vm2499 = vcmp.eq.f32.partialorder %v2451, %v2473
        %vm2500 = vcmp.eq.f32.partialorder %v2452, %v2475
        %vm2501 = vcmp.eq.f32.partialorder %v2453, %v2477
        %vm2502 = vcmp.eq.f32.partialorder %v2454, %v2479
        %vm2503 = vcmp.eq.f32.partialorder %v2455, %v2481
        %vm2504 = vcmp.eq.f32.partialorder %v2456, %v2483
        %vm2505 = vcmp.eq.f32.partialorder %v2457, %v2485
        %vm2506 = vcmp.eq.f32.partialorder %v2458, %v2487
        %vm2507 = vcmp.eq.f32.partialorder %v2459, %v2489
        %vm2508 = vcmp.eq.f32.partialorder %v2460, %v2491
        %vm2509 = vcmp.eq.f32.partialorder %v2461, %v2493
        %v2510 = vsel %vm2494, %v1117, 128
        %v2511 = vsel %vm2495, %v1117, 128
        %v2512 = vsel %vm2496, %v1117, 128
        %v2513 = vsel %vm2497, %v1117, 128
        %v2514 = vsel %vm2498, %v1117, 128
        %v2515 = vsel %vm2499, %v1117, 128
        %v2516 = vsel %vm2500, %v1117, 128
        %v2517 = vsel %vm2501, %v1117, 128
        %v2518 = vsel %vm2502, %v1117, 128
        %v2519 = vsel %vm2503, %v1117, 128
        %v2520 = vsel %vm2504, %v1117, 128
        %v2521 = vsel %vm2505, %v1117, 128
        %v2522 = vsel %vm2506, %v1117, 128
        %v2523 = vsel %vm2507, %v1117, 128
        %v2524 = vsel %vm2508, %v1117, 128
        %v2525 = vsel %vm2509, %v1117, 128
        %v2526 = vand.u32 %v2510, 65535
        %v2527 = vshra.s32 %v2510, 16
        %v2528 = vcvt.s32.f32 %v2526
        %v2529 = vcvt.s32.f32 %v2527
        %2530 = vmin.xlane.f32.xlu0 %v2529
        %v2531 = vpop.xlane.xlu0 %2530
        %vm2532 = vcmp.eq.f32.partialorder %v2529, %v2531
        %v2533 = vsel %vm2532, %v2528, inf
        %2534 = vmin.xlane.f32.xlu0 %v2533
        %v2535 = vpop.xlane.xlu0 %2534
        %v2536 = vcvt.f32.s32 %v2535
        %v2537 = vcvt.f32.s32 %v2531
        %v2538 = vshll.u32 %v2537, 16
        %v2539 = vadd.s32 %v2538, %v2536
        %v2540 = vand.u32 %v2511, 65535
        %v2541 = vshra.s32 %v2511, 16
        %v2542 = vcvt.s32.f32 %v2540
        %v2543 = vcvt.s32.f32 %v2541
        %2544 = vmin.xlane.f32.xlu0 %v2543
        %v2545 = vpop.xlane.xlu0 %2544
        %vm2546 = vcmp.eq.f32.partialorder %v2543, %v2545
        %v2547 = vsel %vm2546, %v2542, inf
        %2548 = vmin.xlane.f32.xlu0 %v2547
        %v2549 = vpop.xlane.xlu0 %2548
        %v2550 = vcvt.f32.s32 %v2549
        %v2551 = vcvt.f32.s32 %v2545
        %v2552 = vshll.u32 %v2551, 16
        %v2553 = vadd.s32 %v2552, %v2550
        %v2554 = vand.u32 %v2512, 65535
        %v2555 = vshra.s32 %v2512, 16
        %v2556 = vcvt.s32.f32 %v2554
        %v2557 = vcvt.s32.f32 %v2555
        %2558 = vmin.xlane.f32.xlu0 %v2557
        %v2559 = vpop.xlane.xlu0 %2558
        %vm2560 = vcmp.eq.f32.partialorder %v2557, %v2559
        %v2561 = vsel %vm2560, %v2556, inf
        %2562 = vmin.xlane.f32.xlu0 %v2561
        %v2563 = vpop.xlane.xlu0 %2562
        %v2564 = vcvt.f32.s32 %v2563
        %v2565 = vcvt.f32.s32 %v2559
        %v2566 = vshll.u32 %v2565, 16
        %v2567 = vadd.s32 %v2566, %v2564
        %v2568 = vand.u32 %v2513, 65535
        %v2569 = vshra.s32 %v2513, 16
        %v2570 = vcvt.s32.f32 %v2568
        %v2571 = vcvt.s32.f32 %v2569
        %2572 = vmin.xlane.f32.xlu0 %v2571
        %v2573 = vpop.xlane.xlu0 %2572
        %vm2574 = vcmp.eq.f32.partialorder %v2571, %v2573
        %v2575 = vsel %vm2574, %v2570, inf
        %2576 = vmin.xlane.f32.xlu0 %v2575
        %v2577 = vpop.xlane.xlu0 %2576
        %v2578 = vcvt.f32.s32 %v2577
        %v2579 = vcvt.f32.s32 %v2573
        %v2580 = vshll.u32 %v2579, 16
        %v2581 = vadd.s32 %v2580, %v2578
        %v2582 = vand.u32 %v2514, 65535
        %v2583 = vshra.s32 %v2514, 16
        %v2584 = vcvt.s32.f32 %v2582
        %v2585 = vcvt.s32.f32 %v2583
        %2586 = vmin.xlane.f32.xlu0 %v2585
        %v2587 = vpop.xlane.xlu0 %2586
        %vm2588 = vcmp.eq.f32.partialorder %v2585, %v2587
        %v2589 = vsel %vm2588, %v2584, inf
        %2590 = vmin.xlane.f32.xlu0 %v2589
        %v2591 = vpop.xlane.xlu0 %2590
        %v2592 = vcvt.f32.s32 %v2591
        %v2593 = vcvt.f32.s32 %v2587
        %v2594 = vshll.u32 %v2593, 16
        %v2595 = vadd.s32 %v2594, %v2592
        %v2596 = vand.u32 %v2515, 65535
        %v2597 = vshra.s32 %v2515, 16
        %v2598 = vcvt.s32.f32 %v2596
        %v2599 = vcvt.s32.f32 %v2597
        %2600 = vmin.xlane.f32.xlu0 %v2599
        %v2601 = vpop.xlane.xlu0 %2600
        %vm2602 = vcmp.eq.f32.partialorder %v2599, %v2601
        %v2603 = vsel %vm2602, %v2598, inf
        %2604 = vmin.xlane.f32.xlu0 %v2603
        %v2605 = vpop.xlane.xlu0 %2604
        %v2606 = vcvt.f32.s32 %v2605
        %v2607 = vcvt.f32.s32 %v2601
        %v2608 = vshll.u32 %v2607, 16
        %v2609 = vadd.s32 %v2608, %v2606
        %v2610 = vand.u32 %v2516, 65535
        %v2611 = vshra.s32 %v2516, 16
        %v2612 = vcvt.s32.f32 %v2610
        %v2613 = vcvt.s32.f32 %v2611
        %2614 = vmin.xlane.f32.xlu0 %v2613
        %v2615 = vpop.xlane.xlu0 %2614
        %vm2616 = vcmp.eq.f32.partialorder %v2613, %v2615
        %v2617 = vsel %vm2616, %v2612, inf
        %2618 = vmin.xlane.f32.xlu0 %v2617
        %v2619 = vpop.xlane.xlu0 %2618
        %v2620 = vcvt.f32.s32 %v2619
        %v2621 = vcvt.f32.s32 %v2615
        %v2622 = vshll.u32 %v2621, 16
        %v2623 = vadd.s32 %v2622, %v2620
        %v2624 = vand.u32 %v2517, 65535
        %v2625 = vshra.s32 %v2517, 16
        %v2626 = vcvt.s32.f32 %v2624
        %v2627 = vcvt.s32.f32 %v2625
        %2628 = vmin.xlane.f32.xlu0 %v2627
        %v2629 = vpop.xlane.xlu0 %2628
        %vm2630 = vcmp.eq.f32.partialorder %v2627, %v2629
        %v2631 = vsel %vm2630, %v2626, inf
        %2632 = vmin.xlane.f32.xlu0 %v2631
        %v2633 = vpop.xlane.xlu0 %2632
        %v2634 = vcvt.f32.s32 %v2633
        %v2635 = vcvt.f32.s32 %v2629
        %v2636 = vshll.u32 %v2635, 16
        %v2637 = vadd.s32 %v2636, %v2634
        %v2638 = vand.u32 %v2518, 65535
        %v2639 = vshra.s32 %v2518, 16
        %v2640 = vcvt.s32.f32 %v2638
        %v2641 = vcvt.s32.f32 %v2639
        %2642 = vmin.xlane.f32.xlu0 %v2641
        %v2643 = vpop.xlane.xlu0 %2642
        %vm2644 = vcmp.eq.f32.partialorder %v2641, %v2643
        %v2645 = vsel %vm2644, %v2640, inf
        %2646 = vmin.xlane.f32.xlu0 %v2645
        %v2647 = vpop.xlane.xlu0 %2646
        %v2648 = vcvt.f32.s32 %v2647
        %v2649 = vcvt.f32.s32 %v2643
        %v2650 = vshll.u32 %v2649, 16
        %v2651 = vadd.s32 %v2650, %v2648
        %v2652 = vand.u32 %v2519, 65535
        %v2653 = vshra.s32 %v2519, 16
        %v2654 = vcvt.s32.f32 %v2652
        %v2655 = vcvt.s32.f32 %v2653
        %2656 = vmin.xlane.f32.xlu0 %v2655
        %v2657 = vpop.xlane.xlu0 %2656
        %vm2658 = vcmp.eq.f32.partialorder %v2655, %v2657
        %v2659 = vsel %vm2658, %v2654, inf
        %2660 = vmin.xlane.f32.xlu0 %v2659
        %v2661 = vpop.xlane.xlu0 %2660
        %v2662 = vcvt.f32.s32 %v2661
        %v2663 = vcvt.f32.s32 %v2657
        %v2664 = vshll.u32 %v2663, 16
        %v2665 = vadd.s32 %v2664, %v2662
        %v2666 = vand.u32 %v2520, 65535
        %v2667 = vshra.s32 %v2520, 16
        %v2668 = vcvt.s32.f32 %v2666
        %v2669 = vcvt.s32.f32 %v2667
        %2670 = vmin.xlane.f32.xlu0 %v2669
        %v2671 = vpop.xlane.xlu0 %2670
        %vm2672 = vcmp.eq.f32.partialorder %v2669, %v2671
        %v2673 = vsel %vm2672, %v2668, inf
        %2674 = vmin.xlane.f32.xlu0 %v2673
        %v2675 = vpop.xlane.xlu0 %2674
        %v2676 = vcvt.f32.s32 %v2675
        %v2677 = vcvt.f32.s32 %v2671
        %v2678 = vshll.u32 %v2677, 16
        %v2679 = vadd.s32 %v2678, %v2676
        %v2680 = vand.u32 %v2521, 65535
        %v2681 = vshra.s32 %v2521, 16
        %v2682 = vcvt.s32.f32 %v2680
        %v2683 = vcvt.s32.f32 %v2681
        %2684 = vmin.xlane.f32.xlu0 %v2683
        %v2685 = vpop.xlane.xlu0 %2684
        %vm2686 = vcmp.eq.f32.partialorder %v2683, %v2685
        %v2687 = vsel %vm2686, %v2682, inf
        %2688 = vmin.xlane.f32.xlu0 %v2687
        %v2689 = vpop.xlane.xlu0 %2688
        %v2690 = vcvt.f32.s32 %v2689
        %v2691 = vcvt.f32.s32 %v2685
        %v2692 = vshll.u32 %v2691, 16
        %v2693 = vadd.s32 %v2692, %v2690
        %v2694 = vand.u32 %v2522, 65535
        %v2695 = vshra.s32 %v2522, 16
        %v2696 = vcvt.s32.f32 %v2694
        %v2697 = vcvt.s32.f32 %v2695
        %2698 = vmin.xlane.f32.xlu0 %v2697
        %v2699 = vpop.xlane.xlu0 %2698
        %vm2700 = vcmp.eq.f32.partialorder %v2697, %v2699
        %v2701 = vsel %vm2700, %v2696, inf
        %2702 = vmin.xlane.f32.xlu0 %v2701
        %v2703 = vpop.xlane.xlu0 %2702
        %v2704 = vcvt.f32.s32 %v2703
        %v2705 = vcvt.f32.s32 %v2699
        %v2706 = vshll.u32 %v2705, 16
        %v2707 = vadd.s32 %v2706, %v2704
        %v2708 = vand.u32 %v2523, 65535
        %v2709 = vshra.s32 %v2523, 16
        %v2710 = vcvt.s32.f32 %v2708
        %v2711 = vcvt.s32.f32 %v2709
        %2712 = vmin.xlane.f32.xlu0 %v2711
        %v2713 = vpop.xlane.xlu0 %2712
        %vm2714 = vcmp.eq.f32.partialorder %v2711, %v2713
        %v2715 = vsel %vm2714, %v2710, inf
        %2716 = vmin.xlane.f32.xlu0 %v2715
        %v2717 = vpop.xlane.xlu0 %2716
        %v2718 = vcvt.f32.s32 %v2717
        %v2719 = vcvt.f32.s32 %v2713
        %v2720 = vshll.u32 %v2719, 16
        %v2721 = vadd.s32 %v2720, %v2718
        %v2722 = vand.u32 %v2524, 65535
        %v2723 = vshra.s32 %v2524, 16
        %v2724 = vcvt.s32.f32 %v2722
        %v2725 = vcvt.s32.f32 %v2723
        %2726 = vmin.xlane.f32.xlu0 %v2725
        %v2727 = vpop.xlane.xlu0 %2726
        %vm2728 = vcmp.eq.f32.partialorder %v2725, %v2727
        %v2729 = vsel %vm2728, %v2724, inf
        %2730 = vmin.xlane.f32.xlu0 %v2729
        %v2731 = vpop.xlane.xlu0 %2730
        %v2732 = vcvt.f32.s32 %v2731
        %v2733 = vcvt.f32.s32 %v2727
        %v2734 = vshll.u32 %v2733, 16
        %v2735 = vadd.s32 %v2734, %v2732
        %v2736 = vand.u32 %v2525, 65535
        %v2737 = vshra.s32 %v2525, 16
        %v2738 = vcvt.s32.f32 %v2736
        %v2739 = vcvt.s32.f32 %v2737
        %2740 = vmin.xlane.f32.xlu0 %v2739
        %v2741 = vpop.xlane.xlu0 %2740
        %vm2742 = vcmp.eq.f32.partialorder %v2739, %v2741
        %v2743 = vsel %vm2742, %v2738, inf
        %2744 = vmin.xlane.f32.xlu0 %v2743
        %v2745 = vpop.xlane.xlu0 %2744
        %v2746 = vcvt.f32.s32 %v2745
        %v2747 = vcvt.f32.s32 %v2741
        %v2748 = vshll.u32 %v2747, 16
        %v2749 = vadd.s32 %v2748, %v2746
        %vm2750 = vcmp.eq.s32.totalorder %v1117, %v2539
        %vm2751 = vcmp.eq.s32.totalorder %v1117, %v2553
        %vm2752 = vcmp.eq.s32.totalorder %v1117, %v2567
        %vm2753 = vcmp.eq.s32.totalorder %v1117, %v2581
        %vm2754 = vcmp.eq.s32.totalorder %v1117, %v2595
        %vm2755 = vcmp.eq.s32.totalorder %v1117, %v2609
        %vm2756 = vcmp.eq.s32.totalorder %v1117, %v2623
        %vm2757 = vcmp.eq.s32.totalorder %v1117, %v2637
        %vm2758 = vcmp.eq.s32.totalorder %v1117, %v2651
        %vm2759 = vcmp.eq.s32.totalorder %v1117, %v2665
        %vm2760 = vcmp.eq.s32.totalorder %v1117, %v2679
        %vm2761 = vcmp.eq.s32.totalorder %v1117, %v2693
        %vm2762 = vcmp.eq.s32.totalorder %v1117, %v2707
        %vm2763 = vcmp.eq.s32.totalorder %v1117, %v2721
        %vm2764 = vcmp.eq.s32.totalorder %v1117, %v2735
        %vm2765 = vcmp.eq.s32.totalorder %v1117, %v2749
        %v2766 = vsel %vm2750, 1.0, %v2430
        %v2767 = vsel %vm2751, 1.0, %v2431
        %v2768 = vsel %vm2752, 1.0, %v2432
        %v2769 = vsel %vm2753, 1.0, %v2433
        %v2770 = vsel %vm2754, 1.0, %v2434
        %v2771 = vsel %vm2755, 1.0, %v2435
        %v2772 = vsel %vm2756, 1.0, %v2436
        %v2773 = vsel %vm2757, 1.0, %v2437
        %v2774 = vsel %vm2758, 1.0, %v2438
        %v2775 = vsel %vm2759, 1.0, %v2439
        %v2776 = vsel %vm2760, 1.0, %v2440
        %v2777 = vsel %vm2761, 1.0, %v2441
        %v2778 = vsel %vm2762, 1.0, %v2442
        %v2779 = vsel %vm2763, 1.0, %v2443
        %v2780 = vsel %vm2764, 1.0, %v2444
        %v2781 = vsel %vm2765, 1.0, %v2445
        %v2782 = vsel %vm2750, -inf, %v2446
        %v2783 = vsel %vm2751, -inf, %v2447
        %v2784 = vsel %vm2752, -inf, %v2448
        %v2785 = vsel %vm2753, -inf, %v2449
        %v2786 = vsel %vm2754, -inf, %v2450
        %v2787 = vsel %vm2755, -inf, %v2451
        %v2788 = vsel %vm2756, -inf, %v2452
        %v2789 = vsel %vm2757, -inf, %v2453
        %v2790 = vsel %vm2758, -inf, %v2454
        %v2791 = vsel %vm2759, -inf, %v2455
        %v2792 = vsel %vm2760, -inf, %v2456
        %v2793 = vsel %vm2761, -inf, %v2457
        %v2794 = vsel %vm2762, -inf, %v2458
        %v2795 = vsel %vm2763, -inf, %v2459
        %v2796 = vsel %vm2764, -inf, %v2460
        %v2797 = vsel %vm2765, -inf, %v2461
        %2798 = vmax.xlane.f32.xlu0 %v2782
        %v2799 = vpop.xlane.xlu0 %2798
        %2800 = vmax.xlane.f32.xlu0 %v2783
        %v2801 = vpop.xlane.xlu0 %2800
        %2802 = vmax.xlane.f32.xlu0 %v2784
        %v2803 = vpop.xlane.xlu0 %2802
        %2804 = vmax.xlane.f32.xlu0 %v2785
        %v2805 = vpop.xlane.xlu0 %2804
        %2806 = vmax.xlane.f32.xlu0 %v2786
        %v2807 = vpop.xlane.xlu0 %2806
        %2808 = vmax.xlane.f32.xlu0 %v2787
        %v2809 = vpop.xlane.xlu0 %2808
        %2810 = vmax.xlane.f32.xlu0 %v2788
        %v2811 = vpop.xlane.xlu0 %2810
        %2812 = vmax.xlane.f32.xlu0 %v2789
        %v2813 = vpop.xlane.xlu0 %2812
        %2814 = vmax.xlane.f32.xlu0 %v2790
        %v2815 = vpop.xlane.xlu0 %2814
        %2816 = vmax.xlane.f32.xlu0 %v2791
        %v2817 = vpop.xlane.xlu0 %2816
        %2818 = vmax.xlane.f32.xlu0 %v2792
        %v2819 = vpop.xlane.xlu0 %2818
        %2820 = vmax.xlane.f32.xlu0 %v2793
        %v2821 = vpop.xlane.xlu0 %2820
        %2822 = vmax.xlane.f32.xlu0 %v2794
        %v2823 = vpop.xlane.xlu0 %2822
        %2824 = vmax.xlane.f32.xlu0 %v2795
        %v2825 = vpop.xlane.xlu0 %2824
        %2826 = vmax.xlane.f32.xlu0 %v2796
        %v2827 = vpop.xlane.xlu0 %2826
        %2828 = vmax.xlane.f32.xlu0 %v2797
        %v2829 = vpop.xlane.xlu0 %2828
        %vm2830 = vcmp.eq.f32.partialorder %v2782, %v2799
        %vm2831 = vcmp.eq.f32.partialorder %v2783, %v2801
        %vm2832 = vcmp.eq.f32.partialorder %v2784, %v2803
        %vm2833 = vcmp.eq.f32.partialorder %v2785, %v2805
        %vm2834 = vcmp.eq.f32.partialorder %v2786, %v2807
        %vm2835 = vcmp.eq.f32.partialorder %v2787, %v2809
        %vm2836 = vcmp.eq.f32.partialorder %v2788, %v2811
        %vm2837 = vcmp.eq.f32.partialorder %v2789, %v2813
        %vm2838 = vcmp.eq.f32.partialorder %v2790, %v2815
        %vm2839 = vcmp.eq.f32.partialorder %v2791, %v2817
        %vm2840 = vcmp.eq.f32.partialorder %v2792, %v2819
        %vm2841 = vcmp.eq.f32.partialorder %v2793, %v2821
        %vm2842 = vcmp.eq.f32.partialorder %v2794, %v2823
        %vm2843 = vcmp.eq.f32.partialorder %v2795, %v2825
        %vm2844 = vcmp.eq.f32.partialorder %v2796, %v2827
        %vm2845 = vcmp.eq.f32.partialorder %v2797, %v2829
        %v2846 = vsel %vm2830, %v1117, 128
        %v2847 = vsel %vm2831, %v1117, 128
        %v2848 = vsel %vm2832, %v1117, 128
        %v2849 = vsel %vm2833, %v1117, 128
        %v2850 = vsel %vm2834, %v1117, 128
        %v2851 = vsel %vm2835, %v1117, 128
        %v2852 = vsel %vm2836, %v1117, 128
        %v2853 = vsel %vm2837, %v1117, 128
        %v2854 = vsel %vm2838, %v1117, 128
        %v2855 = vsel %vm2839, %v1117, 128
        %v2856 = vsel %vm2840, %v1117, 128
        %v2857 = vsel %vm2841, %v1117, 128
        %v2858 = vsel %vm2842, %v1117, 128
        %v2859 = vsel %vm2843, %v1117, 128
        %v2860 = vsel %vm2844, %v1117, 128
        %v2861 = vsel %vm2845, %v1117, 128
        %v2862 = vand.u32 %v2846, 65535
        %v2863 = vshra.s32 %v2846, 16
        %v2864 = vcvt.s32.f32 %v2862
        %v2865 = vcvt.s32.f32 %v2863
        %2866 = vmin.xlane.f32.xlu0 %v2865
        %v2867 = vpop.xlane.xlu0 %2866
        %vm2868 = vcmp.eq.f32.partialorder %v2865, %v2867
        %v2869 = vsel %vm2868, %v2864, inf
        %2870 = vmin.xlane.f32.xlu0 %v2869
        %v2871 = vpop.xlane.xlu0 %2870
        %v2872 = vcvt.f32.s32 %v2871
        %v2873 = vcvt.f32.s32 %v2867
        %v2874 = vshll.u32 %v2873, 16
        %v2875 = vadd.s32 %v2874, %v2872
        %v2876 = vand.u32 %v2847, 65535
        %v2877 = vshra.s32 %v2847, 16
        %v2878 = vcvt.s32.f32 %v2876
        %v2879 = vcvt.s32.f32 %v2877
        %2880 = vmin.xlane.f32.xlu0 %v2879
        %v2881 = vpop.xlane.xlu0 %2880
        %vm2882 = vcmp.eq.f32.partialorder %v2879, %v2881
        %v2883 = vsel %vm2882, %v2878, inf
        %2884 = vmin.xlane.f32.xlu0 %v2883
        %v2885 = vpop.xlane.xlu0 %2884
        %v2886 = vcvt.f32.s32 %v2885
        %v2887 = vcvt.f32.s32 %v2881
        %v2888 = vshll.u32 %v2887, 16
        %v2889 = vadd.s32 %v2888, %v2886
        %v2890 = vand.u32 %v2848, 65535
        %v2891 = vshra.s32 %v2848, 16
        %v2892 = vcvt.s32.f32 %v2890
        %v2893 = vcvt.s32.f32 %v2891
        %2894 = vmin.xlane.f32.xlu0 %v2893
        %v2895 = vpop.xlane.xlu0 %2894
        %vm2896 = vcmp.eq.f32.partialorder %v2893, %v2895
        %v2897 = vsel %vm2896, %v2892, inf
        %2898 = vmin.xlane.f32.xlu0 %v2897
        %v2899 = vpop.xlane.xlu0 %2898
        %v2900 = vcvt.f32.s32 %v2899
        %v2901 = vcvt.f32.s32 %v2895
        %v2902 = vshll.u32 %v2901, 16
        %v2903 = vadd.s32 %v2902, %v2900
        %v2904 = vand.u32 %v2849, 65535
        %v2905 = vshra.s32 %v2849, 16
        %v2906 = vcvt.s32.f32 %v2904
        %v2907 = vcvt.s32.f32 %v2905
        %2908 = vmin.xlane.f32.xlu0 %v2907
        %v2909 = vpop.xlane.xlu0 %2908
        %vm2910 = vcmp.eq.f32.partialorder %v2907, %v2909
        %v2911 = vsel %vm2910, %v2906, inf
        %2912 = vmin.xlane.f32.xlu0 %v2911
        %v2913 = vpop.xlane.xlu0 %2912
        %v2914 = vcvt.f32.s32 %v2913
        %v2915 = vcvt.f32.s32 %v2909
        %v2916 = vshll.u32 %v2915, 16
        %v2917 = vadd.s32 %v2916, %v2914
        %v2918 = vand.u32 %v2850, 65535
        %v2919 = vshra.s32 %v2850, 16
        %v2920 = vcvt.s32.f32 %v2918
        %v2921 = vcvt.s32.f32 %v2919
        %2922 = vmin.xlane.f32.xlu0 %v2921
        %v2923 = vpop.xlane.xlu0 %2922
        %vm2924 = vcmp.eq.f32.partialorder %v2921, %v2923
        %v2925 = vsel %vm2924, %v2920, inf
        %2926 = vmin.xlane.f32.xlu0 %v2925
        %v2927 = vpop.xlane.xlu0 %2926
        %v2928 = vcvt.f32.s32 %v2927
        %v2929 = vcvt.f32.s32 %v2923
        %v2930 = vshll.u32 %v2929, 16
        %v2931 = vadd.s32 %v2930, %v2928
        %v2932 = vand.u32 %v2851, 65535
        %v2933 = vshra.s32 %v2851, 16
        %v2934 = vcvt.s32.f32 %v2932
        %v2935 = vcvt.s32.f32 %v2933
        %2936 = vmin.xlane.f32.xlu0 %v2935
        %v2937 = vpop.xlane.xlu0 %2936
        %vm2938 = vcmp.eq.f32.partialorder %v2935, %v2937
        %v2939 = vsel %vm2938, %v2934, inf
        %2940 = vmin.xlane.f32.xlu0 %v2939
        %v2941 = vpop.xlane.xlu0 %2940
        %v2942 = vcvt.f32.s32 %v2941
        %v2943 = vcvt.f32.s32 %v2937
        %v2944 = vshll.u32 %v2943, 16
        %v2945 = vadd.s32 %v2944, %v2942
        %v2946 = vand.u32 %v2852, 65535
        %v2947 = vshra.s32 %v2852, 16
        %v2948 = vcvt.s32.f32 %v2946
        %v2949 = vcvt.s32.f32 %v2947
        %2950 = vmin.xlane.f32.xlu0 %v2949
        %v2951 = vpop.xlane.xlu0 %2950
        %vm2952 = vcmp.eq.f32.partialorder %v2949, %v2951
        %v2953 = vsel %vm2952, %v2948, inf
        %2954 = vmin.xlane.f32.xlu0 %v2953
        %v2955 = vpop.xlane.xlu0 %2954
        %v2956 = vcvt.f32.s32 %v2955
        %v2957 = vcvt.f32.s32 %v2951
        %v2958 = vshll.u32 %v2957, 16
        %v2959 = vadd.s32 %v2958, %v2956
        %v2960 = vand.u32 %v2853, 65535
        %v2961 = vshra.s32 %v2853, 16
        %v2962 = vcvt.s32.f32 %v2960
        %v2963 = vcvt.s32.f32 %v2961
        %2964 = vmin.xlane.f32.xlu0 %v2963
        %v2965 = vpop.xlane.xlu0 %2964
        %vm2966 = vcmp.eq.f32.partialorder %v2963, %v2965
        %v2967 = vsel %vm2966, %v2962, inf
        %2968 = vmin.xlane.f32.xlu0 %v2967
        %v2969 = vpop.xlane.xlu0 %2968
        %v2970 = vcvt.f32.s32 %v2969
        %v2971 = vcvt.f32.s32 %v2965
        %v2972 = vshll.u32 %v2971, 16
        %v2973 = vadd.s32 %v2972, %v2970
        %v2974 = vand.u32 %v2854, 65535
        %v2975 = vshra.s32 %v2854, 16
        %v2976 = vcvt.s32.f32 %v2974
        %v2977 = vcvt.s32.f32 %v2975
        %2978 = vmin.xlane.f32.xlu0 %v2977
        %v2979 = vpop.xlane.xlu0 %2978
        %vm2980 = vcmp.eq.f32.partialorder %v2977, %v2979
        %v2981 = vsel %vm2980, %v2976, inf
        %2982 = vmin.xlane.f32.xlu0 %v2981
        %v2983 = vpop.xlane.xlu0 %2982
        %v2984 = vcvt.f32.s32 %v2983
        %v2985 = vcvt.f32.s32 %v2979
        %v2986 = vshll.u32 %v2985, 16
        %v2987 = vadd.s32 %v2986, %v2984
        %v2988 = vand.u32 %v2855, 65535
        %v2989 = vshra.s32 %v2855, 16
        %v2990 = vcvt.s32.f32 %v2988
        %v2991 = vcvt.s32.f32 %v2989
        %2992 = vmin.xlane.f32.xlu0 %v2991
        %v2993 = vpop.xlane.xlu0 %2992
        %vm2994 = vcmp.eq.f32.partialorder %v2991, %v2993
        %v2995 = vsel %vm2994, %v2990, inf
        %2996 = vmin.xlane.f32.xlu0 %v2995
        %v2997 = vpop.xlane.xlu0 %2996
        %v2998 = vcvt.f32.s32 %v2997
        %v2999 = vcvt.f32.s32 %v2993
        %v3000 = vshll.u32 %v2999, 16
        %v3001 = vadd.s32 %v3000, %v2998
        %v3002 = vand.u32 %v2856, 65535
        %v3003 = vshra.s32 %v2856, 16
        %v3004 = vcvt.s32.f32 %v3002
        %v3005 = vcvt.s32.f32 %v3003
        %3006 = vmin.xlane.f32.xlu0 %v3005
        %v3007 = vpop.xlane.xlu0 %3006
        %vm3008 = vcmp.eq.f32.partialorder %v3005, %v3007
        %v3009 = vsel %vm3008, %v3004, inf
        %3010 = vmin.xlane.f32.xlu0 %v3009
        %v3011 = vpop.xlane.xlu0 %3010
        %v3012 = vcvt.f32.s32 %v3011
        %v3013 = vcvt.f32.s32 %v3007
        %v3014 = vshll.u32 %v3013, 16
        %v3015 = vadd.s32 %v3014, %v3012
        %v3016 = vand.u32 %v2857, 65535
        %v3017 = vshra.s32 %v2857, 16
        %v3018 = vcvt.s32.f32 %v3016
        %v3019 = vcvt.s32.f32 %v3017
        %3020 = vmin.xlane.f32.xlu0 %v3019
        %v3021 = vpop.xlane.xlu0 %3020
        %vm3022 = vcmp.eq.f32.partialorder %v3019, %v3021
        %v3023 = vsel %vm3022, %v3018, inf
        %3024 = vmin.xlane.f32.xlu0 %v3023
        %v3025 = vpop.xlane.xlu0 %3024
        %v3026 = vcvt.f32.s32 %v3025
        %v3027 = vcvt.f32.s32 %v3021
        %v3028 = vshll.u32 %v3027, 16
        %v3029 = vadd.s32 %v3028, %v3026
        %v3030 = vand.u32 %v2858, 65535
        %v3031 = vshra.s32 %v2858, 16
        %v3032 = vcvt.s32.f32 %v3030
        %v3033 = vcvt.s32.f32 %v3031
        %3034 = vmin.xlane.f32.xlu0 %v3033
        %v3035 = vpop.xlane.xlu0 %3034
        %vm3036 = vcmp.eq.f32.partialorder %v3033, %v3035
        %v3037 = vsel %vm3036, %v3032, inf
        %3038 = vmin.xlane.f32.xlu0 %v3037
        %v3039 = vpop.xlane.xlu0 %3038
        %v3040 = vcvt.f32.s32 %v3039
        %v3041 = vcvt.f32.s32 %v3035
        %v3042 = vshll.u32 %v3041, 16
        %v3043 = vadd.s32 %v3042, %v3040
        %v3044 = vand.u32 %v2859, 65535
        %v3045 = vshra.s32 %v2859, 16
        %v3046 = vcvt.s32.f32 %v3044
        %v3047 = vcvt.s32.f32 %v3045
        %3048 = vmin.xlane.f32.xlu0 %v3047
        %v3049 = vpop.xlane.xlu0 %3048
        %vm3050 = vcmp.eq.f32.partialorder %v3047, %v3049
        %v3051 = vsel %vm3050, %v3046, inf
        %3052 = vmin.xlane.f32.xlu0 %v3051
        %v3053 = vpop.xlane.xlu0 %3052
        %v3054 = vcvt.f32.s32 %v3053
        %v3055 = vcvt.f32.s32 %v3049
        %v3056 = vshll.u32 %v3055, 16
        %v3057 = vadd.s32 %v3056, %v3054
        %v3058 = vand.u32 %v2860, 65535
        %v3059 = vshra.s32 %v2860, 16
        %v3060 = vcvt.s32.f32 %v3058
        %v3061 = vcvt.s32.f32 %v3059
        %3062 = vmin.xlane.f32.xlu0 %v3061
        %v3063 = vpop.xlane.xlu0 %3062
        %vm3064 = vcmp.eq.f32.partialorder %v3061, %v3063
        %v3065 = vsel %vm3064, %v3060, inf
        %3066 = vmin.xlane.f32.xlu0 %v3065
        %v3067 = vpop.xlane.xlu0 %3066
        %v3068 = vcvt.f32.s32 %v3067
        %v3069 = vcvt.f32.s32 %v3063
        %v3070 = vshll.u32 %v3069, 16
        %v3071 = vadd.s32 %v3070, %v3068
        %v3072 = vand.u32 %v2861, 65535
        %v3073 = vshra.s32 %v2861, 16
        %v3074 = vcvt.s32.f32 %v3072
        %v3075 = vcvt.s32.f32 %v3073
        %3076 = vmin.xlane.f32.xlu0 %v3075
        %v3077 = vpop.xlane.xlu0 %3076
        %vm3078 = vcmp.eq.f32.partialorder %v3075, %v3077
        %v3079 = vsel %vm3078, %v3074, inf
        %3080 = vmin.xlane.f32.xlu0 %v3079
        %v3081 = vpop.xlane.xlu0 %3080
        %v3082 = vcvt.f32.s32 %v3081
        %v3083 = vcvt.f32.s32 %v3077
        %v3084 = vshll.u32 %v3083, 16
        %v3085 = vadd.s32 %v3084, %v3082
        %vm3086 = vcmp.eq.s32.totalorder %v1117, %v2875
        %vm3087 = vcmp.eq.s32.totalorder %v1117, %v2889
        %vm3088 = vcmp.eq.s32.totalorder %v1117, %v2903
        %vm3089 = vcmp.eq.s32.totalorder %v1117, %v2917
        %vm3090 = vcmp.eq.s32.totalorder %v1117, %v2931
        %vm3091 = vcmp.eq.s32.totalorder %v1117, %v2945
        %vm3092 = vcmp.eq.s32.totalorder %v1117, %v2959
        %vm3093 = vcmp.eq.s32.totalorder %v1117, %v2973
        %vm3094 = vcmp.eq.s32.totalorder %v1117, %v2987
        %vm3095 = vcmp.eq.s32.totalorder %v1117, %v3001
        %vm3096 = vcmp.eq.s32.totalorder %v1117, %v3015
        %vm3097 = vcmp.eq.s32.totalorder %v1117, %v3029
        %vm3098 = vcmp.eq.s32.totalorder %v1117, %v3043
        %vm3099 = vcmp.eq.s32.totalorder %v1117, %v3057
        %vm3100 = vcmp.eq.s32.totalorder %v1117, %v3071
        %vm3101 = vcmp.eq.s32.totalorder %v1117, %v3085
        %v3102 = vsel %vm3086, 1.0, %v2766
        %v3103 = vsel %vm3087, 1.0, %v2767
        %v3104 = vsel %vm3088, 1.0, %v2768
        %v3105 = vsel %vm3089, 1.0, %v2769
        %v3106 = vsel %vm3090, 1.0, %v2770
        %v3107 = vsel %vm3091, 1.0, %v2771
        %v3108 = vsel %vm3092, 1.0, %v2772
        %v3109 = vsel %vm3093, 1.0, %v2773
        %v3110 = vsel %vm3094, 1.0, %v2774
        %v3111 = vsel %vm3095, 1.0, %v2775
        %v3112 = vsel %vm3096, 1.0, %v2776
        %v3113 = vsel %vm3097, 1.0, %v2777
        %v3114 = vsel %vm3098, 1.0, %v2778
        %v3115 = vsel %vm3099, 1.0, %v2779
        %v3116 = vsel %vm3100, 1.0, %v2780
        %v3117 = vsel %vm3101, 1.0, %v2781
        %v3118 = vsel %vm3086, -inf, %v2782
        %v3119 = vsel %vm3087, -inf, %v2783
        %v3120 = vsel %vm3088, -inf, %v2784
        %v3121 = vsel %vm3089, -inf, %v2785
        %v3122 = vsel %vm3090, -inf, %v2786
        %v3123 = vsel %vm3091, -inf, %v2787
        %v3124 = vsel %vm3092, -inf, %v2788
        %v3125 = vsel %vm3093, -inf, %v2789
        %v3126 = vsel %vm3094, -inf, %v2790
        %v3127 = vsel %vm3095, -inf, %v2791
        %v3128 = vsel %vm3096, -inf, %v2792
        %v3129 = vsel %vm3097, -inf, %v2793
        %v3130 = vsel %vm3098, -inf, %v2794
        %v3131 = vsel %vm3099, -inf, %v2795
        %v3132 = vsel %vm3100, -inf, %v2796
        %v3133 = vsel %vm3101, -inf, %v2797
        %3134 = vmax.xlane.f32.xlu0 %v3118
        %v3135 = vpop.xlane.xlu0 %3134
        %3136 = vmax.xlane.f32.xlu0 %v3119
        %v3137 = vpop.xlane.xlu0 %3136
        %3138 = vmax.xlane.f32.xlu0 %v3120
        %v3139 = vpop.xlane.xlu0 %3138
        %3140 = vmax.xlane.f32.xlu0 %v3121
        %v3141 = vpop.xlane.xlu0 %3140
        %3142 = vmax.xlane.f32.xlu0 %v3122
        %v3143 = vpop.xlane.xlu0 %3142
        %3144 = vmax.xlane.f32.xlu0 %v3123
        %v3145 = vpop.xlane.xlu0 %3144
        %3146 = vmax.xlane.f32.xlu0 %v3124
        %v3147 = vpop.xlane.xlu0 %3146
        %3148 = vmax.xlane.f32.xlu0 %v3125
        %v3149 = vpop.xlane.xlu0 %3148
        %3150 = vmax.xlane.f32.xlu0 %v3126
        %v3151 = vpop.xlane.xlu0 %3150
        %3152 = vmax.xlane.f32.xlu0 %v3127
        %v3153 = vpop.xlane.xlu0 %3152
        %3154 = vmax.xlane.f32.xlu0 %v3128
        %v3155 = vpop.xlane.xlu0 %3154
        %3156 = vmax.xlane.f32.xlu0 %v3129
        %v3157 = vpop.xlane.xlu0 %3156
        %3158 = vmax.xlane.f32.xlu0 %v3130
        %v3159 = vpop.xlane.xlu0 %3158
        %3160 = vmax.xlane.f32.xlu0 %v3131
        %v3161 = vpop.xlane.xlu0 %3160
        %3162 = vmax.xlane.f32.xlu0 %v3132
        %v3163 = vpop.xlane.xlu0 %3162
        %3164 = vmax.xlane.f32.xlu0 %v3133
        %v3165 = vpop.xlane.xlu0 %3164
        %vm3166 = vcmp.eq.f32.partialorder %v3118, %v3135
        %vm3167 = vcmp.eq.f32.partialorder %v3119, %v3137
        %vm3168 = vcmp.eq.f32.partialorder %v3120, %v3139
        %vm3169 = vcmp.eq.f32.partialorder %v3121, %v3141
        %vm3170 = vcmp.eq.f32.partialorder %v3122, %v3143
        %vm3171 = vcmp.eq.f32.partialorder %v3123, %v3145
        %vm3172 = vcmp.eq.f32.partialorder %v3124, %v3147
        %vm3173 = vcmp.eq.f32.partialorder %v3125, %v3149
        %vm3174 = vcmp.eq.f32.partialorder %v3126, %v3151
        %vm3175 = vcmp.eq.f32.partialorder %v3127, %v3153
        %vm3176 = vcmp.eq.f32.partialorder %v3128, %v3155
        %vm3177 = vcmp.eq.f32.partialorder %v3129, %v3157
        %vm3178 = vcmp.eq.f32.partialorder %v3130, %v3159
        %vm3179 = vcmp.eq.f32.partialorder %v3131, %v3161
        %vm3180 = vcmp.eq.f32.partialorder %v3132, %v3163
        %vm3181 = vcmp.eq.f32.partialorder %v3133, %v3165
        %v3182 = vsel %vm3166, %v1117, 128
        %v3183 = vsel %vm3167, %v1117, 128
        %v3184 = vsel %vm3168, %v1117, 128
        %v3185 = vsel %vm3169, %v1117, 128
        %v3186 = vsel %vm3170, %v1117, 128
        %v3187 = vsel %vm3171, %v1117, 128
        %v3188 = vsel %vm3172, %v1117, 128
        %v3189 = vsel %vm3173, %v1117, 128
        %v3190 = vsel %vm3174, %v1117, 128
        %v3191 = vsel %vm3175, %v1117, 128
        %v3192 = vsel %vm3176, %v1117, 128
        %v3193 = vsel %vm3177, %v1117, 128
        %v3194 = vsel %vm3178, %v1117, 128
        %v3195 = vsel %vm3179, %v1117, 128
        %v3196 = vsel %vm3180, %v1117, 128
        %v3197 = vsel %vm3181, %v1117, 128
        %v3198 = vand.u32 %v3182, 65535
        %v3199 = vshra.s32 %v3182, 16
        %v3200 = vcvt.s32.f32 %v3198
        %v3201 = vcvt.s32.f32 %v3199
        %3202 = vmin.xlane.f32.xlu0 %v3201
        %v3203 = vpop.xlane.xlu0 %3202
        %vm3204 = vcmp.eq.f32.partialorder %v3201, %v3203
        %v3205 = vsel %vm3204, %v3200, inf
        %3206 = vmin.xlane.f32.xlu0 %v3205
        %v3207 = vpop.xlane.xlu0 %3206
        %v3208 = vcvt.f32.s32 %v3207
        %v3209 = vcvt.f32.s32 %v3203
        %v3210 = vshll.u32 %v3209, 16
        %v3211 = vadd.s32 %v3210, %v3208
        %v3212 = vand.u32 %v3183, 65535
        %v3213 = vshra.s32 %v3183, 16
        %v3214 = vcvt.s32.f32 %v3212
        %v3215 = vcvt.s32.f32 %v3213
        %3216 = vmin.xlane.f32.xlu0 %v3215
        %v3217 = vpop.xlane.xlu0 %3216
        %vm3218 = vcmp.eq.f32.partialorder %v3215, %v3217
        %v3219 = vsel %vm3218, %v3214, inf
        %3220 = vmin.xlane.f32.xlu0 %v3219
        %v3221 = vpop.xlane.xlu0 %3220
        %v3222 = vcvt.f32.s32 %v3221
        %v3223 = vcvt.f32.s32 %v3217
        %v3224 = vshll.u32 %v3223, 16
        %v3225 = vadd.s32 %v3224, %v3222
        %v3226 = vand.u32 %v3184, 65535
        %v3227 = vshra.s32 %v3184, 16
        %v3228 = vcvt.s32.f32 %v3226
        %v3229 = vcvt.s32.f32 %v3227
        %3230 = vmin.xlane.f32.xlu0 %v3229
        %v3231 = vpop.xlane.xlu0 %3230
        %vm3232 = vcmp.eq.f32.partialorder %v3229, %v3231
        %v3233 = vsel %vm3232, %v3228, inf
        %3234 = vmin.xlane.f32.xlu0 %v3233
        %v3235 = vpop.xlane.xlu0 %3234
        %v3236 = vcvt.f32.s32 %v3235
        %v3237 = vcvt.f32.s32 %v3231
        %v3238 = vshll.u32 %v3237, 16
        %v3239 = vadd.s32 %v3238, %v3236
        %v3240 = vand.u32 %v3185, 65535
        %v3241 = vshra.s32 %v3185, 16
        %v3242 = vcvt.s32.f32 %v3240
        %v3243 = vcvt.s32.f32 %v3241
        %3244 = vmin.xlane.f32.xlu0 %v3243
        %v3245 = vpop.xlane.xlu0 %3244
        %vm3246 = vcmp.eq.f32.partialorder %v3243, %v3245
        %v3247 = vsel %vm3246, %v3242, inf
        %3248 = vmin.xlane.f32.xlu0 %v3247
        %v3249 = vpop.xlane.xlu0 %3248
        %v3250 = vcvt.f32.s32 %v3249
        %v3251 = vcvt.f32.s32 %v3245
        %v3252 = vshll.u32 %v3251, 16
        %v3253 = vadd.s32 %v3252, %v3250
        %v3254 = vand.u32 %v3186, 65535
        %v3255 = vshra.s32 %v3186, 16
        %v3256 = vcvt.s32.f32 %v3254
        %v3257 = vcvt.s32.f32 %v3255
        %3258 = vmin.xlane.f32.xlu0 %v3257
        %v3259 = vpop.xlane.xlu0 %3258
        %vm3260 = vcmp.eq.f32.partialorder %v3257, %v3259
        %v3261 = vsel %vm3260, %v3256, inf
        %3262 = vmin.xlane.f32.xlu0 %v3261
        %v3263 = vpop.xlane.xlu0 %3262
        %v3264 = vcvt.f32.s32 %v3263
        %v3265 = vcvt.f32.s32 %v3259
        %v3266 = vshll.u32 %v3265, 16
        %v3267 = vadd.s32 %v3266, %v3264
        %v3268 = vand.u32 %v3187, 65535
        %v3269 = vshra.s32 %v3187, 16
        %v3270 = vcvt.s32.f32 %v3268
        %v3271 = vcvt.s32.f32 %v3269
        %3272 = vmin.xlane.f32.xlu0 %v3271
        %v3273 = vpop.xlane.xlu0 %3272
        %vm3274 = vcmp.eq.f32.partialorder %v3271, %v3273
        %v3275 = vsel %vm3274, %v3270, inf
        %3276 = vmin.xlane.f32.xlu0 %v3275
        %v3277 = vpop.xlane.xlu0 %3276
        %v3278 = vcvt.f32.s32 %v3277
        %v3279 = vcvt.f32.s32 %v3273
        %v3280 = vshll.u32 %v3279, 16
        %v3281 = vadd.s32 %v3280, %v3278
        %v3282 = vand.u32 %v3188, 65535
        %v3283 = vshra.s32 %v3188, 16
        %v3284 = vcvt.s32.f32 %v3282
        %v3285 = vcvt.s32.f32 %v3283
        %3286 = vmin.xlane.f32.xlu0 %v3285
        %v3287 = vpop.xlane.xlu0 %3286
        %vm3288 = vcmp.eq.f32.partialorder %v3285, %v3287
        %v3289 = vsel %vm3288, %v3284, inf
        %3290 = vmin.xlane.f32.xlu0 %v3289
        %v3291 = vpop.xlane.xlu0 %3290
        %v3292 = vcvt.f32.s32 %v3291
        %v3293 = vcvt.f32.s32 %v3287
        %v3294 = vshll.u32 %v3293, 16
        %v3295 = vadd.s32 %v3294, %v3292
        %v3296 = vand.u32 %v3189, 65535
        %v3297 = vshra.s32 %v3189, 16
        %v3298 = vcvt.s32.f32 %v3296
        %v3299 = vcvt.s32.f32 %v3297
        %3300 = vmin.xlane.f32.xlu0 %v3299
        %v3301 = vpop.xlane.xlu0 %3300
        %vm3302 = vcmp.eq.f32.partialorder %v3299, %v3301
        %v3303 = vsel %vm3302, %v3298, inf
        %3304 = vmin.xlane.f32.xlu0 %v3303
        %v3305 = vpop.xlane.xlu0 %3304
        %v3306 = vcvt.f32.s32 %v3305
        %v3307 = vcvt.f32.s32 %v3301
        %v3308 = vshll.u32 %v3307, 16
        %v3309 = vadd.s32 %v3308, %v3306
        %v3310 = vand.u32 %v3190, 65535
        %v3311 = vshra.s32 %v3190, 16
        %v3312 = vcvt.s32.f32 %v3310
        %v3313 = vcvt.s32.f32 %v3311
        %3314 = vmin.xlane.f32.xlu0 %v3313
        %v3315 = vpop.xlane.xlu0 %3314
        %vm3316 = vcmp.eq.f32.partialorder %v3313, %v3315
        %v3317 = vsel %vm3316, %v3312, inf
        %3318 = vmin.xlane.f32.xlu0 %v3317
        %v3319 = vpop.xlane.xlu0 %3318
        %v3320 = vcvt.f32.s32 %v3319
        %v3321 = vcvt.f32.s32 %v3315
        %v3322 = vshll.u32 %v3321, 16
        %v3323 = vadd.s32 %v3322, %v3320
        %v3324 = vand.u32 %v3191, 65535
        %v3325 = vshra.s32 %v3191, 16
        %v3326 = vcvt.s32.f32 %v3324
        %v3327 = vcvt.s32.f32 %v3325
        %3328 = vmin.xlane.f32.xlu0 %v3327
        %v3329 = vpop.xlane.xlu0 %3328
        %vm3330 = vcmp.eq.f32.partialorder %v3327, %v3329
        %v3331 = vsel %vm3330, %v3326, inf
        %3332 = vmin.xlane.f32.xlu0 %v3331
        %v3333 = vpop.xlane.xlu0 %3332
        %v3334 = vcvt.f32.s32 %v3333
        %v3335 = vcvt.f32.s32 %v3329
        %v3336 = vshll.u32 %v3335, 16
        %v3337 = vadd.s32 %v3336, %v3334
        %v3338 = vand.u32 %v3192, 65535
        %v3339 = vshra.s32 %v3192, 16
        %v3340 = vcvt.s32.f32 %v3338
        %v3341 = vcvt.s32.f32 %v3339
        %3342 = vmin.xlane.f32.xlu0 %v3341
        %v3343 = vpop.xlane.xlu0 %3342
        %vm3344 = vcmp.eq.f32.partialorder %v3341, %v3343
        %v3345 = vsel %vm3344, %v3340, inf
        %3346 = vmin.xlane.f32.xlu0 %v3345
        %v3347 = vpop.xlane.xlu0 %3346
        %v3348 = vcvt.f32.s32 %v3347
        %v3349 = vcvt.f32.s32 %v3343
        %v3350 = vshll.u32 %v3349, 16
        %v3351 = vadd.s32 %v3350, %v3348
        %v3352 = vand.u32 %v3193, 65535
        %v3353 = vshra.s32 %v3193, 16
        %v3354 = vcvt.s32.f32 %v3352
        %v3355 = vcvt.s32.f32 %v3353
        %3356 = vmin.xlane.f32.xlu0 %v3355
        %v3357 = vpop.xlane.xlu0 %3356
        %vm3358 = vcmp.eq.f32.partialorder %v3355, %v3357
        %v3359 = vsel %vm3358, %v3354, inf
        %3360 = vmin.xlane.f32.xlu0 %v3359
        %v3361 = vpop.xlane.xlu0 %3360
        %v3362 = vcvt.f32.s32 %v3361
        %v3363 = vcvt.f32.s32 %v3357
        %v3364 = vshll.u32 %v3363, 16
        %v3365 = vadd.s32 %v3364, %v3362
        %v3366 = vand.u32 %v3194, 65535
        %v3367 = vshra.s32 %v3194, 16
        %v3368 = vcvt.s32.f32 %v3366
        %v3369 = vcvt.s32.f32 %v3367
        %3370 = vmin.xlane.f32.xlu0 %v3369
        %v3371 = vpop.xlane.xlu0 %3370
        %vm3372 = vcmp.eq.f32.partialorder %v3369, %v3371
        %v3373 = vsel %vm3372, %v3368, inf
        %3374 = vmin.xlane.f32.xlu0 %v3373
        %v3375 = vpop.xlane.xlu0 %3374
        %v3376 = vcvt.f32.s32 %v3375
        %v3377 = vcvt.f32.s32 %v3371
        %v3378 = vshll.u32 %v3377, 16
        %v3379 = vadd.s32 %v3378, %v3376
        %v3380 = vand.u32 %v3195, 65535
        %v3381 = vshra.s32 %v3195, 16
        %v3382 = vcvt.s32.f32 %v3380
        %v3383 = vcvt.s32.f32 %v3381
        %3384 = vmin.xlane.f32.xlu0 %v3383
        %v3385 = vpop.xlane.xlu0 %3384
        %vm3386 = vcmp.eq.f32.partialorder %v3383, %v3385
        %v3387 = vsel %vm3386, %v3382, inf
        %3388 = vmin.xlane.f32.xlu0 %v3387
        %v3389 = vpop.xlane.xlu0 %3388
        %v3390 = vcvt.f32.s32 %v3389
        %v3391 = vcvt.f32.s32 %v3385
        %v3392 = vshll.u32 %v3391, 16
        %v3393 = vadd.s32 %v3392, %v3390
        %v3394 = vand.u32 %v3196, 65535
        %v3395 = vshra.s32 %v3196, 16
        %v3396 = vcvt.s32.f32 %v3394
        %v3397 = vcvt.s32.f32 %v3395
        %3398 = vmin.xlane.f32.xlu0 %v3397
        %v3399 = vpop.xlane.xlu0 %3398
        %vm3400 = vcmp.eq.f32.partialorder %v3397, %v3399
        %v3401 = vsel %vm3400, %v3396, inf
        %3402 = vmin.xlane.f32.xlu0 %v3401
        %v3403 = vpop.xlane.xlu0 %3402
        %v3404 = vcvt.f32.s32 %v3403
        %v3405 = vcvt.f32.s32 %v3399
        %v3406 = vshll.u32 %v3405, 16
        %v3407 = vadd.s32 %v3406, %v3404
        %v3408 = vand.u32 %v3197, 65535
        %v3409 = vshra.s32 %v3197, 16
        %v3410 = vcvt.s32.f32 %v3408
        %v3411 = vcvt.s32.f32 %v3409
        %3412 = vmin.xlane.f32.xlu0 %v3411
        %v3413 = vpop.xlane.xlu0 %3412
        %vm3414 = vcmp.eq.f32.partialorder %v3411, %v3413
        %v3415 = vsel %vm3414, %v3410, inf
        %3416 = vmin.xlane.f32.xlu0 %v3415
        %v3417 = vpop.xlane.xlu0 %3416
        %v3418 = vcvt.f32.s32 %v3417
        %v3419 = vcvt.f32.s32 %v3413
        %v3420 = vshll.u32 %v3419, 16
        %v3421 = vadd.s32 %v3420, %v3418
        %vm3422 = vcmp.eq.s32.totalorder %v1117, %v3211
        %vm3423 = vcmp.eq.s32.totalorder %v1117, %v3225
        %vm3424 = vcmp.eq.s32.totalorder %v1117, %v3239
        %vm3425 = vcmp.eq.s32.totalorder %v1117, %v3253
        %vm3426 = vcmp.eq.s32.totalorder %v1117, %v3267
        %vm3427 = vcmp.eq.s32.totalorder %v1117, %v3281
        %vm3428 = vcmp.eq.s32.totalorder %v1117, %v3295
        %vm3429 = vcmp.eq.s32.totalorder %v1117, %v3309
        %vm3430 = vcmp.eq.s32.totalorder %v1117, %v3323
        %vm3431 = vcmp.eq.s32.totalorder %v1117, %v3337
        %vm3432 = vcmp.eq.s32.totalorder %v1117, %v3351
        %vm3433 = vcmp.eq.s32.totalorder %v1117, %v3365
        %vm3434 = vcmp.eq.s32.totalorder %v1117, %v3379
        %vm3435 = vcmp.eq.s32.totalorder %v1117, %v3393
        %vm3436 = vcmp.eq.s32.totalorder %v1117, %v3407
        %vm3437 = vcmp.eq.s32.totalorder %v1117, %v3421
        %v3438 = vsel %vm3422, 1.0, %v3102
        %v3439 = vsel %vm3423, 1.0, %v3103
        %v3440 = vsel %vm3424, 1.0, %v3104
        %v3441 = vsel %vm3425, 1.0, %v3105
        %v3442 = vsel %vm3426, 1.0, %v3106
        %v3443 = vsel %vm3427, 1.0, %v3107
        %v3444 = vsel %vm3428, 1.0, %v3108
        %v3445 = vsel %vm3429, 1.0, %v3109
        %v3446 = vsel %vm3430, 1.0, %v3110
        %v3447 = vsel %vm3431, 1.0, %v3111
        %v3448 = vsel %vm3432, 1.0, %v3112
        %v3449 = vsel %vm3433, 1.0, %v3113
        %v3450 = vsel %vm3434, 1.0, %v3114
        %v3451 = vsel %vm3435, 1.0, %v3115
        %v3452 = vsel %vm3436, 1.0, %v3116
        %v3453 = vsel %vm3437, 1.0, %v3117
        %v3454 = vsel %vm3422, -inf, %v3118
        %v3455 = vsel %vm3423, -inf, %v3119
        %v3456 = vsel %vm3424, -inf, %v3120
        %v3457 = vsel %vm3425, -inf, %v3121
        %v3458 = vsel %vm3426, -inf, %v3122
        %v3459 = vsel %vm3427, -inf, %v3123
        %v3460 = vsel %vm3428, -inf, %v3124
        %v3461 = vsel %vm3429, -inf, %v3125
        %v3462 = vsel %vm3430, -inf, %v3126
        %v3463 = vsel %vm3431, -inf, %v3127
        %v3464 = vsel %vm3432, -inf, %v3128
        %v3465 = vsel %vm3433, -inf, %v3129
        %v3466 = vsel %vm3434, -inf, %v3130
        %v3467 = vsel %vm3435, -inf, %v3131
        %v3468 = vsel %vm3436, -inf, %v3132
        %v3469 = vsel %vm3437, -inf, %v3133
        %3470 = vmax.xlane.f32.xlu0 %v3454
        %v3471 = vpop.xlane.xlu0 %3470
        %3472 = vmax.xlane.f32.xlu0 %v3455
        %v3473 = vpop.xlane.xlu0 %3472
        %3474 = vmax.xlane.f32.xlu0 %v3456
        %v3475 = vpop.xlane.xlu0 %3474
        %3476 = vmax.xlane.f32.xlu0 %v3457
        %v3477 = vpop.xlane.xlu0 %3476
        %3478 = vmax.xlane.f32.xlu0 %v3458
        %v3479 = vpop.xlane.xlu0 %3478
        %3480 = vmax.xlane.f32.xlu0 %v3459
        %v3481 = vpop.xlane.xlu0 %3480
        %3482 = vmax.xlane.f32.xlu0 %v3460
        %v3483 = vpop.xlane.xlu0 %3482
        %3484 = vmax.xlane.f32.xlu0 %v3461
        %v3485 = vpop.xlane.xlu0 %3484
        %3486 = vmax.xlane.f32.xlu0 %v3462
        %v3487 = vpop.xlane.xlu0 %3486
        %3488 = vmax.xlane.f32.xlu0 %v3463
        %v3489 = vpop.xlane.xlu0 %3488
        %3490 = vmax.xlane.f32.xlu0 %v3464
        %v3491 = vpop.xlane.xlu0 %3490
        %3492 = vmax.xlane.f32.xlu0 %v3465
        %v3493 = vpop.xlane.xlu0 %3492
        %3494 = vmax.xlane.f32.xlu0 %v3466
        %v3495 = vpop.xlane.xlu0 %3494
        %3496 = vmax.xlane.f32.xlu0 %v3467
        %v3497 = vpop.xlane.xlu0 %3496
        %3498 = vmax.xlane.f32.xlu0 %v3468
        %v3499 = vpop.xlane.xlu0 %3498
        %3500 = vmax.xlane.f32.xlu0 %v3469
        %v3501 = vpop.xlane.xlu0 %3500
        %vm3502 = vcmp.eq.f32.partialorder %v3454, %v3471
        %vm3503 = vcmp.eq.f32.partialorder %v3455, %v3473
        %vm3504 = vcmp.eq.f32.partialorder %v3456, %v3475
        %vm3505 = vcmp.eq.f32.partialorder %v3457, %v3477
        %vm3506 = vcmp.eq.f32.partialorder %v3458, %v3479
        %vm3507 = vcmp.eq.f32.partialorder %v3459, %v3481
        %vm3508 = vcmp.eq.f32.partialorder %v3460, %v3483
        %vm3509 = vcmp.eq.f32.partialorder %v3461, %v3485
        %vm3510 = vcmp.eq.f32.partialorder %v3462, %v3487
        %vm3511 = vcmp.eq.f32.partialorder %v3463, %v3489
        %vm3512 = vcmp.eq.f32.partialorder %v3464, %v3491
        %vm3513 = vcmp.eq.f32.partialorder %v3465, %v3493
        %vm3514 = vcmp.eq.f32.partialorder %v3466, %v3495
        %vm3515 = vcmp.eq.f32.partialorder %v3467, %v3497
        %vm3516 = vcmp.eq.f32.partialorder %v3468, %v3499
        %vm3517 = vcmp.eq.f32.partialorder %v3469, %v3501
        %v3518 = vsel %vm3502, %v1117, 128
        %v3519 = vsel %vm3503, %v1117, 128
        %v3520 = vsel %vm3504, %v1117, 128
        %v3521 = vsel %vm3505, %v1117, 128
        %v3522 = vsel %vm3506, %v1117, 128
        %v3523 = vsel %vm3507, %v1117, 128
        %v3524 = vsel %vm3508, %v1117, 128
        %v3525 = vsel %vm3509, %v1117, 128
        %v3526 = vsel %vm3510, %v1117, 128
        %v3527 = vsel %vm3511, %v1117, 128
        %v3528 = vsel %vm3512, %v1117, 128
        %v3529 = vsel %vm3513, %v1117, 128
        %v3530 = vsel %vm3514, %v1117, 128
        %v3531 = vsel %vm3515, %v1117, 128
        %v3532 = vsel %vm3516, %v1117, 128
        %v3533 = vsel %vm3517, %v1117, 128
        %v3534 = vand.u32 %v3518, 65535
        %v3535 = vshra.s32 %v3518, 16
        %v3536 = vcvt.s32.f32 %v3534
        %v3537 = vcvt.s32.f32 %v3535
        %3538 = vmin.xlane.f32.xlu0 %v3537
        %v3539 = vpop.xlane.xlu0 %3538
        %vm3540 = vcmp.eq.f32.partialorder %v3537, %v3539
        %v3541 = vsel %vm3540, %v3536, inf
        %3542 = vmin.xlane.f32.xlu0 %v3541
        %v3543 = vpop.xlane.xlu0 %3542
        %v3544 = vcvt.f32.s32 %v3543
        %v3545 = vcvt.f32.s32 %v3539
        %v3546 = vshll.u32 %v3545, 16
        %v3547 = vadd.s32 %v3546, %v3544
        %v3548 = vand.u32 %v3519, 65535
        %v3549 = vshra.s32 %v3519, 16
        %v3550 = vcvt.s32.f32 %v3548
        %v3551 = vcvt.s32.f32 %v3549
        %3552 = vmin.xlane.f32.xlu0 %v3551
        %v3553 = vpop.xlane.xlu0 %3552
        %vm3554 = vcmp.eq.f32.partialorder %v3551, %v3553
        %v3555 = vsel %vm3554, %v3550, inf
        %3556 = vmin.xlane.f32.xlu0 %v3555
        %v3557 = vpop.xlane.xlu0 %3556
        %v3558 = vcvt.f32.s32 %v3557
        %v3559 = vcvt.f32.s32 %v3553
        %v3560 = vshll.u32 %v3559, 16
        %v3561 = vadd.s32 %v3560, %v3558
        %v3562 = vand.u32 %v3520, 65535
        %v3563 = vshra.s32 %v3520, 16
        %v3564 = vcvt.s32.f32 %v3562
        %v3565 = vcvt.s32.f32 %v3563
        %3566 = vmin.xlane.f32.xlu0 %v3565
        %v3567 = vpop.xlane.xlu0 %3566
        %vm3568 = vcmp.eq.f32.partialorder %v3565, %v3567
        %v3569 = vsel %vm3568, %v3564, inf
        %3570 = vmin.xlane.f32.xlu0 %v3569
        %v3571 = vpop.xlane.xlu0 %3570
        %v3572 = vcvt.f32.s32 %v3571
        %v3573 = vcvt.f32.s32 %v3567
        %v3574 = vshll.u32 %v3573, 16
        %v3575 = vadd.s32 %v3574, %v3572
        %v3576 = vand.u32 %v3521, 65535
        %v3577 = vshra.s32 %v3521, 16
        %v3578 = vcvt.s32.f32 %v3576
        %v3579 = vcvt.s32.f32 %v3577
        %3580 = vmin.xlane.f32.xlu0 %v3579
        %v3581 = vpop.xlane.xlu0 %3580
        %vm3582 = vcmp.eq.f32.partialorder %v3579, %v3581
        %v3583 = vsel %vm3582, %v3578, inf
        %3584 = vmin.xlane.f32.xlu0 %v3583
        %v3585 = vpop.xlane.xlu0 %3584
        %v3586 = vcvt.f32.s32 %v3585
        %v3587 = vcvt.f32.s32 %v3581
        %v3588 = vshll.u32 %v3587, 16
        %v3589 = vadd.s32 %v3588, %v3586
        %v3590 = vand.u32 %v3522, 65535
        %v3591 = vshra.s32 %v3522, 16
        %v3592 = vcvt.s32.f32 %v3590
        %v3593 = vcvt.s32.f32 %v3591
        %3594 = vmin.xlane.f32.xlu0 %v3593
        %v3595 = vpop.xlane.xlu0 %3594
        %vm3596 = vcmp.eq.f32.partialorder %v3593, %v3595
        %v3597 = vsel %vm3596, %v3592, inf
        %3598 = vmin.xlane.f32.xlu0 %v3597
        %v3599 = vpop.xlane.xlu0 %3598
        %v3600 = vcvt.f32.s32 %v3599
        %v3601 = vcvt.f32.s32 %v3595
        %v3602 = vshll.u32 %v3601, 16
        %v3603 = vadd.s32 %v3602, %v3600
        %v3604 = vand.u32 %v3523, 65535
        %v3605 = vshra.s32 %v3523, 16
        %v3606 = vcvt.s32.f32 %v3604
        %v3607 = vcvt.s32.f32 %v3605
        %3608 = vmin.xlane.f32.xlu0 %v3607
        %v3609 = vpop.xlane.xlu0 %3608
        %vm3610 = vcmp.eq.f32.partialorder %v3607, %v3609
        %v3611 = vsel %vm3610, %v3606, inf
        %3612 = vmin.xlane.f32.xlu0 %v3611
        %v3613 = vpop.xlane.xlu0 %3612
        %v3614 = vcvt.f32.s32 %v3613
        %v3615 = vcvt.f32.s32 %v3609
        %v3616 = vshll.u32 %v3615, 16
        %v3617 = vadd.s32 %v3616, %v3614
        %v3618 = vand.u32 %v3524, 65535
        %v3619 = vshra.s32 %v3524, 16
        %v3620 = vcvt.s32.f32 %v3618
        %v3621 = vcvt.s32.f32 %v3619
        %3622 = vmin.xlane.f32.xlu0 %v3621
        %v3623 = vpop.xlane.xlu0 %3622
        %vm3624 = vcmp.eq.f32.partialorder %v3621, %v3623
        %v3625 = vsel %vm3624, %v3620, inf
        %3626 = vmin.xlane.f32.xlu0 %v3625
        %v3627 = vpop.xlane.xlu0 %3626
        %v3628 = vcvt.f32.s32 %v3627
        %v3629 = vcvt.f32.s32 %v3623
        %v3630 = vshll.u32 %v3629, 16
        %v3631 = vadd.s32 %v3630, %v3628
        %v3632 = vand.u32 %v3525, 65535
        %v3633 = vshra.s32 %v3525, 16
        %v3634 = vcvt.s32.f32 %v3632
        %v3635 = vcvt.s32.f32 %v3633
        %3636 = vmin.xlane.f32.xlu0 %v3635
        %v3637 = vpop.xlane.xlu0 %3636
        %vm3638 = vcmp.eq.f32.partialorder %v3635, %v3637
        %v3639 = vsel %vm3638, %v3634, inf
        %3640 = vmin.xlane.f32.xlu0 %v3639
        %v3641 = vpop.xlane.xlu0 %3640
        %v3642 = vcvt.f32.s32 %v3641
        %v3643 = vcvt.f32.s32 %v3637
        %v3644 = vshll.u32 %v3643, 16
        %v3645 = vadd.s32 %v3644, %v3642
        %v3646 = vand.u32 %v3526, 65535
        %v3647 = vshra.s32 %v3526, 16
        %v3648 = vcvt.s32.f32 %v3646
        %v3649 = vcvt.s32.f32 %v3647
        %3650 = vmin.xlane.f32.xlu0 %v3649
        %v3651 = vpop.xlane.xlu0 %3650
        %vm3652 = vcmp.eq.f32.partialorder %v3649, %v3651
        %v3653 = vsel %vm3652, %v3648, inf
        %3654 = vmin.xlane.f32.xlu0 %v3653
        %v3655 = vpop.xlane.xlu0 %3654
        %v3656 = vcvt.f32.s32 %v3655
        %v3657 = vcvt.f32.s32 %v3651
        %v3658 = vshll.u32 %v3657, 16
        %v3659 = vadd.s32 %v3658, %v3656
        %v3660 = vand.u32 %v3527, 65535
        %v3661 = vshra.s32 %v3527, 16
        %v3662 = vcvt.s32.f32 %v3660
        %v3663 = vcvt.s32.f32 %v3661
        %3664 = vmin.xlane.f32.xlu0 %v3663
        %v3665 = vpop.xlane.xlu0 %3664
        %vm3666 = vcmp.eq.f32.partialorder %v3663, %v3665
        %v3667 = vsel %vm3666, %v3662, inf
        %3668 = vmin.xlane.f32.xlu0 %v3667
        %v3669 = vpop.xlane.xlu0 %3668
        %v3670 = vcvt.f32.s32 %v3669
        %v3671 = vcvt.f32.s32 %v3665
        %v3672 = vshll.u32 %v3671, 16
        %v3673 = vadd.s32 %v3672, %v3670
        %v3674 = vand.u32 %v3528, 65535
        %v3675 = vshra.s32 %v3528, 16
        %v3676 = vcvt.s32.f32 %v3674
        %v3677 = vcvt.s32.f32 %v3675
        %3678 = vmin.xlane.f32.xlu0 %v3677
        %v3679 = vpop.xlane.xlu0 %3678
        %vm3680 = vcmp.eq.f32.partialorder %v3677, %v3679
        %v3681 = vsel %vm3680, %v3676, inf
        %3682 = vmin.xlane.f32.xlu0 %v3681
        %v3683 = vpop.xlane.xlu0 %3682
        %v3684 = vcvt.f32.s32 %v3683
        %v3685 = vcvt.f32.s32 %v3679
        %v3686 = vshll.u32 %v3685, 16
        %v3687 = vadd.s32 %v3686, %v3684
        %v3688 = vand.u32 %v3529, 65535
        %v3689 = vshra.s32 %v3529, 16
        %v3690 = vcvt.s32.f32 %v3688
        %v3691 = vcvt.s32.f32 %v3689
        %3692 = vmin.xlane.f32.xlu0 %v3691
        %v3693 = vpop.xlane.xlu0 %3692
        %vm3694 = vcmp.eq.f32.partialorder %v3691, %v3693
        %v3695 = vsel %vm3694, %v3690, inf
        %3696 = vmin.xlane.f32.xlu0 %v3695
        %v3697 = vpop.xlane.xlu0 %3696
        %v3698 = vcvt.f32.s32 %v3697
        %v3699 = vcvt.f32.s32 %v3693
        %v3700 = vshll.u32 %v3699, 16
        %v3701 = vadd.s32 %v3700, %v3698
        %v3702 = vand.u32 %v3530, 65535
        %v3703 = vshra.s32 %v3530, 16
        %v3704 = vcvt.s32.f32 %v3702
        %v3705 = vcvt.s32.f32 %v3703
        %3706 = vmin.xlane.f32.xlu0 %v3705
        %v3707 = vpop.xlane.xlu0 %3706
        %vm3708 = vcmp.eq.f32.partialorder %v3705, %v3707
        %v3709 = vsel %vm3708, %v3704, inf
        %3710 = vmin.xlane.f32.xlu0 %v3709
        %v3711 = vpop.xlane.xlu0 %3710
        %v3712 = vcvt.f32.s32 %v3711
        %v3713 = vcvt.f32.s32 %v3707
        %v3714 = vshll.u32 %v3713, 16
        %v3715 = vadd.s32 %v3714, %v3712
        %v3716 = vand.u32 %v3531, 65535
        %v3717 = vshra.s32 %v3531, 16
        %v3718 = vcvt.s32.f32 %v3716
        %v3719 = vcvt.s32.f32 %v3717
        %3720 = vmin.xlane.f32.xlu0 %v3719
        %v3721 = vpop.xlane.xlu0 %3720
        %vm3722 = vcmp.eq.f32.partialorder %v3719, %v3721
        %v3723 = vsel %vm3722, %v3718, inf
        %3724 = vmin.xlane.f32.xlu0 %v3723
        %v3725 = vpop.xlane.xlu0 %3724
        %v3726 = vcvt.f32.s32 %v3725
        %v3727 = vcvt.f32.s32 %v3721
        %v3728 = vshll.u32 %v3727, 16
        %v3729 = vadd.s32 %v3728, %v3726
        %v3730 = vand.u32 %v3532, 65535
        %v3731 = vshra.s32 %v3532, 16
        %v3732 = vcvt.s32.f32 %v3730
        %v3733 = vcvt.s32.f32 %v3731
        %3734 = vmin.xlane.f32.xlu0 %v3733
        %v3735 = vpop.xlane.xlu0 %3734
        %vm3736 = vcmp.eq.f32.partialorder %v3733, %v3735
        %v3737 = vsel %vm3736, %v3732, inf
        %3738 = vmin.xlane.f32.xlu0 %v3737
        %v3739 = vpop.xlane.xlu0 %3738
        %v3740 = vcvt.f32.s32 %v3739
        %v3741 = vcvt.f32.s32 %v3735
        %v3742 = vshll.u32 %v3741, 16
        %v3743 = vadd.s32 %v3742, %v3740
        %v3744 = vand.u32 %v3533, 65535
        %v3745 = vshra.s32 %v3533, 16
        %v3746 = vcvt.s32.f32 %v3744
        %v3747 = vcvt.s32.f32 %v3745
        %3748 = vmin.xlane.f32.xlu0 %v3747
        %v3749 = vpop.xlane.xlu0 %3748
        %vm3750 = vcmp.eq.f32.partialorder %v3747, %v3749
        %v3751 = vsel %vm3750, %v3746, inf
        %3752 = vmin.xlane.f32.xlu0 %v3751
        %v3753 = vpop.xlane.xlu0 %3752
        %v3754 = vcvt.f32.s32 %v3753
        %v3755 = vcvt.f32.s32 %v3749
        %v3756 = vshll.u32 %v3755, 16
        %v3757 = vadd.s32 %v3756, %v3754
        %vm3758 = vcmp.eq.s32.totalorder %v1117, %v3547
        %vm3759 = vcmp.eq.s32.totalorder %v1117, %v3561
        %vm3760 = vcmp.eq.s32.totalorder %v1117, %v3575
        %vm3761 = vcmp.eq.s32.totalorder %v1117, %v3589
        %vm3762 = vcmp.eq.s32.totalorder %v1117, %v3603
        %vm3763 = vcmp.eq.s32.totalorder %v1117, %v3617
        %vm3764 = vcmp.eq.s32.totalorder %v1117, %v3631
        %vm3765 = vcmp.eq.s32.totalorder %v1117, %v3645
        %vm3766 = vcmp.eq.s32.totalorder %v1117, %v3659
        %vm3767 = vcmp.eq.s32.totalorder %v1117, %v3673
        %vm3768 = vcmp.eq.s32.totalorder %v1117, %v3687
        %vm3769 = vcmp.eq.s32.totalorder %v1117, %v3701
        %vm3770 = vcmp.eq.s32.totalorder %v1117, %v3715
        %vm3771 = vcmp.eq.s32.totalorder %v1117, %v3729
        %vm3772 = vcmp.eq.s32.totalorder %v1117, %v3743
        %vm3773 = vcmp.eq.s32.totalorder %v1117, %v3757
        %v3774 = vsel %vm3758, 1.0, %v3438
        %v3775 = vsel %vm3759, 1.0, %v3439
        %v3776 = vsel %vm3760, 1.0, %v3440
        %v3777 = vsel %vm3761, 1.0, %v3441
        %v3778 = vsel %vm3762, 1.0, %v3442
        %v3779 = vsel %vm3763, 1.0, %v3443
        %v3780 = vsel %vm3764, 1.0, %v3444
        %v3781 = vsel %vm3765, 1.0, %v3445
        %v3782 = vsel %vm3766, 1.0, %v3446
        %v3783 = vsel %vm3767, 1.0, %v3447
        %v3784 = vsel %vm3768, 1.0, %v3448
        %v3785 = vsel %vm3769, 1.0, %v3449
        %v3786 = vsel %vm3770, 1.0, %v3450
        %v3787 = vsel %vm3771, 1.0, %v3451
        %v3788 = vsel %vm3772, 1.0, %v3452
        %v3789 = vsel %vm3773, 1.0, %v3453
        %v3790 = vmul.f32 %v1100, %v3774
        %v3791 = vmul.f32 %v1101, %v3775
        %v3792 = vmul.f32 %v1102, %v3776
        %v3793 = vmul.f32 %v1103, %v3777
        %v3794 = vmul.f32 %v1104, %v3778
        %v3795 = vmul.f32 %v1105, %v3779
        %v3796 = vmul.f32 %v1106, %v3780
        %v3797 = vmul.f32 %v1107, %v3781
        %v3798 = vmul.f32 %v1108, %v3782
        %v3799 = vmul.f32 %v1109, %v3783
        %v3800 = vmul.f32 %v1110, %v3784
        %v3801 = vmul.f32 %v1111, %v3785
        %v3802 = vmul.f32 %v1112, %v3786
        %v3803 = vmul.f32 %v1113, %v3787
        %v3804 = vmul.f32 %v1114, %v3788
        %v3805 = vmul.f32 %v1115, %v3789
        %v3806 = vld [vmem:[#allocation10] sm:$0xff]
        %v3807 = vld [vmem:[#allocation10 + $0x8] sm:$0xff]
        %v3808 = vld [vmem:[#allocation10 + $0x10] sm:$0xff]
        %v3809 = vld [vmem:[#allocation10 + $0x18] sm:$0xff]
        %v3810 = vld [vmem:[#allocation10 + $0x20] sm:$0xff]
        %v3811 = vld [vmem:[#allocation10 + $0x28] sm:$0xff]
        %v3812 = vld [vmem:[#allocation10 + $0x30] sm:$0xff]
        %v3813 = vld [vmem:[#allocation10 + $0x38] sm:$0xff]
        %v3814 = vld [vmem:[#allocation10 + $0x40] sm:$0xff]
        %v3815 = vld [vmem:[#allocation10 + $0x48] sm:$0xff]
        %v3816 = vld [vmem:[#allocation10 + $0x50] sm:$0xff]
        %v3817 = vld [vmem:[#allocation10 + $0x58] sm:$0xff]
        %v3818 = vld [vmem:[#allocation10 + $0x60] sm:$0xff]
        %v3819 = vld [vmem:[#allocation10 + $0x68] sm:$0xff]
        %v3820 = vld [vmem:[#allocation10 + $0x70] sm:$0xff]
        %v3821 = vld [vmem:[#allocation10 + $0x78] sm:$0xff]
        %v3822 = vld [vmem:[%s8] sm:$0x1]
        %v3824 = vlaneseq
        %v3825 = vshrl.u32 %v3824, 7
        %v3826 = vsub.s32 0, %v3825
        %v3827 = vrot.slane %v3822, %v3826
        %3829 = vmatprep.subr.mxu0 0.0
        %3830 = vmatpush1.msra.mxu0 %v3821
        %3831 = vmatprep.subr.mxu0 0.0
        %3832 = vmatpush1.msra.mxu0 %v3820
        %3833 = vmatprep.subr.mxu0 0.0
        %3834 = vmatpush1.msra.mxu0 %v3819
        %3835 = vmatprep.subr.mxu0 0.0
        %3836 = vmatpush1.msra.mxu0 %v3818
        %3837 = vmatprep.subr.mxu0 0.0
        %3838 = vmatpush1.msra.mxu0 %v3817
        %3839 = vmatprep.subr.mxu0 0.0
        %3840 = vmatpush1.msra.mxu0 %v3816
        %3841 = vmatprep.subr.mxu0 0.0
        %3842 = vmatpush1.msra.mxu0 %v3815
        %3843 = vmatprep.subr.mxu0 0.0
        %3844 = vmatpush1.msra.mxu0 %v3814
        %3845 = vmatprep.subr.mxu0 0.0
        %3846 = vmatpush1.msra.mxu0 %v3813
        %3847 = vmatprep.subr.mxu0 0.0
        %3848 = vmatpush1.msra.mxu0 %v3812
        %3849 = vmatprep.subr.mxu0 0.0
        %3850 = vmatpush1.msra.mxu0 %v3811
        %3851 = vmatprep.subr.mxu0 0.0
        %3852 = vmatpush1.msra.mxu0 %v3810
        %3853 = vmatprep.subr.mxu0 0.0
        %3854 = vmatpush1.msra.mxu0 %v3809
        %3855 = vmatprep.subr.mxu0 0.0
        %3856 = vmatpush1.msra.mxu0 %v3808
        %3857 = vmatprep.subr.mxu0 0.0
        %3858 = vmatpush1.msra.mxu0 %v3807
        %3859 = vmatprep.subr.mxu0 0.0
        %3860 = vmatpush1.msra.mxu0 %v3806
        %3861 = vmatprep.subr.mxu0 0.0
        %3862 = vmatpush2.msra.mxu0 0.0
        %3863 = vmatprep.subr.mxu0 0.0
        %3864 = vmatpush2.msra.mxu0 0.0
        %3865 = vmatprep.subr.mxu0 0.0
        %3866 = vmatpush2.msra.mxu0 0.0
        %3867 = vmatprep.subr.mxu0 0.0
        %3868 = vmatpush2.msra.mxu0 0.0
        %3869 = vmatprep.subr.mxu0 0.0
        %3870 = vmatpush2.msra.mxu0 0.0
        %3871 = vmatprep.subr.mxu0 0.0
        %3872 = vmatpush2.msra.mxu0 0.0
        %3873 = vmatprep.subr.mxu0 0.0
        %3874 = vmatpush2.msra.mxu0 0.0
        %3875 = vmatprep.subr.mxu0 0.0
        %3876 = vmatpush2.msra.mxu0 0.0
        %3877 = vmatprep.subr.mxu0 0.0
        %3878 = vmatpush2.msra.mxu0 0.0
        %3879 = vmatprep.subr.mxu0 0.0
        %3880 = vmatpush2.msra.mxu0 0.0
        %3881 = vmatprep.subr.mxu0 0.0
        %3882 = vmatpush2.msra.mxu0 0.0
        %3883 = vmatprep.subr.mxu0 0.0
        %3884 = vmatpush2.msra.mxu0 0.0
        %3885 = vmatprep.subr.mxu0 0.0
        %3886 = vmatpush2.msra.mxu0 0.0
        %3887 = vmatprep.subr.mxu0 0.0
        %3888 = vmatpush2.msra.mxu0 0.0
        %3889 = vmatprep.subr.mxu0 0.0
        %3890 = vmatpush2.msra.mxu0 0.0
        %3891 = vmatprep.subr.mxu0 0.0
        %3892 = vmatpush2.msra.mxu0 0.0
        %3893 = vmatprep.mubr.f32.mxu0 0.0
        %3894 = vmatmul.mubr.f32.gmra.mxu0 %v3790
        %v3895 = vpop.f32.mrf.mxu0
        %v3896 = vadd.f32 %v3827, %v3895
        %v3897 = vpop.f32.mrf.mxu0
        %3898 = vmatprep.mubr.f32.mxu0 0.0
        %3899 = vmatmul.mubr.f32.gmra.mxu0 %v3791
        %v3900 = vpop.f32.mrf.mxu0
        %v3901 = vadd.f32 %v3827, %v3900
        %v3902 = vpop.f32.mrf.mxu0
        %3903 = vmatprep.mubr.f32.mxu0 0.0
        %3904 = vmatmul.mubr.f32.gmra.mxu0 %v3792
        %v3905 = vpop.f32.mrf.mxu0
        %v3906 = vadd.f32 %v3827, %v3905
        %v3907 = vpop.f32.mrf.mxu0
        %3908 = vmatprep.mubr.f32.mxu0 0.0
        %3909 = vmatmul.mubr.f32.gmra.mxu0 %v3793
        %v3910 = vpop.f32.mrf.mxu0
        %v3911 = vadd.f32 %v3827, %v3910
        %v3912 = vpop.f32.mrf.mxu0
        %3913 = vmatprep.mubr.f32.mxu0 0.0
        %3914 = vmatmul.mubr.f32.gmra.mxu0 %v3794
        %v3915 = vpop.f32.mrf.mxu0
        %v3916 = vadd.f32 %v3827, %v3915
        %v3917 = vpop.f32.mrf.mxu0
        %3918 = vmatprep.mubr.f32.mxu0 0.0
        %3919 = vmatmul.mubr.f32.gmra.mxu0 %v3795
        %v3920 = vpop.f32.mrf.mxu0
        %v3921 = vadd.f32 %v3827, %v3920
        %v3922 = vpop.f32.mrf.mxu0
        %3923 = vmatprep.mubr.f32.mxu0 0.0
        %3924 = vmatmul.mubr.f32.gmra.mxu0 %v3796
        %v3925 = vpop.f32.mrf.mxu0
        %v3926 = vadd.f32 %v3827, %v3925
        %v3927 = vpop.f32.mrf.mxu0
        %3928 = vmatprep.mubr.f32.mxu0 0.0
        %3929 = vmatmul.mubr.f32.gmra.mxu0 %v3797
        %v3930 = vpop.f32.mrf.mxu0
        %v3931 = vadd.f32 %v3827, %v3930
        %v3932 = vpop.f32.mrf.mxu0
        %3933 = vmatprep.mubr.f32.mxu0 0.0
        %3934 = vmatmul.mubr.f32.gmra.mxu0 %v3798
        %v3935 = vpop.f32.mrf.mxu0
        %v3936 = vadd.f32 %v3827, %v3935
        %v3937 = vpop.f32.mrf.mxu0
        %3938 = vmatprep.mubr.f32.mxu0 0.0
        %3939 = vmatmul.mubr.f32.gmra.mxu0 %v3799
        %v3940 = vpop.f32.mrf.mxu0
        %v3941 = vadd.f32 %v3827, %v3940
        %v3942 = vpop.f32.mrf.mxu0
        %3943 = vmatprep.mubr.f32.mxu0 0.0
        %3944 = vmatmul.mubr.f32.gmra.mxu0 %v3800
        %v3945 = vpop.f32.mrf.mxu0
        %v3946 = vadd.f32 %v3827, %v3945
        %v3947 = vpop.f32.mrf.mxu0
        %3948 = vmatprep.mubr.f32.mxu0 0.0
        %3949 = vmatmul.mubr.f32.gmra.mxu0 %v3801
        %v3950 = vpop.f32.mrf.mxu0
        %v3951 = vadd.f32 %v3827, %v3950
        %v3952 = vpop.f32.mrf.mxu0
        %3953 = vmatprep.mubr.f32.mxu0 0.0
        %3954 = vmatmul.mubr.f32.gmra.mxu0 %v3802
        %v3955 = vpop.f32.mrf.mxu0
        %v3956 = vadd.f32 %v3827, %v3955
        %v3957 = vpop.f32.mrf.mxu0
        %3958 = vmatprep.mubr.f32.mxu0 0.0
        %3959 = vmatmul.mubr.f32.gmra.mxu0 %v3803
        %v3960 = vpop.f32.mrf.mxu0
        %v3961 = vadd.f32 %v3827, %v3960
        %v3962 = vpop.f32.mrf.mxu0
        %3963 = vmatprep.mubr.f32.mxu0 0.0
        %3964 = vmatmul.mubr.f32.gmra.mxu0 %v3804
        %v3965 = vpop.f32.mrf.mxu0
        %v3966 = vadd.f32 %v3827, %v3965
        %v3967 = vpop.f32.mrf.mxu0
        %3968 = vmatprep.mubr.f32.mxu0 0.0
        %3969 = vmatmul.mubr.f32.gmra.mxu0 %v3805
        %v3970 = vpop.f32.mrf.mxu0
        %v3971 = vadd.f32 %v3827, %v3970
        %v3972 = vpop.f32.mrf.mxu0
        %3973 = vdwg.mxu0
        %v3974 = vmax.f32 %v3896, 0.0
        %v3975 = vmax.f32 %v3901, 0.0
        %v3976 = vmax.f32 %v3906, 0.0
        %v3977 = vmax.f32 %v3911, 0.0
        %v3978 = vmax.f32 %v3916, 0.0
        %v3979 = vmax.f32 %v3921, 0.0
        %v3980 = vmax.f32 %v3926, 0.0
        %v3981 = vmax.f32 %v3931, 0.0
        %v3982 = vmax.f32 %v3936, 0.0
        %v3983 = vmax.f32 %v3941, 0.0
        %v3984 = vmax.f32 %v3946, 0.0
        %v3985 = vmax.f32 %v3951, 0.0
        %v3986 = vmax.f32 %v3956, 0.0
        %v3987 = vmax.f32 %v3961, 0.0
        %v3988 = vmax.f32 %v3966, 0.0
        %v3989 = vmax.f32 %v3971, 0.0
        %v3990 = vld [vmem:[#allocation11] sm:$0xff]
        %v3991 = vld [vmem:[#allocation11 + $0x8] sm:$0xff]
        %v3992 = vld [vmem:[#allocation11 + $0x10] sm:$0xff]
        %v3993 = vld [vmem:[#allocation11 + $0x18] sm:$0xff]
        %v3994 = vld [vmem:[#allocation11 + $0x20] sm:$0xff]
        %v3995 = vld [vmem:[#allocation11 + $0x28] sm:$0xff]
        %v3996 = vld [vmem:[#allocation11 + $0x30] sm:$0xff]
        %v3997 = vld [vmem:[#allocation11 + $0x38] sm:$0xff]
        %v3998 = vld [vmem:[#allocation11 + $0x40] sm:$0xff]
        %v3999 = vld [vmem:[#allocation11 + $0x48] sm:$0xff]
        %v4000 = vld [vmem:[#allocation11 + $0x50] sm:$0xff]
        %v4001 = vld [vmem:[#allocation11 + $0x58] sm:$0xff]
        %v4002 = vld [vmem:[#allocation11 + $0x60] sm:$0xff]
        %v4003 = vld [vmem:[#allocation11 + $0x68] sm:$0xff]
        %v4004 = vld [vmem:[#allocation11 + $0x70] sm:$0xff]
        %v4005 = vld [vmem:[#allocation11 + $0x78] sm:$0xff]
        %v4006 = vld [vmem:[%s10] sm:$0x1]
        %v4008 = vlaneseq
        %v4009 = vshrl.u32 %v4008, 7
        %v4010 = vsub.s32 0, %v4009
        %v4011 = vrot.slane %v4006, %v4010
        %4013 = vmatprep.subr.mxu0 0.0
        %4014 = vmatpush1.msra.mxu0 %v4005
        %4015 = vmatprep.subr.mxu0 0.0
        %4016 = vmatpush1.msra.mxu0 %v4004
        %4017 = vmatprep.subr.mxu0 0.0
        %4018 = vmatpush1.msra.mxu0 %v4003
        %4019 = vmatprep.subr.mxu0 0.0
        %4020 = vmatpush1.msra.mxu0 %v4002
        %4021 = vmatprep.subr.mxu0 0.0
        %4022 = vmatpush1.msra.mxu0 %v4001
        %4023 = vmatprep.subr.mxu0 0.0
        %4024 = vmatpush1.msra.mxu0 %v4000
        %4025 = vmatprep.subr.mxu0 0.0
        %4026 = vmatpush1.msra.mxu0 %v3999
        %4027 = vmatprep.subr.mxu0 0.0
        %4028 = vmatpush1.msra.mxu0 %v3998
        %4029 = vmatprep.subr.mxu0 0.0
        %4030 = vmatpush1.msra.mxu0 %v3997
        %4031 = vmatprep.subr.mxu0 0.0
        %4032 = vmatpush1.msra.mxu0 %v3996
        %4033 = vmatprep.subr.mxu0 0.0
        %4034 = vmatpush1.msra.mxu0 %v3995
        %4035 = vmatprep.subr.mxu0 0.0
        %4036 = vmatpush1.msra.mxu0 %v3994
        %4037 = vmatprep.subr.mxu0 0.0
        %4038 = vmatpush1.msra.mxu0 %v3993
        %4039 = vmatprep.subr.mxu0 0.0
        %4040 = vmatpush1.msra.mxu0 %v3992
        %4041 = vmatprep.subr.mxu0 0.0
        %4042 = vmatpush1.msra.mxu0 %v3991
        %4043 = vmatprep.subr.mxu0 0.0
        %4044 = vmatpush1.msra.mxu0 %v3990
        %4045 = vmatprep.subr.mxu0 0.0
        %4046 = vmatpush2.msra.mxu0 0.0
        %4047 = vmatprep.subr.mxu0 0.0
        %4048 = vmatpush2.msra.mxu0 0.0
        %4049 = vmatprep.subr.mxu0 0.0
        %4050 = vmatpush2.msra.mxu0 0.0
        %4051 = vmatprep.subr.mxu0 0.0
        %4052 = vmatpush2.msra.mxu0 0.0
        %4053 = vmatprep.subr.mxu0 0.0
        %4054 = vmatpush2.msra.mxu0 0.0
        %4055 = vmatprep.subr.mxu0 0.0
        %4056 = vmatpush2.msra.mxu0 0.0
        %4057 = vmatprep.subr.mxu0 0.0
        %4058 = vmatpush2.msra.mxu0 0.0
        %4059 = vmatprep.subr.mxu0 0.0
        %4060 = vmatpush2.msra.mxu0 0.0
        %4061 = vmatprep.subr.mxu0 0.0
        %4062 = vmatpush2.msra.mxu0 0.0
        %4063 = vmatprep.subr.mxu0 0.0
        %4064 = vmatpush2.msra.mxu0 0.0
        %4065 = vmatprep.subr.mxu0 0.0
        %4066 = vmatpush2.msra.mxu0 0.0
        %4067 = vmatprep.subr.mxu0 0.0
        %4068 = vmatpush2.msra.mxu0 0.0
        %4069 = vmatprep.subr.mxu0 0.0
        %4070 = vmatpush2.msra.mxu0 0.0
        %4071 = vmatprep.subr.mxu0 0.0
        %4072 = vmatpush2.msra.mxu0 0.0
        %4073 = vmatprep.subr.mxu0 0.0
        %4074 = vmatpush2.msra.mxu0 0.0
        %4075 = vmatprep.subr.mxu0 0.0
        %4076 = vmatpush2.msra.mxu0 0.0
        %4077 = vmatprep.mubr.f32.mxu0 0.0
        %4078 = vmatmul.mubr.f32.gmra.mxu0 %v3974
        %v4079 = vpop.f32.mrf.mxu0
        %v4080 = vadd.f32 %v4011, %v4079
        %v4081 = vpop.f32.mrf.mxu0
        %4082 = vmatprep.mubr.f32.mxu0 0.0
        %4083 = vmatmul.mubr.f32.gmra.mxu0 %v3975
        %v4084 = vpop.f32.mrf.mxu0
        %v4085 = vadd.f32 %v4011, %v4084
        %v4086 = vpop.f32.mrf.mxu0
        %4087 = vmatprep.mubr.f32.mxu0 0.0
        %4088 = vmatmul.mubr.f32.gmra.mxu0 %v3976
        %v4089 = vpop.f32.mrf.mxu0
        %v4090 = vadd.f32 %v4011, %v4089
        %v4091 = vpop.f32.mrf.mxu0
        %4092 = vmatprep.mubr.f32.mxu0 0.0
        %4093 = vmatmul.mubr.f32.gmra.mxu0 %v3977
        %v4094 = vpop.f32.mrf.mxu0
        %v4095 = vadd.f32 %v4011, %v4094
        %v4096 = vpop.f32.mrf.mxu0
        %4097 = vmatprep.mubr.f32.mxu0 0.0
        %4098 = vmatmul.mubr.f32.gmra.mxu0 %v3978
        %v4099 = vpop.f32.mrf.mxu0
        %v4100 = vadd.f32 %v4011, %v4099
        %v4101 = vpop.f32.mrf.mxu0
        %4102 = vmatprep.mubr.f32.mxu0 0.0
        %4103 = vmatmul.mubr.f32.gmra.mxu0 %v3979
        %v4104 = vpop.f32.mrf.mxu0
        %v4105 = vadd.f32 %v4011, %v4104
        %v4106 = vpop.f32.mrf.mxu0
        %4107 = vmatprep.mubr.f32.mxu0 0.0
        %4108 = vmatmul.mubr.f32.gmra.mxu0 %v3980
        %v4109 = vpop.f32.mrf.mxu0
        %v4110 = vadd.f32 %v4011, %v4109
        %v4111 = vpop.f32.mrf.mxu0
        %4112 = vmatprep.mubr.f32.mxu0 0.0
        %4113 = vmatmul.mubr.f32.gmra.mxu0 %v3981
        %v4114 = vpop.f32.mrf.mxu0
        %v4115 = vadd.f32 %v4011, %v4114
        %v4116 = vpop.f32.mrf.mxu0
        %4117 = vmatprep.mubr.f32.mxu0 0.0
        %4118 = vmatmul.mubr.f32.gmra.mxu0 %v3982
        %v4119 = vpop.f32.mrf.mxu0
        %v4120 = vadd.f32 %v4011, %v4119
        %v4121 = vpop.f32.mrf.mxu0
        %4122 = vmatprep.mubr.f32.mxu0 0.0
        %4123 = vmatmul.mubr.f32.gmra.mxu0 %v3983
        %v4124 = vpop.f32.mrf.mxu0
        %v4125 = vadd.f32 %v4011, %v4124
        %v4126 = vpop.f32.mrf.mxu0
        %4127 = vmatprep.mubr.f32.mxu0 0.0
        %4128 = vmatmul.mubr.f32.gmra.mxu0 %v3984
        %v4129 = vpop.f32.mrf.mxu0
        %v4130 = vadd.f32 %v4011, %v4129
        %v4131 = vpop.f32.mrf.mxu0
        %4132 = vmatprep.mubr.f32.mxu0 0.0
        %4133 = vmatmul.mubr.f32.gmra.mxu0 %v3985
        %v4134 = vpop.f32.mrf.mxu0
        %v4135 = vadd.f32 %v4011, %v4134
        %v4136 = vpop.f32.mrf.mxu0
        %4137 = vmatprep.mubr.f32.mxu0 0.0
        %4138 = vmatmul.mubr.f32.gmra.mxu0 %v3986
        %v4139 = vpop.f32.mrf.mxu0
        %v4140 = vadd.f32 %v4011, %v4139
        %v4141 = vpop.f32.mrf.mxu0
        %4142 = vmatprep.mubr.f32.mxu0 0.0
        %4143 = vmatmul.mubr.f32.gmra.mxu0 %v3987
        %v4144 = vpop.f32.mrf.mxu0
        %v4145 = vadd.f32 %v4011, %v4144
        %v4146 = vpop.f32.mrf.mxu0
        %4147 = vmatprep.mubr.f32.mxu0 0.0
        %4148 = vmatmul.mubr.f32.gmra.mxu0 %v3988
        %v4149 = vpop.f32.mrf.mxu0
        %v4150 = vadd.f32 %v4011, %v4149
        %v4151 = vpop.f32.mrf.mxu0
        %4152 = vmatprep.mubr.f32.mxu0 0.0
        %4153 = vmatmul.mubr.f32.gmra.mxu0 %v3989
        %v4154 = vpop.f32.mrf.mxu0
        %v4155 = vadd.f32 %v4011, %v4154
        %v4156 = vpop.f32.mrf.mxu0
        %4157 = vdwg.mxu0
        %v4158 = vmax.f32 %v4080, 0.0
        %v4159 = vmax.f32 %v4085, 0.0
        %v4160 = vmax.f32 %v4090, 0.0
        %v4161 = vmax.f32 %v4095, 0.0
        %v4162 = vmax.f32 %v4100, 0.0
        %v4163 = vmax.f32 %v4105, 0.0
        %v4164 = vmax.f32 %v4110, 0.0
        %v4165 = vmax.f32 %v4115, 0.0
        %v4166 = vmax.f32 %v4120, 0.0
        %v4167 = vmax.f32 %v4125, 0.0
        %v4168 = vmax.f32 %v4130, 0.0
        %v4169 = vmax.f32 %v4135, 0.0
        %v4170 = vmax.f32 %v4140, 0.0
        %v4171 = vmax.f32 %v4145, 0.0
        %v4172 = vmax.f32 %v4150, 0.0
        %v4173 = vmax.f32 %v4155, 0.0
        %v4174 = vld [vmem:[#allocation13] sm:$0xff]
        %v4175 = vld [vmem:[#allocation13 + $0x8] sm:$0xff]
        %v4176 = vld [vmem:[#allocation13 + $0x10] sm:$0xff]
        %v4177 = vld [vmem:[#allocation13 + $0x18] sm:$0xff]
        %v4178 = vld [vmem:[#allocation13 + $0x20] sm:$0xff]
        %v4179 = vld [vmem:[#allocation13 + $0x28] sm:$0xff]
        %v4180 = vld [vmem:[#allocation13 + $0x30] sm:$0xff]
        %v4181 = vld [vmem:[#allocation13 + $0x38] sm:$0xff]
        %v4182 = vld [vmem:[#allocation13 + $0x40] sm:$0xff]
        %v4183 = vld [vmem:[#allocation13 + $0x48] sm:$0xff]
        %v4184 = vld [vmem:[#allocation13 + $0x50] sm:$0xff]
        %v4185 = vld [vmem:[#allocation13 + $0x58] sm:$0xff]
        %v4186 = vld [vmem:[#allocation13 + $0x60] sm:$0xff]
        %v4187 = vld [vmem:[#allocation13 + $0x68] sm:$0xff]
        %v4188 = vld [vmem:[#allocation13 + $0x70] sm:$0xff]
        %v4189 = vld [vmem:[#allocation13 + $0x78] sm:$0xff]
        %v4190 = vld [vmem:[%s12] sm:$0x1]
        %v4192 = vlaneseq
        %v4193 = vshrl.u32 %v4192, 7
        %v4194 = vsub.s32 0, %v4193
        %v4195 = vrot.slane %v4190, %v4194
        %4197 = vmatprep.subr.mxu0 0.0
        %4198 = vmatpush1.msra.mxu0 %v4189
        %4199 = vmatprep.subr.mxu0 0.0
        %4200 = vmatpush1.msra.mxu0 %v4188
        %4201 = vmatprep.subr.mxu0 0.0
        %4202 = vmatpush1.msra.mxu0 %v4187
        %4203 = vmatprep.subr.mxu0 0.0
        %4204 = vmatpush1.msra.mxu0 %v4186
        %4205 = vmatprep.subr.mxu0 0.0
        %4206 = vmatpush1.msra.mxu0 %v4185
        %4207 = vmatprep.subr.mxu0 0.0
        %4208 = vmatpush1.msra.mxu0 %v4184
        %4209 = vmatprep.subr.mxu0 0.0
        %4210 = vmatpush1.msra.mxu0 %v4183
        %4211 = vmatprep.subr.mxu0 0.0
        %4212 = vmatpush1.msra.mxu0 %v4182
        %4213 = vmatprep.subr.mxu0 0.0
        %4214 = vmatpush1.msra.mxu0 %v4181
        %4215 = vmatprep.subr.mxu0 0.0
        %4216 = vmatpush1.msra.mxu0 %v4180
        %4217 = vmatprep.subr.mxu0 0.0
        %4218 = vmatpush1.msra.mxu0 %v4179
        %4219 = vmatprep.subr.mxu0 0.0
        %4220 = vmatpush1.msra.mxu0 %v4178
        %4221 = vmatprep.subr.mxu0 0.0
        %4222 = vmatpush1.msra.mxu0 %v4177
        %4223 = vmatprep.subr.mxu0 0.0
        %4224 = vmatpush1.msra.mxu0 %v4176
        %4225 = vmatprep.subr.mxu0 0.0
        %4226 = vmatpush1.msra.mxu0 %v4175
        %4227 = vmatprep.subr.mxu0 0.0
        %4228 = vmatpush1.msra.mxu0 %v4174
        %4229 = vmatprep.subr.mxu0 0.0
        %4230 = vmatpush2.msra.mxu0 0.0
        %4231 = vmatprep.subr.mxu0 0.0
        %4232 = vmatpush2.msra.mxu0 0.0
        %4233 = vmatprep.subr.mxu0 0.0
        %4234 = vmatpush2.msra.mxu0 0.0
        %4235 = vmatprep.subr.mxu0 0.0
        %4236 = vmatpush2.msra.mxu0 0.0
        %4237 = vmatprep.subr.mxu0 0.0
        %4238 = vmatpush2.msra.mxu0 0.0
        %4239 = vmatprep.subr.mxu0 0.0
        %4240 = vmatpush2.msra.mxu0 0.0
        %4241 = vmatprep.subr.mxu0 0.0
        %4242 = vmatpush2.msra.mxu0 0.0
        %4243 = vmatprep.subr.mxu0 0.0
        %4244 = vmatpush2.msra.mxu0 0.0
        %4245 = vmatprep.subr.mxu0 0.0
        %4246 = vmatpush2.msra.mxu0 0.0
        %4247 = vmatprep.subr.mxu0 0.0
        %4248 = vmatpush2.msra.mxu0 0.0
        %4249 = vmatprep.subr.mxu0 0.0
        %4250 = vmatpush2.msra.mxu0 0.0
        %4251 = vmatprep.subr.mxu0 0.0
        %4252 = vmatpush2.msra.mxu0 0.0
        %4253 = vmatprep.subr.mxu0 0.0
        %4254 = vmatpush2.msra.mxu0 0.0
        %4255 = vmatprep.subr.mxu0 0.0
        %4256 = vmatpush2.msra.mxu0 0.0
        %4257 = vmatprep.subr.mxu0 0.0
        %4258 = vmatpush2.msra.mxu0 0.0
        %4259 = vmatprep.subr.mxu0 0.0
        %4260 = vmatpush2.msra.mxu0 0.0
        %4261 = vmatprep.mubr.f32.mxu0 0.0
        %4262 = vmatmul.mubr.f32.gmra.mxu0 %v4158
        %v4263 = vpop.f32.mrf.mxu0
        %v4264 = vadd.f32 %v4195, %v4263
        %v4265 = vpop.f32.mrf.mxu0
        %4266 = vmatprep.mubr.f32.mxu0 0.0
        %4267 = vmatmul.mubr.f32.gmra.mxu0 %v4159
        %v4268 = vpop.f32.mrf.mxu0
        %v4269 = vadd.f32 %v4195, %v4268
        %v4270 = vpop.f32.mrf.mxu0
        %4271 = vmatprep.mubr.f32.mxu0 0.0
        %4272 = vmatmul.mubr.f32.gmra.mxu0 %v4160
        %v4273 = vpop.f32.mrf.mxu0
        %v4274 = vadd.f32 %v4195, %v4273
        %v4275 = vpop.f32.mrf.mxu0
        %4276 = vmatprep.mubr.f32.mxu0 0.0
        %4277 = vmatmul.mubr.f32.gmra.mxu0 %v4161
        %v4278 = vpop.f32.mrf.mxu0
        %v4279 = vadd.f32 %v4195, %v4278
        %v4280 = vpop.f32.mrf.mxu0
        %4281 = vmatprep.mubr.f32.mxu0 0.0
        %4282 = vmatmul.mubr.f32.gmra.mxu0 %v4162
        %v4283 = vpop.f32.mrf.mxu0
        %v4284 = vadd.f32 %v4195, %v4283
        %v4285 = vpop.f32.mrf.mxu0
        %4286 = vmatprep.mubr.f32.mxu0 0.0
        %4287 = vmatmul.mubr.f32.gmra.mxu0 %v4163
        %v4288 = vpop.f32.mrf.mxu0
        %v4289 = vadd.f32 %v4195, %v4288
        %v4290 = vpop.f32.mrf.mxu0
        %4291 = vmatprep.mubr.f32.mxu0 0.0
        %4292 = vmatmul.mubr.f32.gmra.mxu0 %v4164
        %v4293 = vpop.f32.mrf.mxu0
        %v4294 = vadd.f32 %v4195, %v4293
        %v4295 = vpop.f32.mrf.mxu0
        %4296 = vmatprep.mubr.f32.mxu0 0.0
        %4297 = vmatmul.mubr.f32.gmra.mxu0 %v4165
        %v4298 = vpop.f32.mrf.mxu0
        %v4299 = vadd.f32 %v4195, %v4298
        %v4300 = vpop.f32.mrf.mxu0
        %4301 = vmatprep.mubr.f32.mxu0 0.0
        %4302 = vmatmul.mubr.f32.gmra.mxu0 %v4166
        %v4303 = vpop.f32.mrf.mxu0
        %v4304 = vadd.f32 %v4195, %v4303
        %v4305 = vpop.f32.mrf.mxu0
        %4306 = vmatprep.mubr.f32.mxu0 0.0
        %4307 = vmatmul.mubr.f32.gmra.mxu0 %v4167
        %v4308 = vpop.f32.mrf.mxu0
        %v4309 = vadd.f32 %v4195, %v4308
        %v4310 = vpop.f32.mrf.mxu0
        %4311 = vmatprep.mubr.f32.mxu0 0.0
        %4312 = vmatmul.mubr.f32.gmra.mxu0 %v4168
        %v4313 = vpop.f32.mrf.mxu0
        %v4314 = vadd.f32 %v4195, %v4313
        %v4315 = vpop.f32.mrf.mxu0
        %4316 = vmatprep.mubr.f32.mxu0 0.0
        %4317 = vmatmul.mubr.f32.gmra.mxu0 %v4169
        %v4318 = vpop.f32.mrf.mxu0
        %v4319 = vadd.f32 %v4195, %v4318
        %v4320 = vpop.f32.mrf.mxu0
        %4321 = vmatprep.mubr.f32.mxu0 0.0
        %4322 = vmatmul.mubr.f32.gmra.mxu0 %v4170
        %v4323 = vpop.f32.mrf.mxu0
        %v4324 = vadd.f32 %v4195, %v4323
        %v4325 = vpop.f32.mrf.mxu0
        %4326 = vmatprep.mubr.f32.mxu0 0.0
        %4327 = vmatmul.mubr.f32.gmra.mxu0 %v4171
        %v4328 = vpop.f32.mrf.mxu0
        %v4329 = vadd.f32 %v4195, %v4328
        %v4330 = vpop.f32.mrf.mxu0
        %4331 = vmatprep.mubr.f32.mxu0 0.0
        %4332 = vmatmul.mubr.f32.gmra.mxu0 %v4172
        %v4333 = vpop.f32.mrf.mxu0
        %v4334 = vadd.f32 %v4195, %v4333
        %v4335 = vpop.f32.mrf.mxu0
        %4336 = vmatprep.mubr.f32.mxu0 0.0
        %4337 = vmatmul.mubr.f32.gmra.mxu0 %v4173
        %v4338 = vpop.f32.mrf.mxu0
        %v4339 = vadd.f32 %v4195, %v4338
        %v4340 = vpop.f32.mrf.mxu0
        %4341 = vdwg.mxu0
        %4342 = vst [vmem:[%s545] sm:$0xff] %v4264
        %4343 = vst [vmem:[%s545 + $0x8] sm:$0xff] %v4269
        %4344 = vst [vmem:[%s545 + $0x10] sm:$0xff] %v4274
        %4345 = vst [vmem:[%s545 + $0x18] sm:$0xff] %v4279
        %4346 = vst [vmem:[%s545 + $0x20] sm:$0xff] %v4284
        %4347 = vst [vmem:[%s545 + $0x28] sm:$0xff] %v4289
        %4348 = vst [vmem:[%s545 + $0x30] sm:$0xff] %v4294
        %4349 = vst [vmem:[%s545 + $0x38] sm:$0xff] %v4299
        %4350 = vst [vmem:[%s545 + $0x40] sm:$0xff] %v4304
        %4351 = vst [vmem:[%s545 + $0x48] sm:$0xff] %v4309
        %4352 = vst [vmem:[%s545 + $0x50] sm:$0xff] %v4314
        %4353 = vst [vmem:[%s545 + $0x58] sm:$0xff] %v4319
        %4354 = vst [vmem:[%s545 + $0x60] sm:$0xff] %v4324
        %4355 = vst [vmem:[%s545 + $0x68] sm:$0xff] %v4329
        %4356 = vst [vmem:[%s545 + $0x70] sm:$0xff] %v4334
        %4357 = vst [vmem:[%s545 + $0x78] sm:$0xff] %v4339
        %s4358 = sand.u32 %s319, 1
        %s4359 = scalar_lea.sflag [#allocation4], %s4358
        %s4360 = sand.u32 %s319, 1
        %s4361 = smul.addr %s4360, 128
        %s4362 = scalar_lea.vmem [#allocation14], %s4361
        // Predicated region
        $region101: #{tpu_custom_call.1} parent=71 // pred_check
          %p4363 = pneg %p329
        $region102: #{tpu_custom_call.1} parent=71 // pred_check_branch
          %4365 = sbr.rel (%p4363) target = $region104
        $region103: #{tpu_custom_call.1} parent=71 // pred_region
          %s4366 = smul.u32 16, %s33
          %s4368 = ssub.s32 2048, 2048
          %4369 = vsyncadd %s4359, %s4368
          %s4370 = smul.addr %s4366, 128
          %s4371 = scalar_lea.hbm %s13, %s4370
          %s4372 = sshll.u32 %s4362, 4
          %s4373 = int_to_ptr.vmem [resolvable:$true] %s4372
          %4378 = dma.vmem_to_hbm [thread:$0]  %s4373, 2048, %s4371, %s4359, 128, 128, 8
        $region104: #{tpu_custom_call.1} parent=71 // pred_fallthru
          _
      $region72: #{tpu_custom_call.1} parent=5 // pred_fallthru
        _
      %p4379 = scmp.le.s32.totalorder 2, %s28
      // Predicated region
      $region105: #{tpu_custom_call.1} parent=5 // pred_check
        %p4380 = pneg %p4379
      $region106: #{tpu_custom_call.1} parent=5 // pred_check_branch
        %4382 = sbr.rel (%p4380) target = $region108
      $region107: #{tpu_custom_call.1} parent=5 // pred_region
        %s4383 = ssub.s32 %s28, 2
        // Predicated region
        $region109: #{tpu_custom_call.1} parent=107 // pred_check
          %p4384 = pneg %p335
        $region110: #{tpu_custom_call.1} parent=107 // pred_check_branch
          %4386 = sbr.rel (%p4384) target = $region112
        $region111: #{tpu_custom_call.1} parent=107 // pred_region
          %s4387 = sand.u32 %s320, 1
          %s4388 = scalar_lea.sflag [#allocation4], %s4387
          %s4389 = sand.u32 %s320, 1
          %s4390 = smul.addr %s4389, 128
          %s4391 = scalar_lea.vmem [#allocation14], %s4390
          %4392 = dma.done %s4388, 2048
        $region112: #{tpu_custom_call.1} parent=107 // pred_fallthru
          _
      $region108: #{tpu_custom_call.1} parent=5 // pred_fallthru
        _
    $region6: #{tpu_custom_call.1} parent=1 // loop_footer
      %s32 = sadd.s32 1, %s28
    $region7: #{tpu_custom_call.1} parent=1 // loop_footer_branch
      %27 = sbr.rel target = $region3
    $region8: #{tpu_custom_call.1} parent=1 // loop_exit
      _
    %4393 = vsyncpa [#allocation3], 1
    %s4394 = scalar_lea.sflag [#allocation3], 1
    %4395 = vsyncpa %s4394, 1
    %4396 = vsyncpa [#allocation6], 1
    %4397 = vsyncpa [#allocation9], 1
    %4398 = vsyncpa [#allocation12], 1
    %4399 = vsyncpa [#allocation4], 1
    %s4400 = scalar_lea.sflag [#allocation4], 1
    %4401 = vsyncpa %s4400, 1

</llo_original>
